<compile_context>
chip_gen: v5e
topology: v5e:2x2
jax: 0.10.0
libtpu: 0.0.40
codegen_flags: <defaults>
</compile_context>

<pallas_src>
import functools

import jax
import jax.numpy as jnp
from jax.experimental import pallas as pl
from jax.experimental.pallas import tpu as pltpu

BN_EPS = 1e-5
VMEM_LIMIT = 48 * 1024 * 1024   # leaves headroom under v7x's 64 MiB physical VMEM


def _round_up(x, m):
    return (x + m - 1) // m * m


def _col_tile(cp, max_tile):
    """Largest multiple of 128 that divides cp and is <= max_tile (cp is a 128-multiple)."""
    t = min(cp, max_tile)
    while cp % t:
        t -= 128
    return t


# --------------------------------------------------------------------------- #
# Pass 1: dilated conv for one (sample, cout-tile) + per-sample BN partial stats.
# Grid = (N, cout_tiles); both axes fully parallel (no cross-step accumulation).
# --------------------------------------------------------------------------- #
def _conv_stats_kernel(x_ref, w_ref, mask_ref, y_ref, psum_ref, pm2_ref, *, taps, count):
    """
    x_ref    : (L, Cin)          flattened zero-padded NHWC activation (compute dtype)
    w_ref    : (KH, KW, Cin, TN) weight panel (compute dtype), resident across samples
    mask_ref : (M, 1) f32        1.0 for rows that are real output pixels
    y_ref    : (M, TN)           conv output tile (compute dtype)
    psum_ref : (8, TN) f32       per-sample per-channel sum        (row-replicated)
    pm2_ref  : (8, TN) f32       per-sample per-channel centered sum of squares
    """
    M, TN = y_ref.shape
    acc = jnp.zeros((M, TN), jnp.float32)
    for kh, kw, off in taps:                       # static unroll, <= 9 taps
        lhs = x_ref[pl.ds(off, M), :]              # contiguous tap window, no reshape
        acc += jnp.dot(lhs, w_ref[kh, kw], preferred_element_type=jnp.float32)
    y_ref[...] = acc.astype(y_ref.dtype)

    mask = mask_ref[...]                           # (M, 1)
    s = jnp.sum(acc * mask, axis=0, keepdims=True)            # (1, TN)
    mean = s * (1.0 / count)
    d = (acc - mean) * mask                        # centered -> good variance numerics
    m2 = jnp.sum(d * d, axis=0, keepdims=True)
    psum_ref[...] = jnp.broadcast_to(s, psum_ref.shape)
    pm2_ref[...] = jnp.broadcast_to(m2, pm2_ref.shape)


# --------------------------------------------------------------------------- #
# Pass 2: y * scale + shift, ReLU.  Pure streaming FMA over lane-dense blocks.
# --------------------------------------------------------------------------- #
def _bn_relu_kernel(y_ref, scale_ref, shift_ref, o_ref):
    y = y_ref[...].astype(jnp.float32)
    o_ref[...] = jnp.maximum(y * scale_ref[...] + shift_ref[...], 0.0).astype(o_ref.dtype)


def dilated_conv_bn_relu(x_nchw, w_oihw, gamma, beta, rate, compute_dtype=jnp.bfloat16):
    """Forward pass of Dilated_Conv.

    x_nchw : (N, Cin, H, W) float32
    w_oihw : (Cout, Cin, KH, KW) float32   (PyTorch Conv2d weight layout)
    gamma, beta : (Cout,) float32
    Returns (N, Cout, H, W) float32.
    """
    Cout, Cin, KH, KW = w_oihw.shape
    N, Cin_x, H, W = x_nchw.shape
    assert Cin_x == Cin
    pad = 0 if rate == 1 else rate                # module: k=1/p=0 if rate==1 else k=3/p=rate

    Hp, Wp = H + 2 * pad, W + 2 * pad
    M_out = _round_up(H * Wp, 8)                  # rows per sample (incl. masked edge cols)
    max_off = (KH - 1) * rate * Wp + (KW - 1) * rate
    L = max(Hp * Wp, max_off + M_out)             # flattened padded spatial length

    # NCHW -> NHWC, zero-pad spatially, flatten (H, W): each tap becomes a contiguous
    # row window of xf (offset kh*rate*Wp + kw*rate), so no im2col is needed.
    x_nhwc = jnp.transpose(x_nchw, (0, 2, 3, 1))
    x_pad = jnp.pad(x_nhwc, ((0, 0), (pad, pad), (pad, pad), (0, 0)))
    xf = x_pad.reshape(N, Hp * Wp, Cin)
    xf = jnp.pad(xf, ((0, 0), (0, L - Hp * Wp), (0, 0))).astype(compute_dtype)

    # Weight: OIHW -> (KH, KW, Cin, C_p); only the output-channel (lane) dim is padded.
    C_p = _round_up(Cout, 128)
    w_khwc = jnp.transpose(w_oihw, (2, 3, 1, 0))
    w_p = jnp.pad(w_khwc, ((0, 0), (0, 0), (0, 0), (0, C_p - Cout))).astype(compute_dtype)

    # Row-validity mask: flattened row i = h*Wp + w is a real output pixel iff w < W, i < H*Wp.
    rows = jnp.arange(M_out)
    mask = ((rows < H * Wp) & (rows % Wp < W)).astype(jnp.float32).reshape(M_out, 1)

    TN = _col_tile(C_p, 256)
    nc = C_p // TN
    count = float(H * W)
    taps = tuple((kh, kw, kh * rate * Wp + kw * rate)
                 for kh in range(KH) for kw in range(KW))

    # ---------------- Pass 1: conv + per-sample BN partial statistics ----------------
    y_conv, psum, pm2 = pl.pallas_call(
        functools.partial(_conv_stats_kernel, taps=taps, count=count),
        out_shape=(
            jax.ShapeDtypeStruct((N * M_out, C_p), compute_dtype),
            jax.ShapeDtypeStruct((N, 8, C_p), jnp.float32),
            jax.ShapeDtypeStruct((N, 8, C_p), jnp.float32),
        ),
        grid_spec=pltpu.PrefetchScalarGridSpec(
            num_scalar_prefetch=0,
            grid=(N, nc),
            in_specs=[
                pl.BlockSpec((None, L, Cin), lambda n, j: (n, 0, 0)),
                pl.BlockSpec((KH, KW, Cin, TN), lambda n, j: (0, 0, 0, j)),
                pl.BlockSpec((M_out, 1), lambda n, j: (0, 0)),
            ],
            out_specs=(
                pl.BlockSpec((M_out, TN), lambda n, j: (n, j)),
                pl.BlockSpec((None, 8, TN), lambda n, j: (n, 0, j)),
                pl.BlockSpec((None, 8, TN), lambda n, j: (n, 0, j)),
            ),
        ),
        compiler_params=pltpu.CompilerParams(
            dimension_semantics=("parallel", "parallel"),
            vmem_limit_bytes=VMEM_LIMIT,
        ),
    )(xf, w_p, mask)

    # ---- Combine per-sample partials (tiny N x C_p arrays; ANOVA/Chan combine) ----
    psum = psum[:, 0, :]
    pm2 = pm2[:, 0, :]
    means = psum / count                                   # (N, C_p)
    mean = jnp.mean(means, axis=0)                         # (C_p,)
    m2 = jnp.sum(pm2, axis=0) + count * jnp.sum((means - mean) ** 2, axis=0)
    var = m2 / (N * count)                                 # biased variance (BN training)
    gamma_p = jnp.pad(gamma, (0, C_p - Cout))
    beta_p = jnp.pad(beta, (0, C_p - Cout))
    scale_v = gamma_p * jax.lax.rsqrt(var + BN_EPS)
    shift_v = beta_p - mean * scale_v
    scale = scale_v.reshape(1, C_p).astype(jnp.float32)
    shift = shift_v.reshape(1, C_p).astype(jnp.float32)

    # ---------------- Pass 2: normalize + affine + ReLU ----------------
    CB = _col_tile(C_p, 512)
    nc2 = C_p // CB
    out_p = pl.pallas_call(
        _bn_relu_kernel,
        out_shape=jax.ShapeDtypeStruct((N * M_out, C_p), jnp.float32),
        grid_spec=pltpu.PrefetchScalarGridSpec(
            num_scalar_prefetch=0,
            grid=(N, nc2),
            in_specs=[
                pl.BlockSpec((M_out, CB), lambda n, j: (n, j)),
                pl.BlockSpec((1, CB), lambda n, j: (0, j)),
                pl.BlockSpec((1, CB), lambda n, j: (0, j)),
            ],
            out_specs=pl.BlockSpec((M_out, CB), lambda n, j: (n, j)),
        ),
        compiler_params=pltpu.CompilerParams(
            dimension_semantics=("parallel", "parallel"),
            vmem_limit_bytes=VMEM_LIMIT,
        ),
    )(y_conv, scale, shift)

    out = out_p.reshape(N, M_out, C_p)[:, :H * Wp, :]
    out = out.reshape(N, H, Wp, C_p)[:, :, :W, :Cout]
    # TODO(synk): returning NHWC (skipping this transpose) would save one full activation
    # read+write if the downstream consumer accepts channels-last.
    return jnp.transpose(out, (0, 3, 1, 2))


def _reference(x_nchw, w_oihw, gamma, beta, rate):
    """Pure-JAX reference (mirrors PyTorch conv2d + train-mode BN + ReLU)."""
    pad = 0 if rate == 1 else rate
    y = jax.lax.conv_general_dilated(
        x_nchw, w_oihw,
        window_strides=(1, 1),
        padding=[(pad, pad), (pad, pad)],
        rhs_dilation=(rate, rate),
        dimension_numbers=("NCHW", "OIHW", "NCHW"),
    )
    mean = y.mean(axis=(0, 2, 3), keepdims=True)
    var = ((y - mean) ** 2).mean(axis=(0, 2, 3), keepdims=True)
    y = (y - mean) / jnp.sqrt(var + BN_EPS)
    y = y * gamma.reshape(1, -1, 1, 1) + beta.reshape(1, -1, 1, 1)
    return jnp.maximum(y, 0.0)


if __name__ == "__main__":
    key = jax.random.PRNGKey(0)
    kx, kw1, kw2, kg, kb = jax.random.split(key, 5)

    N, Cin, H, W = 2, 4, 16, 16
    Cout = 8
    x = jax.random.normal(kx, (N, Cin, H, W), dtype=jnp.float32)
    gamma = 1.0 + 0.1 * jax.random.normal(kg, (Cout,), dtype=jnp.float32)
    beta = 0.1 * jax.random.normal(kb, (Cout,), dtype=jnp.float32)

    # Case 1: Dilated_Conv(4, 8, rate=2) -> kernel 3x3, padding 2, dilation 2 (bf16 MXU).
    rate = 2
    w3 = jax.random.normal(kw1, (Cout, Cin, 3, 3), dtype=jnp.float32) * 0.1
    out = jax.block_until_ready(dilated_conv_bn_relu(x, w3, gamma, beta, rate))
    ref = _reference(x, w3, gamma, beta, rate)
    assert out.shape == (N, Cout, H, W), out.shape
    assert jnp.allclose(out, ref, atol=5e-2, rtol=5e-2), float(jnp.max(jnp.abs(out - ref)))

    # Same case with fp32 MXU operands: must match the fp32 reference tightly.
    out_f32 = jax.block_until_ready(
        dilated_conv_bn_relu(x, w3, gamma, beta, rate, compute_dtype=jnp.float32))
    assert jnp.allclose(out_f32, ref, atol=1e-4, rtol=1e-4), \
        float(jnp.max(jnp.abs(out_f32 - ref)))

    # Case 2: Dilated_Conv(4, 8, rate=1) -> kernel 1x1, padding 0 (bf16 MXU).
    rate = 1
    w1 = jax.random.normal(kw2, (Cout, Cin, 1, 1), dtype=jnp.float32) * 0.1
    out1 = jax.block_until_ready(dilated_conv_bn_relu(x, w1, gamma, beta, rate))
    ref1 = _reference(x, w1, gamma, beta, rate)
    assert out1.shape == (N, Cout, H, W), out1.shape
    assert jnp.allclose(out1, ref1, atol=5e-2, rtol=5e-2), float(jnp.max(jnp.abs(out1 - ref1)))

    print("KERNEL_OK")
</pallas_src>

<mosaic_0001>
module attributes {stable_mosaic.version = 11 : i64} {
  func.func @_conv_stats_kernel(%arg0: i32, %arg1: i32, %arg2: memref<1x404x4xbf16, #tpu.memory_space<vmem>>, %arg3: memref<3x3x4x128xbf16, #tpu.memory_space<vmem>>, %arg4: memref<320x1xf32, #tpu.memory_space<vmem>>, %arg5: memref<320x128xbf16, #tpu.memory_space<vmem>>, %arg6: memref<1x8x128xf32, #tpu.memory_space<vmem>>, %arg7: memref<1x8x128xf32, #tpu.memory_space<vmem>>) attributes {dimension_semantics = [#tpu.dimension_semantics<parallel>, #tpu.dimension_semantics<parallel>], iteration_bounds = array<i64: 2, 1>, scalar_prefetch = 0 : i64, scratch_operands = 0 : i64, tpu.core_type = #tpu.core_type<tc>, window_params = [{transform_indices = @transform_0, window_bounds = array<i64: 1, 404, 4>}, {transform_indices = @transform_1, window_bounds = array<i64: 3, 3, 4, 128>}, {pipeline_mode = #tpu.pipeline_mode<synchronous>, transform_indices = @transform_2, window_bounds = array<i64: 320, 1>}, {transform_indices = @transform_3, window_bounds = array<i64: 320, 128>}, {transform_indices = @transform_4, window_bounds = array<i64: 1, 8, 128>}, {transform_indices = @transform_5, window_bounds = array<i64: 1, 8, 128>}]} {
    %cst = arith.constant 0.000000e+00 : f32
    %0 = vector.broadcast %cst : f32 to vector<320x128xf32>
    %c0 = arith.constant 0 : index
    %c0_0 = arith.constant 0 : index
    %c0_1 = arith.constant 0 : index
    %1 = vector.load %arg2[%c0, %c0_0, %c0_1] : memref<1x404x4xbf16, #tpu.memory_space<vmem>>, vector<1x320x4xbf16>
    %2 = vector.shape_cast %1 : vector<1x320x4xbf16> to vector<320x4xbf16>
    %c0_2 = arith.constant 0 : index
    %c0_3 = arith.constant 0 : index
    %c0_4 = arith.constant 0 : index
    %c0_5 = arith.constant 0 : index
    %3 = vector.load %arg3[%c0_2, %c0_3, %c0_4, %c0_5] : memref<3x3x4x128xbf16, #tpu.memory_space<vmem>>, vector<1x1x4x128xbf16>
    %4 = vector.shape_cast %3 : vector<1x1x4x128xbf16> to vector<4x128xbf16>
    %cst_6 = arith.constant dense<0.000000e+00> : vector<320x128xf32>
    %5 = tpu.matmul %2, %4, %cst_6 {dimension_numbers = #tpu.dot_dimension_numbers<[1], [0], [0], [1], [0, 0, 1, 1], [], []>} : vector<320x4xbf16>, vector<4x128xbf16>, vector<320x128xf32> -> vector<320x128xf32>
    %6 = arith.addf %0, %5 : vector<320x128xf32>
    %c0_7 = arith.constant 0 : index
    %c2 = arith.constant 2 : index
    %c0_8 = arith.constant 0 : index
    %7 = vector.load %arg2[%c0_7, %c2, %c0_8] : memref<1x404x4xbf16, #tpu.memory_space<vmem>>, vector<1x320x4xbf16>
    %8 = vector.shape_cast %7 : vector<1x320x4xbf16> to vector<320x4xbf16>
    %c0_9 = arith.constant 0 : index
    %c1 = arith.constant 1 : index
    %c0_10 = arith.constant 0 : index
    %c0_11 = arith.constant 0 : index
    %9 = vector.load %arg3[%c0_9, %c1, %c0_10, %c0_11] : memref<3x3x4x128xbf16, #tpu.memory_space<vmem>>, vector<1x1x4x128xbf16>
    %10 = vector.shape_cast %9 : vector<1x1x4x128xbf16> to vector<4x128xbf16>
    %cst_12 = arith.constant dense<0.000000e+00> : vector<320x128xf32>
    %11 = tpu.matmul %8, %10, %cst_12 {dimension_numbers = #tpu.dot_dimension_numbers<[1], [0], [0], [1], [0, 0, 1, 1], [], []>} : vector<320x4xbf16>, vector<4x128xbf16>, vector<320x128xf32> -> vector<320x128xf32>
    %12 = arith.addf %6, %11 : vector<320x128xf32>
    %c0_13 = arith.constant 0 : index
    %c4 = arith.constant 4 : index
    %c0_14 = arith.constant 0 : index
    %13 = vector.load %arg2[%c0_13, %c4, %c0_14] : memref<1x404x4xbf16, #tpu.memory_space<vmem>>, vector<1x320x4xbf16>
    %14 = vector.shape_cast %13 : vector<1x320x4xbf16> to vector<320x4xbf16>
    %c0_15 = arith.constant 0 : index
    %c2_16 = arith.constant 2 : index
    %c0_17 = arith.constant 0 : index
    %c0_18 = arith.constant 0 : index
    %15 = vector.load %arg3[%c0_15, %c2_16, %c0_17, %c0_18] : memref<3x3x4x128xbf16, #tpu.memory_space<vmem>>, vector<1x1x4x128xbf16>
    %16 = vector.shape_cast %15 : vector<1x1x4x128xbf16> to vector<4x128xbf16>
    %cst_19 = arith.constant dense<0.000000e+00> : vector<320x128xf32>
    %17 = tpu.matmul %14, %16, %cst_19 {dimension_numbers = #tpu.dot_dimension_numbers<[1], [0], [0], [1], [0, 0, 1, 1], [], []>} : vector<320x4xbf16>, vector<4x128xbf16>, vector<320x128xf32> -> vector<320x128xf32>
    %18 = arith.addf %12, %17 : vector<320x128xf32>
    %c0_20 = arith.constant 0 : index
    %c40 = arith.constant 40 : index
    %c0_21 = arith.constant 0 : index
    %19 = vector.load %arg2[%c0_20, %c40, %c0_21] : memref<1x404x4xbf16, #tpu.memory_space<vmem>>, vector<1x320x4xbf16>
    %20 = vector.shape_cast %19 : vector<1x320x4xbf16> to vector<320x4xbf16>
    %c1_22 = arith.constant 1 : index
    %c0_23 = arith.constant 0 : index
    %c0_24 = arith.constant 0 : index
    %c0_25 = arith.constant 0 : index
    %21 = vector.load %arg3[%c1_22, %c0_23, %c0_24, %c0_25] : memref<3x3x4x128xbf16, #tpu.memory_space<vmem>>, vector<1x1x4x128xbf16>
    %22 = vector.shape_cast %21 : vector<1x1x4x128xbf16> to vector<4x128xbf16>
    %cst_26 = arith.constant dense<0.000000e+00> : vector<320x128xf32>
    %23 = tpu.matmul %20, %22, %cst_26 {dimension_numbers = #tpu.dot_dimension_numbers<[1], [0], [0], [1], [0, 0, 1, 1], [], []>} : vector<320x4xbf16>, vector<4x128xbf16>, vector<320x128xf32> -> vector<320x128xf32>
    %24 = arith.addf %18, %23 : vector<320x128xf32>
    %c0_27 = arith.constant 0 : index
    %c42 = arith.constant 42 : index
    %c0_28 = arith.constant 0 : index
    %25 = vector.load %arg2[%c0_27, %c42, %c0_28] : memref<1x404x4xbf16, #tpu.memory_space<vmem>>, vector<1x320x4xbf16>
    %26 = vector.shape_cast %25 : vector<1x320x4xbf16> to vector<320x4xbf16>
    %c1_29 = arith.constant 1 : index
    %c1_30 = arith.constant 1 : index
    %c0_31 = arith.constant 0 : index
    %c0_32 = arith.constant 0 : index
    %27 = vector.load %arg3[%c1_29, %c1_30, %c0_31, %c0_32] : memref<3x3x4x128xbf16, #tpu.memory_space<vmem>>, vector<1x1x4x128xbf16>
    %28 = vector.shape_cast %27 : vector<1x1x4x128xbf16> to vector<4x128xbf16>
    %cst_33 = arith.constant dense<0.000000e+00> : vector<320x128xf32>
    %29 = tpu.matmul %26, %28, %cst_33 {dimension_numbers = #tpu.dot_dimension_numbers<[1], [0], [0], [1], [0, 0, 1, 1], [], []>} : vector<320x4xbf16>, vector<4x128xbf16>, vector<320x128xf32> -> vector<320x128xf32>
    %30 = arith.addf %24, %29 : vector<320x128xf32>
    %c0_34 = arith.constant 0 : index
    %c44 = arith.constant 44 : index
    %c0_35 = arith.constant 0 : index
    %31 = vector.load %arg2[%c0_34, %c44, %c0_35] : memref<1x404x4xbf16, #tpu.memory_space<vmem>>, vector<1x320x4xbf16>
    %32 = vector.shape_cast %31 : vector<1x320x4xbf16> to vector<320x4xbf16>
    %c1_36 = arith.constant 1 : index
    %c2_37 = arith.constant 2 : index
    %c0_38 = arith.constant 0 : index
    %c0_39 = arith.constant 0 : index
    %33 = vector.load %arg3[%c1_36, %c2_37, %c0_38, %c0_39] : memref<3x3x4x128xbf16, #tpu.memory_space<vmem>>, vector<1x1x4x128xbf16>
    %34 = vector.shape_cast %33 : vector<1x1x4x128xbf16> to vector<4x128xbf16>
    %cst_40 = arith.constant dense<0.000000e+00> : vector<320x128xf32>
    %35 = tpu.matmul %32, %34, %cst_40 {dimension_numbers = #tpu.dot_dimension_numbers<[1], [0], [0], [1], [0, 0, 1, 1], [], []>} : vector<320x4xbf16>, vector<4x128xbf16>, vector<320x128xf32> -> vector<320x128xf32>
    %36 = arith.addf %30, %35 : vector<320x128xf32>
    %c0_41 = arith.constant 0 : index
    %c80 = arith.constant 80 : index
    %c0_42 = arith.constant 0 : index
    %37 = vector.load %arg2[%c0_41, %c80, %c0_42] : memref<1x404x4xbf16, #tpu.memory_space<vmem>>, vector<1x320x4xbf16>
    %38 = vector.shape_cast %37 : vector<1x320x4xbf16> to vector<320x4xbf16>
    %c2_43 = arith.constant 2 : index
    %c0_44 = arith.constant 0 : index
    %c0_45 = arith.constant 0 : index
    %c0_46 = arith.constant 0 : index
    %39 = vector.load %arg3[%c2_43, %c0_44, %c0_45, %c0_46] : memref<3x3x4x128xbf16, #tpu.memory_space<vmem>>, vector<1x1x4x128xbf16>
    %40 = vector.shape_cast %39 : vector<1x1x4x128xbf16> to vector<4x128xbf16>
    %cst_47 = arith.constant dense<0.000000e+00> : vector<320x128xf32>
    %41 = tpu.matmul %38, %40, %cst_47 {dimension_numbers = #tpu.dot_dimension_numbers<[1], [0], [0], [1], [0, 0, 1, 1], [], []>} : vector<320x4xbf16>, vector<4x128xbf16>, vector<320x128xf32> -> vector<320x128xf32>
    %42 = arith.addf %36, %41 : vector<320x128xf32>
    %c0_48 = arith.constant 0 : index
    %c82 = arith.constant 82 : index
    %c0_49 = arith.constant 0 : index
    %43 = vector.load %arg2[%c0_48, %c82, %c0_49] : memref<1x404x4xbf16, #tpu.memory_space<vmem>>, vector<1x320x4xbf16>
    %44 = vector.shape_cast %43 : vector<1x320x4xbf16> to vector<320x4xbf16>
    %c2_50 = arith.constant 2 : index
    %c1_51 = arith.constant 1 : index
    %c0_52 = arith.constant 0 : index
    %c0_53 = arith.constant 0 : index
    %45 = vector.load %arg3[%c2_50, %c1_51, %c0_52, %c0_53] : memref<3x3x4x128xbf16, #tpu.memory_space<vmem>>, vector<1x1x4x128xbf16>
    %46 = vector.shape_cast %45 : vector<1x1x4x128xbf16> to vector<4x128xbf16>
    %cst_54 = arith.constant dense<0.000000e+00> : vector<320x128xf32>
    %47 = tpu.matmul %44, %46, %cst_54 {dimension_numbers = #tpu.dot_dimension_numbers<[1], [0], [0], [1], [0, 0, 1, 1], [], []>} : vector<320x4xbf16>, vector<4x128xbf16>, vector<320x128xf32> -> vector<320x128xf32>
    %48 = arith.addf %42, %47 : vector<320x128xf32>
    %c0_55 = arith.constant 0 : index
    %c84 = arith.constant 84 : index
    %c0_56 = arith.constant 0 : index
    %49 = vector.load %arg2[%c0_55, %c84, %c0_56] : memref<1x404x4xbf16, #tpu.memory_space<vmem>>, vector<1x320x4xbf16>
    %50 = vector.shape_cast %49 : vector<1x320x4xbf16> to vector<320x4xbf16>
    %c2_57 = arith.constant 2 : index
    %c2_58 = arith.constant 2 : index
    %c0_59 = arith.constant 0 : index
    %c0_60 = arith.constant 0 : index
    %51 = vector.load %arg3[%c2_57, %c2_58, %c0_59, %c0_60] : memref<3x3x4x128xbf16, #tpu.memory_space<vmem>>, vector<1x1x4x128xbf16>
    %52 = vector.shape_cast %51 : vector<1x1x4x128xbf16> to vector<4x128xbf16>
    %cst_61 = arith.constant dense<0.000000e+00> : vector<320x128xf32>
    %53 = tpu.matmul %50, %52, %cst_61 {dimension_numbers = #tpu.dot_dimension_numbers<[1], [0], [0], [1], [0, 0, 1, 1], [], []>} : vector<320x4xbf16>, vector<4x128xbf16>, vector<320x128xf32> -> vector<320x128xf32>
    %54 = arith.addf %48, %53 : vector<320x128xf32>
    %55 = arith.truncf %54 : vector<320x128xf32> to vector<320x128xbf16>
    %c0_62 = arith.constant 0 : index
    %c0_63 = arith.constant 0 : index
    %56 = vector.load %arg5[%c0_62, %c0_63] : memref<320x128xbf16, #tpu.memory_space<vmem>>, vector<320x128xbf16>
    tpu.vector_store %arg5[%c0_62, %c0_63], %55 {strides = array<i32>} : memref<320x128xbf16, #tpu.memory_space<vmem>>, vector<320x128xbf16>,
    %c0_64 = arith.constant 0 : index
    %c0_65 = arith.constant 0 : index
    %57 = vector.load %arg4[%c0_64, %c0_65] : memref<320x1xf32, #tpu.memory_space<vmem>>, vector<320x1xf32>
    %58 = vector.broadcast %57 : vector<320x1xf32> to vector<320x128xf32>
    %59 = arith.mulf %54, %58 : vector<320x128xf32>
    %cst_66 = arith.constant dense<0.000000e+00> : vector<128xf32>
    %60 = vector.multi_reduction <add>, %59, %cst_66 [0] : vector<320x128xf32> to vector<128xf32>
    %61 = vector.shape_cast %60 : vector<128xf32> to vector<1x128xf32>
    %cst_67 = arith.constant 3.906250e-03 : f32
    %62 = vector.broadcast %cst_67 : f32 to vector<1x128xf32>
    %63 = arith.mulf %61, %62 : vector<1x128xf32>
    %64 = vector.broadcast %63 : vector<1x128xf32> to vector<320x128xf32>
    %65 = arith.subf %54, %64 : vector<320x128xf32>
    %66 = vector.broadcast %57 : vector<320x1xf32> to vector<320x128xf32>
    %67 = arith.mulf %65, %66 : vector<320x128xf32>
    %68 = arith.mulf %67, %67 : vector<320x128xf32>
    %cst_68 = arith.constant dense<0.000000e+00> : vector<128xf32>
    %69 = vector.multi_reduction <add>, %68, %cst_68 [0] : vector<320x128xf32> to vector<128xf32>
    %70 = vector.shape_cast %69 : vector<128xf32> to vector<1x128xf32>
    %71 = vector.shape_cast %61 : vector<1x128xf32> to vector<1x128xf32>
    %72 = vector.broadcast %71 : vector<1x128xf32> to vector<8x128xf32>
    %c0_69 = arith.constant 0 : index
    %c0_70 = arith.constant 0 : index
    %c0_71 = arith.constant 0 : index
    %73 = vector.load %arg6[%c0_69, %c0_70, %c0_71] : memref<1x8x128xf32, #tpu.memory_space<vmem>>, vector<1x8x128xf32>
    %74 = vector.shape_cast %73 : vector<1x8x128xf32> to vector<8x128xf32>
    %75 = vector.shape_cast %72 : vector<8x128xf32> to vector<1x8x128xf32>
    tpu.vector_store %arg6[%c0_69, %c0_70, %c0_71], %75 {strides = array<i32>} : memref<1x8x128xf32, #tpu.memory_space<vmem>>, vector<1x8x128xf32>,
    %76 = vector.shape_cast %70 : vector<1x128xf32> to vector<1x128xf32>
    %77 = vector.broadcast %76 : vector<1x128xf32> to vector<8x128xf32>
    %c0_72 = arith.constant 0 : index
    %c0_73 = arith.constant 0 : index
    %c0_74 = arith.constant 0 : index
    %78 = vector.load %arg7[%c0_72, %c0_73, %c0_74] : memref<1x8x128xf32, #tpu.memory_space<vmem>>, vector<1x8x128xf32>
    %79 = vector.shape_cast %78 : vector<1x8x128xf32> to vector<8x128xf32>
    %80 = vector.shape_cast %77 : vector<8x128xf32> to vector<1x8x128xf32>
    tpu.vector_store %arg7[%c0_72, %c0_73, %c0_74], %80 {strides = array<i32>} : memref<1x8x128xf32, #tpu.memory_space<vmem>>, vector<1x8x128xf32>,
    return
  }
  func.func @transform_0(%arg0: i32, %arg1: i32) -> (i32, i32, i32) {
    %c0_i32 = arith.constant 0 : i32
    %c0_i32_0 = arith.constant 0 : i32
    %c0_i32_1 = arith.constant 0 : i32
    return %arg0, %c0_i32, %c0_i32_0 : i32, i32, i32
  }
  func.func @transform_1(%arg0: i32, %arg1: i32) -> (i32, i32, i32, i32) {
    %c0_i32 = arith.constant 0 : i32
    %c0_i32_0 = arith.constant 0 : i32
    %c0_i32_1 = arith.constant 0 : i32
    %c0_i32_2 = arith.constant 0 : i32
    return %c0_i32, %c0_i32_0, %c0_i32_1, %arg1 : i32, i32, i32, i32
  }
  func.func @transform_2(%arg0: i32, %arg1: i32) -> (i32, i32) {
    %c0_i32 = arith.constant 0 : i32
    %c0_i32_0 = arith.constant 0 : i32
    %c0_i32_1 = arith.constant 0 : i32
    return %c0_i32, %c0_i32_0 : i32, i32
  }
  func.func @transform_3(%arg0: i32, %arg1: i32) -> (i32, i32) {
    %c0_i32 = arith.constant 0 : i32
    return %arg0, %arg1 : i32, i32
  }
  func.func @transform_4(%arg0: i32, %arg1: i32) -> (i32, i32, i32) {
    %c0_i32 = arith.constant 0 : i32
    %c0_i32_0 = arith.constant 0 : i32
    return %arg0, %c0_i32, %arg1 : i32, i32, i32
  }
  func.func @transform_5(%arg0: i32, %arg1: i32) -> (i32, i32, i32) {
    %c0_i32 = arith.constant 0 : i32
    %c0_i32_0 = arith.constant 0 : i32
    return %arg0, %c0_i32, %arg1 : i32, i32, i32
  }
}

</mosaic_0001>

<llo_original>
// kernel: tpu_custom_call.1
$region0: #{tpu_custom_call.1}
  #allocation0 [shape = 'u32[]', space=smem, size = 0x4, offset = 0x4, fixed_abs, tag = 'smem constant byte address 0x4 - core index']
  #allocation1 [shape = 'u32[72,128]{1,0:T(1,128)}', space=vmem, size = 0x9000, scoped, tag = 'internal scratch']
  %s0 = inlined_call_operand.vmem [shape: bf16[2,404,4], index: 0, kind: input, shape index: {}]
  %s1 = inlined_call_operand.vmem [shape: bf16[3,3,4,128], index: 1, kind: input, shape index: {}]
  %s2 = inlined_call_operand.vmem [shape: f32[320,1], index: 2, kind: input, shape index: {}]
  %s3 = inlined_call_operand.hbm [shape: bf16[640,128], index: 3, kind: output, shape index: {0}]
  %s4 = inlined_call_operand.hbm [shape: f32[2,8,128], index: 4, kind: output, shape index: {1}]
  %s5 = inlined_call_operand.hbm [shape: f32[2,8,128], index: 5, kind: output, shape index: {2}]
  %6 = xla_tuple %s3, %s4, %s5
  %s7 = sld [smem:[#allocation0]]
  $region61: #{tpu_custom_call.1} parent=0
    _
  %s9 = ssub.s32 1, %s7
  %s10 = scalar_select 0, %s9, %s7
  $region1: #{tpu_custom_call.1} parent=0
    #allocation2 [shape = 'u8[163840]{0}', space=vmem, size = 0x28000, scoped, tag = 'output window, operand 0']
    #allocation3 [shape = 's32[2]{0}', space=sflag, size = 0x8, scoped, tag = 'scoped memory for tpu_custom_call.1']
    #allocation4 [shape = 'u8[8192]{0}', space=vmem, size = 0x2000, scoped, tag = 'output window, operand 1']
    #allocation5 [shape = 's32[2]{0}', space=sflag, size = 0x8, scoped, tag = 'scoped memory for tpu_custom_call.1']
    #allocation6 [shape = 'u8[8192]{0}', space=vmem, size = 0x2000, scoped, tag = 'output window, operand 2']
    %11 = vsyncpa [#allocation3], 0
    %s12 = scalar_lea.sflag [#allocation3], 1
    %13 = vsyncpa %s12, 0
    %14 = vsyncpa [#allocation5], 0
    %s15 = scalar_lea.sflag [#allocation5], 1
    %16 = vsyncpa %s15, 0
    loop: start=0, step=1, limit=4
    $region2: #{tpu_custom_call.1} parent=1 // loop_pre_header
      _
    $region3: #{tpu_custom_call.1} parent=1 // loop_header
      %s18 = sphi 0, %s22
      %p19 = scmp.ge.s32.totalorder %s18, 4
      %s25 = sphi 0, %s37
      %s26 = sphi 0, %s33
      %s27 = sphi 0, %s25
      %s28 = sphi 0, %s26
      %s29 = sphi 0, %s27
      %s30 = sphi 0, %s28
      %s40 = sphi 0, %s42
      %s43 = sphi 0, %s40
      %s44 = sphi 0, %s43
      %s60 = sphi 0, %s44
      %s66 = sphi 0, %s68
      %s69 = sphi 0, %s66
      %s70 = sphi 0, %s69
      %s86 = sphi 0, %s70
      %s90 = sphi 0, %s90
      %s92 = sphi 0, %s90
      %s93 = sphi 0, %s92
      %s107 = sphi 0, %s93
      %s115 = sphi 0, %s117
      %s118 = sphi 0, %s115
      %s119 = sphi 0, %s118
      %s135 = sphi 0, %s119
      %s143 = sphi 0, %s145
      %s146 = sphi 0, %s143
      %s147 = sphi 0, %s146
      %s163 = sphi 0, %s147
      %s171 = sphi 0, %s173
      %s174 = sphi 0, %s171
      %s175 = sphi 0, %s174
      %s191 = sphi 0, %s175
    $region4: #{tpu_custom_call.1} parent=1 // loop_header_branch
      %21 = sbr.rel (%p19) target = $region8
    $region5: #{tpu_custom_call.1} parent=1 // loop_body
      %s23 = ssub.s32 %s18, 1
      %s24 = ssub.s32 %s18, 2
      %s31 = sadd.s32 1, %s26
      %p32 = scmp.ge.s32.totalorder %s31, 1
      %s33 = scalar_select %p32, 0, %s31
      %s34 = sadd.s32 1, %s25
      %s35 = scalar_select %p32, %s34, %s25
      %p36 = scmp.ge.s32.totalorder %s35, 2
      %s37 = scalar_select %p36, 0, %s35
      %s38 = ssub.s32 %s25, %s37
      %p39 = scmp.eq.s32.totalorder %s38, 0
      %s41 = sadd.s32 %s40, 1
      %s42 = scalar_select %p39, %s40, %s41
      %p45 = pneg %p39
      %p46 = scmp.eq.s32.totalorder %s18, 1
      %p47 = por %p45, %p46
      %p48 = scmp.ne.s32.totalorder %s40, %s43
      %p49 = scmp.eq.s32.totalorder %s18, 0
      %p50 = por %p48, %p49
      %p51 = scmp.ne.s32.totalorder %s40, %s43
      %p52 = scmp.eq.s32.totalorder %s23, 1
      %p53 = por %p51, %p52
      %p54 = scmp.ne.s32.totalorder %s43, %s44
      %p55 = scmp.eq.s32.totalorder %s23, 0
      %p56 = por %p54, %p55
      %p57 = scmp.ne.s32.totalorder %s43, %s44
      %p58 = scmp.eq.s32.totalorder %s24, 1
      %p59 = por %p57, %p58
      %p61 = scmp.ne.s32.totalorder %s44, %s60
      %p62 = scmp.eq.s32.totalorder %s24, 0
      %p63 = por %p61, %p62
      %s64 = ssub.s32 %s26, %s33
      %p65 = scmp.eq.s32.totalorder %s64, 0
      %s67 = sadd.s32 %s66, 1
      %s68 = scalar_select %p65, %s66, %s67
      %p71 = pneg %p65
      %p72 = scmp.eq.s32.totalorder %s18, 1
      %p73 = por %p71, %p72
      %p74 = scmp.ne.s32.totalorder %s66, %s69
      %p75 = scmp.eq.s32.totalorder %s18, 0
      %p76 = por %p74, %p75
      %p77 = scmp.ne.s32.totalorder %s66, %s69
      %p78 = scmp.eq.s32.totalorder %s23, 1
      %p79 = por %p77, %p78
      %p80 = scmp.ne.s32.totalorder %s69, %s70
      %p81 = scmp.eq.s32.totalorder %s23, 0
      %p82 = por %p80, %p81
      %p83 = scmp.ne.s32.totalorder %s69, %s70
      %p84 = scmp.eq.s32.totalorder %s24, 1
      %p85 = por %p83, %p84
      %p87 = scmp.ne.s32.totalorder %s70, %s86
      %p88 = scmp.eq.s32.totalorder %s24, 0
      %p89 = por %p87, %p88
      %s91 = sadd.s32 %s90, 1
      %p94 = scmp.eq.s32.totalorder %s18, 1
      %p95 = scmp.ne.s32.totalorder %s90, %s92
      %p96 = scmp.eq.s32.totalorder %s18, 0
      %p97 = por %p95, %p96
      %p98 = scmp.ne.s32.totalorder %s90, %s92
      %p99 = scmp.eq.s32.totalorder %s23, 1
      %p100 = por %p98, %p99
      %p101 = scmp.ne.s32.totalorder %s92, %s93
      %p102 = scmp.eq.s32.totalorder %s23, 0
      %p103 = por %p101, %p102
      %p104 = scmp.ne.s32.totalorder %s92, %s93
      %p105 = scmp.eq.s32.totalorder %s24, 1
      %p106 = por %p104, %p105
      %p108 = scmp.ne.s32.totalorder %s93, %s107
      %p109 = scmp.eq.s32.totalorder %s24, 0
      %p110 = por %p108, %p109
      %s111 = ssub.s32 %s25, %s37
      %s112 = ssub.s32 %s26, %s33
      %s113 = sor.u32 %s111, %s112
      %p114 = scmp.eq.s32.totalorder %s113, 0
      %s116 = sadd.s32 %s115, 1
      %s117 = scalar_select %p114, %s115, %s116
      %p120 = pneg %p114
      %p121 = scmp.eq.s32.totalorder %s18, 1
      %p122 = por %p120, %p121
      %p123 = scmp.ne.s32.totalorder %s115, %s118
      %p124 = scmp.eq.s32.totalorder %s18, 0
      %p125 = por %p123, %p124
      %p126 = scmp.ne.s32.totalorder %s115, %s118
      %p127 = scmp.eq.s32.totalorder %s23, 1
      %p128 = por %p126, %p127
      %p129 = scmp.ne.s32.totalorder %s118, %s119
      %p130 = scmp.eq.s32.totalorder %s23, 0
      %p131 = por %p129, %p130
      %p132 = scmp.ne.s32.totalorder %s118, %s119
      %p133 = scmp.eq.s32.totalorder %s24, 1
      %p134 = por %p132, %p133
      %p136 = scmp.ne.s32.totalorder %s119, %s135
      %p137 = scmp.eq.s32.totalorder %s24, 0
      %p138 = por %p136, %p137
      %s139 = ssub.s32 %s25, %s37
      %s140 = ssub.s32 %s26, %s33
      %s141 = sor.u32 %s139, %s140
      %p142 = scmp.eq.s32.totalorder %s141, 0
      %s144 = sadd.s32 %s143, 1
      %s145 = scalar_select %p142, %s143, %s144
      %p148 = pneg %p142
      %p149 = scmp.eq.s32.totalorder %s18, 1
      %p150 = por %p148, %p149
      %p151 = scmp.ne.s32.totalorder %s143, %s146
      %p152 = scmp.eq.s32.totalorder %s18, 0
      %p153 = por %p151, %p152
      %p154 = scmp.ne.s32.totalorder %s143, %s146
      %p155 = scmp.eq.s32.totalorder %s23, 1
      %p156 = por %p154, %p155
      %p157 = scmp.ne.s32.totalorder %s146, %s147
      %p158 = scmp.eq.s32.totalorder %s23, 0
      %p159 = por %p157, %p158
      %p160 = scmp.ne.s32.totalorder %s146, %s147
      %p161 = scmp.eq.s32.totalorder %s24, 1
      %p162 = por %p160, %p161
      %p164 = scmp.ne.s32.totalorder %s147, %s163
      %p165 = scmp.eq.s32.totalorder %s24, 0
      %p166 = por %p164, %p165
      %s167 = ssub.s32 %s25, %s37
      %s168 = ssub.s32 %s26, %s33
      %s169 = sor.u32 %s167, %s168
      %p170 = scmp.eq.s32.totalorder %s169, 0
      %s172 = sadd.s32 %s171, 1
      %s173 = scalar_select %p170, %s171, %s172
      %p176 = pneg %p170
      %p177 = scmp.eq.s32.totalorder %s18, 1
      %p178 = por %p176, %p177
      %p179 = scmp.ne.s32.totalorder %s171, %s174
      %p180 = scmp.eq.s32.totalorder %s18, 0
      %p181 = por %p179, %p180
      %p182 = scmp.ne.s32.totalorder %s171, %s174
      %p183 = scmp.eq.s32.totalorder %s23, 1
      %p184 = por %p182, %p183
      %p185 = scmp.ne.s32.totalorder %s174, %s175
      %p186 = scmp.eq.s32.totalorder %s23, 0
      %p187 = por %p185, %p186
      %p188 = scmp.ne.s32.totalorder %s174, %s175
      %p189 = scmp.eq.s32.totalorder %s24, 1
      %p190 = por %p188, %p189
      %p192 = scmp.ne.s32.totalorder %s175, %s191
      %p193 = scmp.eq.s32.totalorder %s24, 0
      %p194 = por %p192, %p193
      %p195 = scmp.le.s32.totalorder 1, %s18
      %p196 = scmp.lt.s32.totalorder %s18, 3
      %p197 = pnand %p195, %p196
      %p198 = pneg %p197
      // Predicated region
      $region9: #{tpu_custom_call.1} parent=5 // pred_check
        _
      $region10: #{tpu_custom_call.1} parent=5 // pred_check_branch
        %200 = sbr.rel (%p197) target = $region12
      $region11: #{tpu_custom_call.1} parent=5 // pred_region
        %s201 = ssub.s32 %s18, 1
        // Predicated region
        $region13: #{tpu_custom_call.1} parent=11 // pred_check
          %p202 = pneg %p82
        $region14: #{tpu_custom_call.1} parent=11 // pred_check_branch
          %204 = sbr.rel (%p202) target = $region16
        $region15: #{tpu_custom_call.1} parent=11 // pred_region
          %p205 = scmp.lt.s32.totalorder %s28, 0
          %s206 = scalar_select %p205, %s28, 0
          %s207 = smul.addr %s206, 2
          %s208 = scalar_lea.vmem %s1, %s207
        $region16: #{tpu_custom_call.1} parent=11 // pred_fallthru
          _
        // Predicated region
        $region17: #{tpu_custom_call.1} parent=11 // pred_check
          %p209 = pneg %p103
        $region18: #{tpu_custom_call.1} parent=11 // pred_check_branch
          %211 = sbr.rel (%p209) target = $region20
        $region19: #{tpu_custom_call.1} parent=11 // pred_region
          _
        $region20: #{tpu_custom_call.1} parent=11 // pred_fallthru
          _
      $region12: #{tpu_custom_call.1} parent=5 // pred_fallthru
        _
      %p212 = scmp.lt.s32.totalorder %s18, 2
      // Predicated region
      $region21: #{tpu_custom_call.1} parent=5 // pred_check
        %p213 = pneg %p212
      $region22: #{tpu_custom_call.1} parent=5 // pred_check_branch
        %215 = sbr.rel (%p213) target = $region24
      $region23: #{tpu_custom_call.1} parent=5 // pred_region
        // Predicated region
        $region25: #{tpu_custom_call.1} parent=23 // pred_check
          %p216 = pneg %p50
        $region26: #{tpu_custom_call.1} parent=23 // pred_check_branch
          %218 = sbr.rel (%p216) target = $region28
        $region27: #{tpu_custom_call.1} parent=23 // pred_region
          %p219 = scmp.lt.s32.totalorder %s25, 1
          %s220 = scalar_select %p219, %s25, 1
          %s221 = smul.addr %s220, 51
          %s222 = smul.addr %s221, 4
          %s223 = scalar_lea.vmem %s0, %s222
        $region28: #{tpu_custom_call.1} parent=23 // pred_fallthru
          _
      $region24: #{tpu_custom_call.1} parent=5 // pred_fallthru
        _
      %p224 = scmp.le.s32.totalorder 1, %s18
      %p225 = scmp.lt.s32.totalorder %s18, 3
      %p226 = pnand %p224, %p225
      %p227 = pneg %p226
      // Predicated region
      $region29: #{tpu_custom_call.1} parent=5 // pred_check
        _
      $region30: #{tpu_custom_call.1} parent=5 // pred_check_branch
        %229 = sbr.rel (%p226) target = $region32
      $region31: #{tpu_custom_call.1} parent=5 // pred_region
        %s230 = ssub.s32 %s18, 1
        %p231 = scmp.lt.s32.totalorder %s27, 1
        %s232 = scalar_select %p231, %s27, 1
        %s233 = smul.addr %s232, 51
        %s234 = smul.addr %s233, 4
        %s235 = scalar_lea.vmem %s0, %s234
        %p236 = pneg %p56
        %p237 = pneg %p53
        %p238 = scmp.lt.s32.totalorder %s28, 0
        %s239 = scalar_select %p238, %s28, 0
        %s240 = smul.addr %s239, 2
        %s241 = scalar_lea.vmem %s1, %s240
        %p242 = pneg %p82
        %p243 = pneg %p79
        %p244 = pneg %p103
        %p245 = pneg %p100
        %p246 = pneg %p131
        %p247 = pneg %p128
        %s248 = sand.u32 %s118, 1
        %s249 = scalar_lea.sflag [#allocation3], %s248
        %s250 = sand.u32 %s118, 1
        %s251 = smul.addr %s250, 160
        %s252 = scalar_lea.vmem [#allocation2], %s251
        %p253 = pneg %p159
        %p254 = pneg %p156
        %s255 = sand.u32 %s23, 1
        %s256 = scalar_lea.sflag [#allocation5], %s255
        %s257 = sand.u32 %s146, 1
        %s258 = smul.addr %s257, 8
        %s259 = scalar_lea.vmem [#allocation4], %s258
        %p260 = pneg %p187
        %p261 = pneg %p184
        %s262 = sand.u32 %s23, 1
        %s263 = scalar_lea.sflag [#allocation5], %s262
        %s264 = sand.u32 %s174, 1
        %s265 = smul.addr %s264, 8
        %s266 = scalar_lea.vmem [#allocation6], %s265
        %p267 = scmp.lt.s32.totalorder %s27, 1
        %s268 = scalar_select %p267, %s27, 1
        %s269 = smul.addr %s268, 51
        %s270 = smul.addr %s269, 4
        %s271 = scalar_lea.vmem %s0, %s270
        %p272 = scmp.lt.s32.totalorder %s28, 0
        %s273 = scalar_select %p272, %s28, 0
        %s274 = smul.addr %s273, 2
        %s275 = scalar_lea.vmem %s1, %s274
        %s276 = smul.u32 40, %s27
        %v278 = vld [vmem:[%s271] sm:$0xf]
        %v279 = vld [vmem:[%s271 + $0x4] sm:$0xf]
        %v280 = vld [vmem:[%s271 + $0x8] sm:$0xf]
        %v281 = vld [vmem:[%s271 + $0xc] sm:$0xf]
        %v282 = vld [vmem:[%s271 + $0x10] sm:$0xf]
        %v283 = vld [vmem:[%s271 + $0x14] sm:$0xf]
        %v284 = vld [vmem:[%s271 + $0x18] sm:$0xf]
        %v285 = vld [vmem:[%s271 + $0x1c] sm:$0xf]
        %v286 = vld [vmem:[%s271 + $0x20] sm:$0xf]
        %v287 = vld [vmem:[%s271 + $0x24] sm:$0xf]
        %v288 = vld [vmem:[%s271 + $0x28] sm:$0xf]
        %v289 = vld [vmem:[%s271 + $0x2c] sm:$0xf]
        %v290 = vld [vmem:[%s271 + $0x30] sm:$0xf]
        %v291 = vld [vmem:[%s271 + $0x34] sm:$0xf]
        %v292 = vld [vmem:[%s271 + $0x38] sm:$0xf]
        %v293 = vld [vmem:[%s271 + $0x3c] sm:$0xf]
        %v294 = vld [vmem:[%s271 + $0x40] sm:$0xf]
        %v295 = vld [vmem:[%s271 + $0x44] sm:$0xf]
        %v296 = vld [vmem:[%s271 + $0x48] sm:$0xf]
        %v297 = vld [vmem:[%s271 + $0x4c] sm:$0xf]
        %v298 = vld [vmem:[%s271 + $0x50] sm:$0xf]
        %v299 = vld [vmem:[%s271 + $0x54] sm:$0xf]
        %v300 = vld [vmem:[%s271 + $0x58] sm:$0xf]
        %v301 = vld [vmem:[%s271 + $0x5c] sm:$0xf]
        %v302 = vld [vmem:[%s271 + $0x60] sm:$0xf]
        %v303 = vld [vmem:[%s271 + $0x64] sm:$0xf]
        %v304 = vld [vmem:[%s271 + $0x68] sm:$0xf]
        %v305 = vld [vmem:[%s271 + $0x6c] sm:$0xf]
        %v306 = vld [vmem:[%s271 + $0x70] sm:$0xf]
        %v307 = vld [vmem:[%s271 + $0x74] sm:$0xf]
        %v308 = vld [vmem:[%s271 + $0x78] sm:$0xf]
        %v309 = vld [vmem:[%s271 + $0x7c] sm:$0xf]
        %v310 = vld [vmem:[%s271 + $0x80] sm:$0xf]
        %v311 = vld [vmem:[%s271 + $0x84] sm:$0xf]
        %v312 = vld [vmem:[%s271 + $0x88] sm:$0xf]
        %v313 = vld [vmem:[%s271 + $0x8c] sm:$0xf]
        %v314 = vld [vmem:[%s271 + $0x90] sm:$0xf]
        %v315 = vld [vmem:[%s271 + $0x94] sm:$0xf]
        %v316 = vld [vmem:[%s271 + $0x98] sm:$0xf]
        %v317 = vld [vmem:[%s271 + $0x9c] sm:$0xf]
        %v318 = vld [vmem:[%s275] sm:$0x3]
        %v319 = vld [vmem:[%s271] sm:$0xe]
        %v320 = vld [vmem:[%s271 + $0xa0] sm:$0x1]
        %s321 = scalar_lea.vmem %s275, 2
        %v322 = vld [vmem:[%s321] sm:$0x3]
        %v364 = vunpack.c.l.b16 %v319
        %v365 = vunpack.c.l.b16 %v279
        %v366 = vunpack.c.l.b16 %v280
        %v367 = vunpack.c.l.b16 %v281
        %v368 = vunpack.c.l.b16 %v282
        %v369 = vunpack.c.l.b16 %v283
        %v370 = vunpack.c.l.b16 %v284
        %v371 = vunpack.c.l.b16 %v285
        %v372 = vunpack.c.l.b16 %v286
        %v373 = vunpack.c.l.b16 %v287
        %v374 = vunpack.c.l.b16 %v288
        %v375 = vunpack.c.l.b16 %v289
        %v376 = vunpack.c.l.b16 %v290
        %v377 = vunpack.c.l.b16 %v291
        %v378 = vunpack.c.l.b16 %v292
        %v379 = vunpack.c.l.b16 %v293
        %v380 = vunpack.c.l.b16 %v294
        %v381 = vunpack.c.l.b16 %v295
        %v382 = vunpack.c.l.b16 %v296
        %v383 = vunpack.c.l.b16 %v297
        %v384 = vunpack.c.l.b16 %v298
        %v385 = vunpack.c.l.b16 %v299
        %v386 = vunpack.c.l.b16 %v300
        %v387 = vunpack.c.l.b16 %v301
        %v388 = vunpack.c.l.b16 %v302
        %v389 = vunpack.c.l.b16 %v303
        %v390 = vunpack.c.l.b16 %v304
        %v391 = vunpack.c.l.b16 %v305
        %v392 = vunpack.c.l.b16 %v306
        %v393 = vunpack.c.l.b16 %v307
        %v394 = vunpack.c.l.b16 %v308
        %v395 = vunpack.c.l.b16 %v309
        %v396 = vunpack.c.l.b16 %v310
        %v397 = vunpack.c.l.b16 %v311
        %v398 = vunpack.c.l.b16 %v312
        %v399 = vunpack.c.l.b16 %v313
        %v400 = vunpack.c.l.b16 %v314
        %v401 = vunpack.c.l.b16 %v315
        %v402 = vunpack.c.l.b16 %v316
        %v403 = vunpack.c.l.b16 %v317
        %v404 = vunpack.c.l.b16 %v320
        %v405 = vpack.c.b16 %v365, %v364
        %v406 = vpack.c.b16 %v367, %v366
        %v407 = vpack.c.b16 %v369, %v368
        %v408 = vpack.c.b16 %v371, %v370
        %v409 = vpack.c.b16 %v373, %v372
        %v410 = vpack.c.b16 %v375, %v374
        %v411 = vpack.c.b16 %v377, %v376
        %v412 = vpack.c.b16 %v379, %v378
        %v413 = vpack.c.b16 %v381, %v380
        %v414 = vpack.c.b16 %v383, %v382
        %v415 = vpack.c.b16 %v385, %v384
        %v416 = vpack.c.b16 %v387, %v386
        %v417 = vpack.c.b16 %v389, %v388
        %v418 = vpack.c.b16 %v391, %v390
        %v419 = vpack.c.b16 %v393, %v392
        %v420 = vpack.c.b16 %v395, %v394
        %v421 = vpack.c.b16 %v397, %v396
        %v422 = vpack.c.b16 %v399, %v398
        %v423 = vpack.c.b16 %v401, %v400
        %v424 = vpack.c.b16 %v403, %v402
        %v425 = vpack.c.b16 %v404, %v404
        %vm426 = vcmask 1046528
        %v427 = vrot.slane %v405, 1
        %v428 = vrot.slane %v406, 1
        %v429 = vsel %vm426, %v427, %v428
        %v430 = vrot.slane %v407, 1
        %v431 = vsel %vm426, %v428, %v430
        %v432 = vrot.slane %v408, 1
        %v433 = vsel %vm426, %v430, %v432
        %v434 = vrot.slane %v409, 1
        %v435 = vsel %vm426, %v432, %v434
        %v436 = vrot.slane %v410, 1
        %v437 = vsel %vm426, %v434, %v436
        %v438 = vrot.slane %v411, 1
        %v439 = vsel %vm426, %v436, %v438
        %v440 = vrot.slane %v412, 1
        %v441 = vsel %vm426, %v438, %v440
        %v442 = vrot.slane %v413, 1
        %v443 = vsel %vm426, %v440, %v442
        %v444 = vrot.slane %v414, 1
        %v445 = vsel %vm426, %v442, %v444
        %v446 = vrot.slane %v415, 1
        %v447 = vsel %vm426, %v444, %v446
        %v448 = vrot.slane %v416, 1
        %v449 = vsel %vm426, %v446, %v448
        %v450 = vrot.slane %v417, 1
        %v451 = vsel %vm426, %v448, %v450
        %v452 = vrot.slane %v418, 1
        %v453 = vsel %vm426, %v450, %v452
        %v454 = vrot.slane %v419, 1
        %v455 = vsel %vm426, %v452, %v454
        %v456 = vrot.slane %v420, 1
        %v457 = vsel %vm426, %v454, %v456
        %v458 = vrot.slane %v421, 1
        %v459 = vsel %vm426, %v456, %v458
        %v460 = vrot.slane %v422, 1
        %v461 = vsel %vm426, %v458, %v460
        %v462 = vrot.slane %v423, 1
        %v463 = vsel %vm426, %v460, %v462
        %v464 = vrot.slane %v424, 1
        %v465 = vsel %vm426, %v462, %v464
        %v466 = vrot.slane %v425, 1
        %v467 = vsel %vm426, %v464, %v466
        %vm468 = vcmask 31744
        %v470 = vsel %vm468, %v429, 0
        %v473 = vsel %vm468, %v431, 0
        %v476 = vsel %vm468, %v433, 0
        %v479 = vsel %vm468, %v435, 0
        %v482 = vsel %vm468, %v437, 0
        %v485 = vsel %vm468, %v439, 0
        %v488 = vsel %vm468, %v441, 0
        %v491 = vsel %vm468, %v443, 0
        %v494 = vsel %vm468, %v445, 0
        %v497 = vsel %vm468, %v447, 0
        %v500 = vsel %vm468, %v449, 0
        %v503 = vsel %vm468, %v451, 0
        %v506 = vsel %vm468, %v453, 0
        %v509 = vsel %vm468, %v455, 0
        %v512 = vsel %vm468, %v457, 0
        %v515 = vsel %vm468, %v459, 0
        %v518 = vsel %vm468, %v461, 0
        %v521 = vsel %vm468, %v463, 0
        %v524 = vsel %vm468, %v465, 0
        %v527 = vsel %vm468, %v467, 0
        %vm529 = vcmask 1041408
        %v531 = vsel %vm529, %v322, 0
        %533 = vmatpush.bf16.msra.mxu0 0
        %534 = vmatpush.bf16.msra.mxu0 0
        %535 = vmatpush.bf16.msra.mxu0 0
        %536 = vmatpush.bf16.msra.mxu0 0
        %537 = vmatpush.bf16.msra.mxu0 0
        %538 = vmatpush.bf16.msra.mxu0 0
        %539 = vmatpush.bf16.msra.mxu0 0
        %540 = vmatpush.bf16.msra.mxu0 %v531
        %541 = vmatmul.bf16.gmra.mxu0 %v470
        %v542 = vpop.f32.mrf.mxu0
        %v543 = vadd.f32 0.0, %v542
        %v544 = vpop.f32.mrf.mxu0
        %v545 = vadd.f32 0.0, %v544
        %546 = vmatmul.bf16.gmra.mxu0 %v473
        %v547 = vpop.f32.mrf.mxu0
        %v548 = vadd.f32 0.0, %v547
        %v549 = vpop.f32.mrf.mxu0
        %v550 = vadd.f32 0.0, %v549
        %551 = vmatmul.bf16.gmra.mxu0 %v476
        %v552 = vpop.f32.mrf.mxu0
        %v553 = vadd.f32 0.0, %v552
        %v554 = vpop.f32.mrf.mxu0
        %v555 = vadd.f32 0.0, %v554
        %556 = vmatmul.bf16.gmra.mxu0 %v479
        %v557 = vpop.f32.mrf.mxu0
        %v558 = vadd.f32 0.0, %v557
        %v559 = vpop.f32.mrf.mxu0
        %v560 = vadd.f32 0.0, %v559
        %561 = vmatmul.bf16.gmra.mxu0 %v482
        %v562 = vpop.f32.mrf.mxu0
        %v563 = vadd.f32 0.0, %v562
        %v564 = vpop.f32.mrf.mxu0
        %v565 = vadd.f32 0.0, %v564
        %566 = vmatmul.bf16.gmra.mxu0 %v485
        %v567 = vpop.f32.mrf.mxu0
        %v568 = vadd.f32 0.0, %v567
        %v569 = vpop.f32.mrf.mxu0
        %v570 = vadd.f32 0.0, %v569
        %571 = vmatmul.bf16.gmra.mxu0 %v488
        %v572 = vpop.f32.mrf.mxu0
        %v573 = vadd.f32 0.0, %v572
        %v574 = vpop.f32.mrf.mxu0
        %v575 = vadd.f32 0.0, %v574
        %576 = vmatmul.bf16.gmra.mxu0 %v491
        %v577 = vpop.f32.mrf.mxu0
        %v578 = vadd.f32 0.0, %v577
        %v579 = vpop.f32.mrf.mxu0
        %v580 = vadd.f32 0.0, %v579
        %581 = vmatmul.bf16.gmra.mxu0 %v494
        %v582 = vpop.f32.mrf.mxu0
        %v583 = vadd.f32 0.0, %v582
        %v584 = vpop.f32.mrf.mxu0
        %v585 = vadd.f32 0.0, %v584
        %586 = vmatmul.bf16.gmra.mxu0 %v497
        %v587 = vpop.f32.mrf.mxu0
        %v588 = vadd.f32 0.0, %v587
        %v589 = vpop.f32.mrf.mxu0
        %v590 = vadd.f32 0.0, %v589
        %591 = vmatmul.bf16.gmra.mxu0 %v500
        %v592 = vpop.f32.mrf.mxu0
        %v593 = vadd.f32 0.0, %v592
        %v594 = vpop.f32.mrf.mxu0
        %v595 = vadd.f32 0.0, %v594
        %596 = vmatmul.bf16.gmra.mxu0 %v503
        %v597 = vpop.f32.mrf.mxu0
        %v598 = vadd.f32 0.0, %v597
        %v599 = vpop.f32.mrf.mxu0
        %v600 = vadd.f32 0.0, %v599
        %601 = vmatmul.bf16.gmra.mxu0 %v506
        %v602 = vpop.f32.mrf.mxu0
        %v603 = vadd.f32 0.0, %v602
        %v604 = vpop.f32.mrf.mxu0
        %v605 = vadd.f32 0.0, %v604
        %606 = vmatmul.bf16.gmra.mxu0 %v509
        %v607 = vpop.f32.mrf.mxu0
        %v608 = vadd.f32 0.0, %v607
        %v609 = vpop.f32.mrf.mxu0
        %v610 = vadd.f32 0.0, %v609
        %611 = vmatmul.bf16.gmra.mxu0 %v512
        %v612 = vpop.f32.mrf.mxu0
        %v613 = vadd.f32 0.0, %v612
        %v614 = vpop.f32.mrf.mxu0
        %v615 = vadd.f32 0.0, %v614
        %616 = vmatmul.bf16.gmra.mxu0 %v515
        %v617 = vpop.f32.mrf.mxu0
        %v618 = vadd.f32 0.0, %v617
        %v619 = vpop.f32.mrf.mxu0
        %v620 = vadd.f32 0.0, %v619
        %621 = vmatmul.bf16.gmra.mxu0 %v518
        %v622 = vpop.f32.mrf.mxu0
        %v623 = vadd.f32 0.0, %v622
        %v624 = vpop.f32.mrf.mxu0
        %v625 = vadd.f32 0.0, %v624
        %626 = vmatmul.bf16.gmra.mxu0 %v521
        %v627 = vpop.f32.mrf.mxu0
        %v628 = vadd.f32 0.0, %v627
        %v629 = vpop.f32.mrf.mxu0
        %v630 = vadd.f32 0.0, %v629
        %631 = vmatmul.bf16.gmra.mxu0 %v524
        %v632 = vpop.f32.mrf.mxu0
        %v633 = vadd.f32 0.0, %v632
        %v634 = vpop.f32.mrf.mxu0
        %v635 = vadd.f32 0.0, %v634
        %636 = vmatmul.bf16.gmra.mxu0 %v527
        %v637 = vpop.f32.mrf.mxu0
        %v638 = vadd.f32 0.0, %v637
        %v639 = vpop.f32.mrf.mxu0
        %v640 = vadd.f32 0.0, %v639
        %641 = vdwg.mxu0
        %v643 = vunpack.c.l.b16 %v278
        %v644 = vpack.c.b16 %v365, %v643
        %v646 = vsel %vm468, %v644, 0
        %v649 = vsel %vm468, %v406, 0
        %v652 = vsel %vm468, %v407, 0
        %v655 = vsel %vm468, %v408, 0
        %v658 = vsel %vm468, %v409, 0
        %v661 = vsel %vm468, %v410, 0
        %v664 = vsel %vm468, %v411, 0
        %v667 = vsel %vm468, %v412, 0
        %v670 = vsel %vm468, %v413, 0
        %v673 = vsel %vm468, %v414, 0
        %v676 = vsel %vm468, %v415, 0
        %v679 = vsel %vm468, %v416, 0
        %v682 = vsel %vm468, %v417, 0
        %v685 = vsel %vm468, %v418, 0
        %v688 = vsel %vm468, %v419, 0
        %v691 = vsel %vm468, %v420, 0
        %v694 = vsel %vm468, %v421, 0
        %v697 = vsel %vm468, %v422, 0
        %v700 = vsel %vm468, %v423, 0
        %v703 = vsel %vm468, %v424, 0
        %v706 = vsel %vm529, %v318, 0
        %708 = vmatpush.bf16.msra.mxu0 0
        %709 = vmatpush.bf16.msra.mxu0 0
        %710 = vmatpush.bf16.msra.mxu0 0
        %711 = vmatpush.bf16.msra.mxu0 0
        %712 = vmatpush.bf16.msra.mxu0 0
        %713 = vmatpush.bf16.msra.mxu0 0
        %714 = vmatpush.bf16.msra.mxu0 0
        %715 = vmatpush.bf16.msra.mxu0 %v706
        %716 = vmatmul.bf16.gmra.mxu0 %v646
        %v717 = vpop.f32.mrf.mxu0
        %v718 = vadd.f32 %v543, %v717
        %v719 = vpop.f32.mrf.mxu0
        %v720 = vadd.f32 %v545, %v719
        %721 = vmatmul.bf16.gmra.mxu0 %v649
        %v722 = vpop.f32.mrf.mxu0
        %v723 = vadd.f32 %v548, %v722
        %v724 = vpop.f32.mrf.mxu0
        %v725 = vadd.f32 %v550, %v724
        %726 = vmatmul.bf16.gmra.mxu0 %v652
        %v727 = vpop.f32.mrf.mxu0
        %v728 = vadd.f32 %v553, %v727
        %v729 = vpop.f32.mrf.mxu0
        %v730 = vadd.f32 %v555, %v729
        %731 = vmatmul.bf16.gmra.mxu0 %v655
        %v732 = vpop.f32.mrf.mxu0
        %v733 = vadd.f32 %v558, %v732
        %v734 = vpop.f32.mrf.mxu0
        %v735 = vadd.f32 %v560, %v734
        %736 = vmatmul.bf16.gmra.mxu0 %v658
        %v737 = vpop.f32.mrf.mxu0
        %v738 = vadd.f32 %v563, %v737
        %v739 = vpop.f32.mrf.mxu0
        %v740 = vadd.f32 %v565, %v739
        %741 = vmatmul.bf16.gmra.mxu0 %v661
        %v742 = vpop.f32.mrf.mxu0
        %v743 = vadd.f32 %v568, %v742
        %v744 = vpop.f32.mrf.mxu0
        %v745 = vadd.f32 %v570, %v744
        %746 = vmatmul.bf16.gmra.mxu0 %v664
        %v747 = vpop.f32.mrf.mxu0
        %v748 = vadd.f32 %v573, %v747
        %v749 = vpop.f32.mrf.mxu0
        %v750 = vadd.f32 %v575, %v749
        %751 = vmatmul.bf16.gmra.mxu0 %v667
        %v752 = vpop.f32.mrf.mxu0
        %v753 = vadd.f32 %v578, %v752
        %v754 = vpop.f32.mrf.mxu0
        %v755 = vadd.f32 %v580, %v754
        %756 = vmatmul.bf16.gmra.mxu0 %v670
        %v757 = vpop.f32.mrf.mxu0
        %v758 = vadd.f32 %v583, %v757
        %v759 = vpop.f32.mrf.mxu0
        %v760 = vadd.f32 %v585, %v759
        %761 = vmatmul.bf16.gmra.mxu0 %v673
        %v762 = vpop.f32.mrf.mxu0
        %v763 = vadd.f32 %v588, %v762
        %v764 = vpop.f32.mrf.mxu0
        %v765 = vadd.f32 %v590, %v764
        %766 = vmatmul.bf16.gmra.mxu0 %v676
        %v767 = vpop.f32.mrf.mxu0
        %v768 = vadd.f32 %v593, %v767
        %v769 = vpop.f32.mrf.mxu0
        %v770 = vadd.f32 %v595, %v769
        %771 = vmatmul.bf16.gmra.mxu0 %v679
        %v772 = vpop.f32.mrf.mxu0
        %v773 = vadd.f32 %v598, %v772
        %v774 = vpop.f32.mrf.mxu0
        %v775 = vadd.f32 %v600, %v774
        %776 = vmatmul.bf16.gmra.mxu0 %v682
        %v777 = vpop.f32.mrf.mxu0
        %v778 = vadd.f32 %v603, %v777
        %v779 = vpop.f32.mrf.mxu0
        %v780 = vadd.f32 %v605, %v779
        %781 = vmatmul.bf16.gmra.mxu0 %v685
        %v782 = vpop.f32.mrf.mxu0
        %v783 = vadd.f32 %v608, %v782
        %v784 = vpop.f32.mrf.mxu0
        %v785 = vadd.f32 %v610, %v784
        %786 = vmatmul.bf16.gmra.mxu0 %v688
        %v787 = vpop.f32.mrf.mxu0
        %v788 = vadd.f32 %v613, %v787
        %v789 = vpop.f32.mrf.mxu0
        %v790 = vadd.f32 %v615, %v789
        %791 = vmatmul.bf16.gmra.mxu0 %v691
        %v792 = vpop.f32.mrf.mxu0
        %v793 = vadd.f32 %v618, %v792
        %v794 = vpop.f32.mrf.mxu0
        %v795 = vadd.f32 %v620, %v794
        %796 = vmatmul.bf16.gmra.mxu0 %v694
        %v797 = vpop.f32.mrf.mxu0
        %v798 = vadd.f32 %v623, %v797
        %v799 = vpop.f32.mrf.mxu0
        %v800 = vadd.f32 %v625, %v799
        %801 = vmatmul.bf16.gmra.mxu0 %v697
        %v802 = vpop.f32.mrf.mxu0
        %v803 = vadd.f32 %v628, %v802
        %v804 = vpop.f32.mrf.mxu0
        %v805 = vadd.f32 %v630, %v804
        %806 = vmatmul.bf16.gmra.mxu0 %v700
        %v807 = vpop.f32.mrf.mxu0
        %v808 = vadd.f32 %v633, %v807
        %v809 = vpop.f32.mrf.mxu0
        %v810 = vadd.f32 %v635, %v809
        %811 = vmatmul.bf16.gmra.mxu0 %v703
        %v812 = vpop.f32.mrf.mxu0
        %v813 = vadd.f32 %v638, %v812
        %v814 = vpop.f32.mrf.mxu0
        %v815 = vadd.f32 %v640, %v814
        %816 = vdwg.mxu0
        %v817 = vld [vmem:[%s271] sm:$0xc]
        %v818 = vld [vmem:[%s271 + $0xa0] sm:$0x3]
        %s819 = scalar_lea.vmem %s275, 4
        %v820 = vld [vmem:[%s819] sm:$0x3]
        %v823 = vunpack.c.l.b16 %v817
        %v824 = vunpack.c.l.b16 %v818
        %v825 = vpack.c.b16 %v365, %v823
        %v826 = vpack.c.b16 %v824, %v824
        %vm827 = vcmask 1045504
        %v828 = vrot.slane %v825, 2
        %v829 = vrot.slane %v406, 2
        %v830 = vsel %vm827, %v828, %v829
        %v831 = vrot.slane %v407, 2
        %v832 = vsel %vm827, %v829, %v831
        %v833 = vrot.slane %v408, 2
        %v834 = vsel %vm827, %v831, %v833
        %v835 = vrot.slane %v409, 2
        %v836 = vsel %vm827, %v833, %v835
        %v837 = vrot.slane %v410, 2
        %v838 = vsel %vm827, %v835, %v837
        %v839 = vrot.slane %v411, 2
        %v840 = vsel %vm827, %v837, %v839
        %v841 = vrot.slane %v412, 2
        %v842 = vsel %vm827, %v839, %v841
        %v843 = vrot.slane %v413, 2
        %v844 = vsel %vm827, %v841, %v843
        %v845 = vrot.slane %v414, 2
        %v846 = vsel %vm827, %v843, %v845
        %v847 = vrot.slane %v415, 2
        %v848 = vsel %vm827, %v845, %v847
        %v849 = vrot.slane %v416, 2
        %v850 = vsel %vm827, %v847, %v849
        %v851 = vrot.slane %v417, 2
        %v852 = vsel %vm827, %v849, %v851
        %v853 = vrot.slane %v418, 2
        %v854 = vsel %vm827, %v851, %v853
        %v855 = vrot.slane %v419, 2
        %v856 = vsel %vm827, %v853, %v855
        %v857 = vrot.slane %v420, 2
        %v858 = vsel %vm827, %v855, %v857
        %v859 = vrot.slane %v421, 2
        %v860 = vsel %vm827, %v857, %v859
        %v861 = vrot.slane %v422, 2
        %v862 = vsel %vm827, %v859, %v861
        %v863 = vrot.slane %v423, 2
        %v864 = vsel %vm827, %v861, %v863
        %v865 = vrot.slane %v424, 2
        %v866 = vsel %vm827, %v863, %v865
        %v867 = vrot.slane %v826, 2
        %v868 = vsel %vm827, %v865, %v867
        %v870 = vsel %vm468, %v830, 0
        %v873 = vsel %vm468, %v832, 0
        %v876 = vsel %vm468, %v834, 0
        %v879 = vsel %vm468, %v836, 0
        %v882 = vsel %vm468, %v838, 0
        %v885 = vsel %vm468, %v840, 0
        %v888 = vsel %vm468, %v842, 0
        %v891 = vsel %vm468, %v844, 0
        %v894 = vsel %vm468, %v846, 0
        %v897 = vsel %vm468, %v848, 0
        %v900 = vsel %vm468, %v850, 0
        %v903 = vsel %vm468, %v852, 0
        %v906 = vsel %vm468, %v854, 0
        %v909 = vsel %vm468, %v856, 0
        %v912 = vsel %vm468, %v858, 0
        %v915 = vsel %vm468, %v860, 0
        %v918 = vsel %vm468, %v862, 0
        %v921 = vsel %vm468, %v864, 0
        %v924 = vsel %vm468, %v866, 0
        %v927 = vsel %vm468, %v868, 0
        %v930 = vsel %vm529, %v820, 0
        %932 = vmatpush.bf16.msra.mxu0 0
        %933 = vmatpush.bf16.msra.mxu0 0
        %934 = vmatpush.bf16.msra.mxu0 0
        %935 = vmatpush.bf16.msra.mxu0 0
        %936 = vmatpush.bf16.msra.mxu0 0
        %937 = vmatpush.bf16.msra.mxu0 0
        %938 = vmatpush.bf16.msra.mxu0 0
        %939 = vmatpush.bf16.msra.mxu0 %v930
        %940 = vmatmul.bf16.gmra.mxu0 %v870
        %v941 = vpop.f32.mrf.mxu0
        %v942 = vadd.f32 0.0, %v941
        %v943 = vpop.f32.mrf.mxu0
        %v944 = vadd.f32 0.0, %v943
        %945 = vmatmul.bf16.gmra.mxu0 %v873
        %v946 = vpop.f32.mrf.mxu0
        %v947 = vadd.f32 0.0, %v946
        %v948 = vpop.f32.mrf.mxu0
        %v949 = vadd.f32 0.0, %v948
        %950 = vmatmul.bf16.gmra.mxu0 %v876
        %v951 = vpop.f32.mrf.mxu0
        %v952 = vadd.f32 0.0, %v951
        %v953 = vpop.f32.mrf.mxu0
        %v954 = vadd.f32 0.0, %v953
        %955 = vmatmul.bf16.gmra.mxu0 %v879
        %v956 = vpop.f32.mrf.mxu0
        %v957 = vadd.f32 0.0, %v956
        %v958 = vpop.f32.mrf.mxu0
        %v959 = vadd.f32 0.0, %v958
        %960 = vmatmul.bf16.gmra.mxu0 %v882
        %v961 = vpop.f32.mrf.mxu0
        %v962 = vadd.f32 0.0, %v961
        %v963 = vpop.f32.mrf.mxu0
        %v964 = vadd.f32 0.0, %v963
        %965 = vmatmul.bf16.gmra.mxu0 %v885
        %v966 = vpop.f32.mrf.mxu0
        %v967 = vadd.f32 0.0, %v966
        %v968 = vpop.f32.mrf.mxu0
        %v969 = vadd.f32 0.0, %v968
        %970 = vmatmul.bf16.gmra.mxu0 %v888
        %v971 = vpop.f32.mrf.mxu0
        %v972 = vadd.f32 0.0, %v971
        %v973 = vpop.f32.mrf.mxu0
        %v974 = vadd.f32 0.0, %v973
        %975 = vmatmul.bf16.gmra.mxu0 %v891
        %v976 = vpop.f32.mrf.mxu0
        %v977 = vadd.f32 0.0, %v976
        %v978 = vpop.f32.mrf.mxu0
        %v979 = vadd.f32 0.0, %v978
        %980 = vmatmul.bf16.gmra.mxu0 %v894
        %v981 = vpop.f32.mrf.mxu0
        %v982 = vadd.f32 0.0, %v981
        %v983 = vpop.f32.mrf.mxu0
        %v984 = vadd.f32 0.0, %v983
        %985 = vmatmul.bf16.gmra.mxu0 %v897
        %v986 = vpop.f32.mrf.mxu0
        %v987 = vadd.f32 0.0, %v986
        %v988 = vpop.f32.mrf.mxu0
        %v989 = vadd.f32 0.0, %v988
        %990 = vmatmul.bf16.gmra.mxu0 %v900
        %v991 = vpop.f32.mrf.mxu0
        %v992 = vadd.f32 0.0, %v991
        %v993 = vpop.f32.mrf.mxu0
        %v994 = vadd.f32 0.0, %v993
        %995 = vmatmul.bf16.gmra.mxu0 %v903
        %v996 = vpop.f32.mrf.mxu0
        %v997 = vadd.f32 0.0, %v996
        %v998 = vpop.f32.mrf.mxu0
        %v999 = vadd.f32 0.0, %v998
        %1000 = vmatmul.bf16.gmra.mxu0 %v906
        %v1001 = vpop.f32.mrf.mxu0
        %v1002 = vadd.f32 0.0, %v1001
        %v1003 = vpop.f32.mrf.mxu0
        %v1004 = vadd.f32 0.0, %v1003
        %1005 = vmatmul.bf16.gmra.mxu0 %v909
        %v1006 = vpop.f32.mrf.mxu0
        %v1007 = vadd.f32 0.0, %v1006
        %v1008 = vpop.f32.mrf.mxu0
        %v1009 = vadd.f32 0.0, %v1008
        %1010 = vmatmul.bf16.gmra.mxu0 %v912
        %v1011 = vpop.f32.mrf.mxu0
        %v1012 = vadd.f32 0.0, %v1011
        %v1013 = vpop.f32.mrf.mxu0
        %v1014 = vadd.f32 0.0, %v1013
        %1015 = vmatmul.bf16.gmra.mxu0 %v915
        %v1016 = vpop.f32.mrf.mxu0
        %v1017 = vadd.f32 0.0, %v1016
        %v1018 = vpop.f32.mrf.mxu0
        %v1019 = vadd.f32 0.0, %v1018
        %1020 = vmatmul.bf16.gmra.mxu0 %v918
        %v1021 = vpop.f32.mrf.mxu0
        %v1022 = vadd.f32 0.0, %v1021
        %v1023 = vpop.f32.mrf.mxu0
        %v1024 = vadd.f32 0.0, %v1023
        %1025 = vmatmul.bf16.gmra.mxu0 %v921
        %v1026 = vpop.f32.mrf.mxu0
        %v1027 = vadd.f32 0.0, %v1026
        %v1028 = vpop.f32.mrf.mxu0
        %v1029 = vadd.f32 0.0, %v1028
        %1030 = vmatmul.bf16.gmra.mxu0 %v924
        %v1031 = vpop.f32.mrf.mxu0
        %v1032 = vadd.f32 0.0, %v1031
        %v1033 = vpop.f32.mrf.mxu0
        %v1034 = vadd.f32 0.0, %v1033
        %1035 = vmatmul.bf16.gmra.mxu0 %v927
        %v1036 = vpop.f32.mrf.mxu0
        %v1037 = vadd.f32 0.0, %v1036
        %v1038 = vpop.f32.mrf.mxu0
        %v1039 = vadd.f32 0.0, %v1038
        %1040 = vdwg.mxu0
        %v1041 = vadd.f32 %v718, %v942
        %v1042 = vadd.f32 %v720, %v944
        %v1043 = vadd.f32 %v723, %v947
        %v1044 = vadd.f32 %v725, %v949
        %v1045 = vadd.f32 %v728, %v952
        %v1046 = vadd.f32 %v730, %v954
        %v1047 = vadd.f32 %v733, %v957
        %v1048 = vadd.f32 %v735, %v959
        %v1049 = vadd.f32 %v738, %v962
        %v1050 = vadd.f32 %v740, %v964
        %v1051 = vadd.f32 %v743, %v967
        %v1052 = vadd.f32 %v745, %v969
        %v1053 = vadd.f32 %v748, %v972
        %v1054 = vadd.f32 %v750, %v974
        %v1055 = vadd.f32 %v753, %v977
        %v1056 = vadd.f32 %v755, %v979
        %v1057 = vadd.f32 %v758, %v982
        %v1058 = vadd.f32 %v760, %v984
        %v1059 = vadd.f32 %v763, %v987
        %v1060 = vadd.f32 %v765, %v989
        %v1061 = vadd.f32 %v768, %v992
        %v1062 = vadd.f32 %v770, %v994
        %v1063 = vadd.f32 %v773, %v997
        %v1064 = vadd.f32 %v775, %v999
        %v1065 = vadd.f32 %v778, %v1002
        %v1066 = vadd.f32 %v780, %v1004
        %v1067 = vadd.f32 %v783, %v1007
        %v1068 = vadd.f32 %v785, %v1009
        %v1069 = vadd.f32 %v788, %v1012
        %v1070 = vadd.f32 %v790, %v1014
        %v1071 = vadd.f32 %v793, %v1017
        %v1072 = vadd.f32 %v795, %v1019
        %v1073 = vadd.f32 %v798, %v1022
        %v1074 = vadd.f32 %v800, %v1024
        %v1075 = vadd.f32 %v803, %v1027
        %v1076 = vadd.f32 %v805, %v1029
        %v1077 = vadd.f32 %v808, %v1032
        %v1078 = vadd.f32 %v810, %v1034
        %v1079 = vadd.f32 %v813, %v1037
        %v1080 = vadd.f32 %v815, %v1039
        %v1081 = vld [vmem:[%s271 + $0x14] sm:$0xf]
        %v1082 = vld [vmem:[%s271 + $0x18] sm:$0xf]
        %v1083 = vld [vmem:[%s271 + $0x1c] sm:$0xf]
        %v1084 = vld [vmem:[%s271 + $0x20] sm:$0xf]
        %v1085 = vld [vmem:[%s271 + $0x24] sm:$0xf]
        %v1086 = vld [vmem:[%s271 + $0x28] sm:$0xf]
        %v1087 = vld [vmem:[%s271 + $0x2c] sm:$0xf]
        %v1088 = vld [vmem:[%s271 + $0x30] sm:$0xf]
        %v1089 = vld [vmem:[%s271 + $0x34] sm:$0xf]
        %v1090 = vld [vmem:[%s271 + $0x38] sm:$0xf]
        %v1091 = vld [vmem:[%s271 + $0x3c] sm:$0xf]
        %v1092 = vld [vmem:[%s271 + $0x40] sm:$0xf]
        %v1093 = vld [vmem:[%s271 + $0x44] sm:$0xf]
        %v1094 = vld [vmem:[%s271 + $0x48] sm:$0xf]
        %v1095 = vld [vmem:[%s271 + $0x4c] sm:$0xf]
        %v1096 = vld [vmem:[%s271 + $0x50] sm:$0xf]
        %v1097 = vld [vmem:[%s271 + $0x54] sm:$0xf]
        %v1098 = vld [vmem:[%s271 + $0x58] sm:$0xf]
        %v1099 = vld [vmem:[%s271 + $0x5c] sm:$0xf]
        %v1100 = vld [vmem:[%s271 + $0x60] sm:$0xf]
        %v1101 = vld [vmem:[%s271 + $0x64] sm:$0xf]
        %v1102 = vld [vmem:[%s271 + $0x68] sm:$0xf]
        %v1103 = vld [vmem:[%s271 + $0x6c] sm:$0xf]
        %v1104 = vld [vmem:[%s271 + $0x70] sm:$0xf]
        %v1105 = vld [vmem:[%s271 + $0x74] sm:$0xf]
        %v1106 = vld [vmem:[%s271 + $0x78] sm:$0xf]
        %v1107 = vld [vmem:[%s271 + $0x7c] sm:$0xf]
        %v1108 = vld [vmem:[%s271 + $0x80] sm:$0xf]
        %v1109 = vld [vmem:[%s271 + $0x84] sm:$0xf]
        %v1110 = vld [vmem:[%s271 + $0x88] sm:$0xf]
        %v1111 = vld [vmem:[%s271 + $0x8c] sm:$0xf]
        %v1112 = vld [vmem:[%s271 + $0x90] sm:$0xf]
        %v1113 = vld [vmem:[%s271 + $0x94] sm:$0xf]
        %v1114 = vld [vmem:[%s271 + $0x98] sm:$0xf]
        %v1115 = vld [vmem:[%s271 + $0x9c] sm:$0xf]
        %v1116 = vld [vmem:[%s271 + $0xa0] sm:$0xf]
        %v1117 = vld [vmem:[%s271 + $0xa4] sm:$0xf]
        %v1118 = vld [vmem:[%s271 + $0xa8] sm:$0xf]
        %v1119 = vld [vmem:[%s271 + $0xac] sm:$0xf]
        %v1120 = vld [vmem:[%s271 + $0xb0] sm:$0xf]
        %s1121 = scalar_lea.vmem %s275, 6
        %v1122 = vld [vmem:[%s1121] sm:$0x3]
        %v1163 = vunpack.c.l.b16 %v1081
        %v1164 = vunpack.c.l.b16 %v1082
        %v1165 = vunpack.c.l.b16 %v1083
        %v1166 = vunpack.c.l.b16 %v1084
        %v1167 = vunpack.c.l.b16 %v1085
        %v1168 = vunpack.c.l.b16 %v1086
        %v1169 = vunpack.c.l.b16 %v1087
        %v1170 = vunpack.c.l.b16 %v1088
        %v1171 = vunpack.c.l.b16 %v1089
        %v1172 = vunpack.c.l.b16 %v1090
        %v1173 = vunpack.c.l.b16 %v1091
        %v1174 = vunpack.c.l.b16 %v1092
        %v1175 = vunpack.c.l.b16 %v1093
        %v1176 = vunpack.c.l.b16 %v1094
        %v1177 = vunpack.c.l.b16 %v1095
        %v1178 = vunpack.c.l.b16 %v1096
        %v1179 = vunpack.c.l.b16 %v1097
        %v1180 = vunpack.c.l.b16 %v1098
        %v1181 = vunpack.c.l.b16 %v1099
        %v1182 = vunpack.c.l.b16 %v1100
        %v1183 = vunpack.c.l.b16 %v1101
        %v1184 = vunpack.c.l.b16 %v1102
        %v1185 = vunpack.c.l.b16 %v1103
        %v1186 = vunpack.c.l.b16 %v1104
        %v1187 = vunpack.c.l.b16 %v1105
        %v1188 = vunpack.c.l.b16 %v1106
        %v1189 = vunpack.c.l.b16 %v1107
        %v1190 = vunpack.c.l.b16 %v1108
        %v1191 = vunpack.c.l.b16 %v1109
        %v1192 = vunpack.c.l.b16 %v1110
        %v1193 = vunpack.c.l.b16 %v1111
        %v1194 = vunpack.c.l.b16 %v1112
        %v1195 = vunpack.c.l.b16 %v1113
        %v1196 = vunpack.c.l.b16 %v1114
        %v1197 = vunpack.c.l.b16 %v1115
        %v1198 = vunpack.c.l.b16 %v1116
        %v1199 = vunpack.c.l.b16 %v1117
        %v1200 = vunpack.c.l.b16 %v1118
        %v1201 = vunpack.c.l.b16 %v1119
        %v1202 = vunpack.c.l.b16 %v1120
        %v1203 = vpack.c.b16 %v1164, %v1163
        %v1204 = vpack.c.b16 %v1166, %v1165
        %v1205 = vpack.c.b16 %v1168, %v1167
        %v1206 = vpack.c.b16 %v1170, %v1169
        %v1207 = vpack.c.b16 %v1172, %v1171
        %v1208 = vpack.c.b16 %v1174, %v1173
        %v1209 = vpack.c.b16 %v1176, %v1175
        %v1210 = vpack.c.b16 %v1178, %v1177
        %v1211 = vpack.c.b16 %v1180, %v1179
        %v1212 = vpack.c.b16 %v1182, %v1181
        %v1213 = vpack.c.b16 %v1184, %v1183
        %v1214 = vpack.c.b16 %v1186, %v1185
        %v1215 = vpack.c.b16 %v1188, %v1187
        %v1216 = vpack.c.b16 %v1190, %v1189
        %v1217 = vpack.c.b16 %v1192, %v1191
        %v1218 = vpack.c.b16 %v1194, %v1193
        %v1219 = vpack.c.b16 %v1196, %v1195
        %v1220 = vpack.c.b16 %v1198, %v1197
        %v1221 = vpack.c.b16 %v1200, %v1199
        %v1222 = vpack.c.b16 %v1202, %v1201
        %v1224 = vsel %vm468, %v1203, 0
        %v1227 = vsel %vm468, %v1204, 0
        %v1230 = vsel %vm468, %v1205, 0
        %v1233 = vsel %vm468, %v1206, 0
        %v1236 = vsel %vm468, %v1207, 0
        %v1239 = vsel %vm468, %v1208, 0
        %v1242 = vsel %vm468, %v1209, 0
        %v1245 = vsel %vm468, %v1210, 0
        %v1248 = vsel %vm468, %v1211, 0
        %v1251 = vsel %vm468, %v1212, 0
        %v1254 = vsel %vm468, %v1213, 0
        %v1257 = vsel %vm468, %v1214, 0
        %v1260 = vsel %vm468, %v1215, 0
        %v1263 = vsel %vm468, %v1216, 0
        %v1266 = vsel %vm468, %v1217, 0
        %v1269 = vsel %vm468, %v1218, 0
        %v1272 = vsel %vm468, %v1219, 0
        %v1275 = vsel %vm468, %v1220, 0
        %v1278 = vsel %vm468, %v1221, 0
        %v1281 = vsel %vm468, %v1222, 0
        %v1284 = vsel %vm529, %v1122, 0
        %1286 = vmatpush.bf16.msra.mxu0 0
        %1287 = vmatpush.bf16.msra.mxu0 0
        %1288 = vmatpush.bf16.msra.mxu0 0
        %1289 = vmatpush.bf16.msra.mxu0 0
        %1290 = vmatpush.bf16.msra.mxu0 0
        %1291 = vmatpush.bf16.msra.mxu0 0
        %1292 = vmatpush.bf16.msra.mxu0 0
        %1293 = vmatpush.bf16.msra.mxu0 %v1284
        %1294 = vmatmul.bf16.gmra.mxu0 %v1224
        %v1295 = vpop.f32.mrf.mxu0
        %v1296 = vadd.f32 0.0, %v1295
        %v1297 = vpop.f32.mrf.mxu0
        %v1298 = vadd.f32 0.0, %v1297
        %1299 = vmatmul.bf16.gmra.mxu0 %v1227
        %v1300 = vpop.f32.mrf.mxu0
        %v1301 = vadd.f32 0.0, %v1300
        %v1302 = vpop.f32.mrf.mxu0
        %v1303 = vadd.f32 0.0, %v1302
        %1304 = vmatmul.bf16.gmra.mxu0 %v1230
        %v1305 = vpop.f32.mrf.mxu0
        %v1306 = vadd.f32 0.0, %v1305
        %v1307 = vpop.f32.mrf.mxu0
        %v1308 = vadd.f32 0.0, %v1307
        %1309 = vmatmul.bf16.gmra.mxu0 %v1233
        %v1310 = vpop.f32.mrf.mxu0
        %v1311 = vadd.f32 0.0, %v1310
        %v1312 = vpop.f32.mrf.mxu0
        %v1313 = vadd.f32 0.0, %v1312
        %1314 = vmatmul.bf16.gmra.mxu0 %v1236
        %v1315 = vpop.f32.mrf.mxu0
        %v1316 = vadd.f32 0.0, %v1315
        %v1317 = vpop.f32.mrf.mxu0
        %v1318 = vadd.f32 0.0, %v1317
        %1319 = vmatmul.bf16.gmra.mxu0 %v1239
        %v1320 = vpop.f32.mrf.mxu0
        %v1321 = vadd.f32 0.0, %v1320
        %v1322 = vpop.f32.mrf.mxu0
        %v1323 = vadd.f32 0.0, %v1322
        %1324 = vmatmul.bf16.gmra.mxu0 %v1242
        %v1325 = vpop.f32.mrf.mxu0
        %v1326 = vadd.f32 0.0, %v1325
        %v1327 = vpop.f32.mrf.mxu0
        %v1328 = vadd.f32 0.0, %v1327
        %1329 = vmatmul.bf16.gmra.mxu0 %v1245
        %v1330 = vpop.f32.mrf.mxu0
        %v1331 = vadd.f32 0.0, %v1330
        %v1332 = vpop.f32.mrf.mxu0
        %v1333 = vadd.f32 0.0, %v1332
        %1334 = vmatmul.bf16.gmra.mxu0 %v1248
        %v1335 = vpop.f32.mrf.mxu0
        %v1336 = vadd.f32 0.0, %v1335
        %v1337 = vpop.f32.mrf.mxu0
        %v1338 = vadd.f32 0.0, %v1337
        %1339 = vmatmul.bf16.gmra.mxu0 %v1251
        %v1340 = vpop.f32.mrf.mxu0
        %v1341 = vadd.f32 0.0, %v1340
        %v1342 = vpop.f32.mrf.mxu0
        %v1343 = vadd.f32 0.0, %v1342
        %1344 = vmatmul.bf16.gmra.mxu0 %v1254
        %v1345 = vpop.f32.mrf.mxu0
        %v1346 = vadd.f32 0.0, %v1345
        %v1347 = vpop.f32.mrf.mxu0
        %v1348 = vadd.f32 0.0, %v1347
        %1349 = vmatmul.bf16.gmra.mxu0 %v1257
        %v1350 = vpop.f32.mrf.mxu0
        %v1351 = vadd.f32 0.0, %v1350
        %v1352 = vpop.f32.mrf.mxu0
        %v1353 = vadd.f32 0.0, %v1352
        %1354 = vmatmul.bf16.gmra.mxu0 %v1260
        %v1355 = vpop.f32.mrf.mxu0
        %v1356 = vadd.f32 0.0, %v1355
        %v1357 = vpop.f32.mrf.mxu0
        %v1358 = vadd.f32 0.0, %v1357
        %1359 = vmatmul.bf16.gmra.mxu0 %v1263
        %v1360 = vpop.f32.mrf.mxu0
        %v1361 = vadd.f32 0.0, %v1360
        %v1362 = vpop.f32.mrf.mxu0
        %v1363 = vadd.f32 0.0, %v1362
        %1364 = vmatmul.bf16.gmra.mxu0 %v1266
        %v1365 = vpop.f32.mrf.mxu0
        %v1366 = vadd.f32 0.0, %v1365
        %v1367 = vpop.f32.mrf.mxu0
        %v1368 = vadd.f32 0.0, %v1367
        %1369 = vmatmul.bf16.gmra.mxu0 %v1269
        %v1370 = vpop.f32.mrf.mxu0
        %v1371 = vadd.f32 0.0, %v1370
        %v1372 = vpop.f32.mrf.mxu0
        %v1373 = vadd.f32 0.0, %v1372
        %1374 = vmatmul.bf16.gmra.mxu0 %v1272
        %v1375 = vpop.f32.mrf.mxu0
        %v1376 = vadd.f32 0.0, %v1375
        %v1377 = vpop.f32.mrf.mxu0
        %v1378 = vadd.f32 0.0, %v1377
        %1379 = vmatmul.bf16.gmra.mxu0 %v1275
        %v1380 = vpop.f32.mrf.mxu0
        %v1381 = vadd.f32 0.0, %v1380
        %v1382 = vpop.f32.mrf.mxu0
        %v1383 = vadd.f32 0.0, %v1382
        %1384 = vmatmul.bf16.gmra.mxu0 %v1278
        %v1385 = vpop.f32.mrf.mxu0
        %v1386 = vadd.f32 0.0, %v1385
        %v1387 = vpop.f32.mrf.mxu0
        %v1388 = vadd.f32 0.0, %v1387
        %1389 = vmatmul.bf16.gmra.mxu0 %v1281
        %v1390 = vpop.f32.mrf.mxu0
        %v1391 = vadd.f32 0.0, %v1390
        %v1392 = vpop.f32.mrf.mxu0
        %v1393 = vadd.f32 0.0, %v1392
        %1394 = vdwg.mxu0
        %v1395 = vadd.f32 %v1041, %v1296
        %v1396 = vadd.f32 %v1042, %v1298
        %v1397 = vadd.f32 %v1043, %v1301
        %v1398 = vadd.f32 %v1044, %v1303
        %v1399 = vadd.f32 %v1045, %v1306
        %v1400 = vadd.f32 %v1046, %v1308
        %v1401 = vadd.f32 %v1047, %v1311
        %v1402 = vadd.f32 %v1048, %v1313
        %v1403 = vadd.f32 %v1049, %v1316
        %v1404 = vadd.f32 %v1050, %v1318
        %v1405 = vadd.f32 %v1051, %v1321
        %v1406 = vadd.f32 %v1052, %v1323
        %v1407 = vadd.f32 %v1053, %v1326
        %v1408 = vadd.f32 %v1054, %v1328
        %v1409 = vadd.f32 %v1055, %v1331
        %v1410 = vadd.f32 %v1056, %v1333
        %v1411 = vadd.f32 %v1057, %v1336
        %v1412 = vadd.f32 %v1058, %v1338
        %v1413 = vadd.f32 %v1059, %v1341
        %v1414 = vadd.f32 %v1060, %v1343
        %v1415 = vadd.f32 %v1061, %v1346
        %v1416 = vadd.f32 %v1062, %v1348
        %v1417 = vadd.f32 %v1063, %v1351
        %v1418 = vadd.f32 %v1064, %v1353
        %v1419 = vadd.f32 %v1065, %v1356
        %v1420 = vadd.f32 %v1066, %v1358
        %v1421 = vadd.f32 %v1067, %v1361
        %v1422 = vadd.f32 %v1068, %v1363
        %v1423 = vadd.f32 %v1069, %v1366
        %v1424 = vadd.f32 %v1070, %v1368
        %v1425 = vadd.f32 %v1071, %v1371
        %v1426 = vadd.f32 %v1072, %v1373
        %v1427 = vadd.f32 %v1073, %v1376
        %v1428 = vadd.f32 %v1074, %v1378
        %v1429 = vadd.f32 %v1075, %v1381
        %v1430 = vadd.f32 %v1076, %v1383
        %v1431 = vadd.f32 %v1077, %v1386
        %v1432 = vadd.f32 %v1078, %v1388
        %v1433 = vadd.f32 %v1079, %v1391
        %v1434 = vadd.f32 %v1080, %v1393
        %v1435 = vld [vmem:[%s271 + $0x14] sm:$0xe]
        %v1436 = vld [vmem:[%s271 + $0x18] sm:$0xf]
        %v1437 = vld [vmem:[%s271 + $0x1c] sm:$0xf]
        %v1438 = vld [vmem:[%s271 + $0x20] sm:$0xf]
        %v1439 = vld [vmem:[%s271 + $0x24] sm:$0xf]
        %v1440 = vld [vmem:[%s271 + $0x28] sm:$0xf]
        %v1441 = vld [vmem:[%s271 + $0x2c] sm:$0xf]
        %v1442 = vld [vmem:[%s271 + $0x30] sm:$0xf]
        %v1443 = vld [vmem:[%s271 + $0x34] sm:$0xf]
        %v1444 = vld [vmem:[%s271 + $0x38] sm:$0xf]
        %v1445 = vld [vmem:[%s271 + $0x3c] sm:$0xf]
        %v1446 = vld [vmem:[%s271 + $0x40] sm:$0xf]
        %v1447 = vld [vmem:[%s271 + $0x44] sm:$0xf]
        %v1448 = vld [vmem:[%s271 + $0x48] sm:$0xf]
        %v1449 = vld [vmem:[%s271 + $0x4c] sm:$0xf]
        %v1450 = vld [vmem:[%s271 + $0x50] sm:$0xf]
        %v1451 = vld [vmem:[%s271 + $0x54] sm:$0xf]
        %v1452 = vld [vmem:[%s271 + $0x58] sm:$0xf]
        %v1453 = vld [vmem:[%s271 + $0x5c] sm:$0xf]
        %v1454 = vld [vmem:[%s271 + $0x60] sm:$0xf]
        %v1455 = vld [vmem:[%s271 + $0x64] sm:$0xf]
        %v1456 = vld [vmem:[%s271 + $0x68] sm:$0xf]
        %v1457 = vld [vmem:[%s271 + $0x6c] sm:$0xf]
        %v1458 = vld [vmem:[%s271 + $0x70] sm:$0xf]
        %v1459 = vld [vmem:[%s271 + $0x74] sm:$0xf]
        %v1460 = vld [vmem:[%s271 + $0x78] sm:$0xf]
        %v1461 = vld [vmem:[%s271 + $0x7c] sm:$0xf]
        %v1462 = vld [vmem:[%s271 + $0x80] sm:$0xf]
        %v1463 = vld [vmem:[%s271 + $0x84] sm:$0xf]
        %v1464 = vld [vmem:[%s271 + $0x88] sm:$0xf]
        %v1465 = vld [vmem:[%s271 + $0x8c] sm:$0xf]
        %v1466 = vld [vmem:[%s271 + $0x90] sm:$0xf]
        %v1467 = vld [vmem:[%s271 + $0x94] sm:$0xf]
        %v1468 = vld [vmem:[%s271 + $0x98] sm:$0xf]
        %v1469 = vld [vmem:[%s271 + $0x9c] sm:$0xf]
        %v1470 = vld [vmem:[%s271 + $0xa0] sm:$0xf]
        %v1471 = vld [vmem:[%s271 + $0xa4] sm:$0xf]
        %v1472 = vld [vmem:[%s271 + $0xa8] sm:$0xf]
        %v1473 = vld [vmem:[%s271 + $0xac] sm:$0xf]
        %v1474 = vld [vmem:[%s271 + $0xb0] sm:$0xf]
        %v1475 = vld [vmem:[%s271 + $0xb4] sm:$0x1]
        %s1476 = scalar_lea.vmem %s275, 8
        %v1477 = vld [vmem:[%s1476] sm:$0x3]
        %v1519 = vunpack.c.l.b16 %v1435
        %v1520 = vunpack.c.l.b16 %v1436
        %v1521 = vunpack.c.l.b16 %v1437
        %v1522 = vunpack.c.l.b16 %v1438
        %v1523 = vunpack.c.l.b16 %v1439
        %v1524 = vunpack.c.l.b16 %v1440
        %v1525 = vunpack.c.l.b16 %v1441
        %v1526 = vunpack.c.l.b16 %v1442
        %v1527 = vunpack.c.l.b16 %v1443
        %v1528 = vunpack.c.l.b16 %v1444
        %v1529 = vunpack.c.l.b16 %v1445
        %v1530 = vunpack.c.l.b16 %v1446
        %v1531 = vunpack.c.l.b16 %v1447
        %v1532 = vunpack.c.l.b16 %v1448
        %v1533 = vunpack.c.l.b16 %v1449
        %v1534 = vunpack.c.l.b16 %v1450
        %v1535 = vunpack.c.l.b16 %v1451
        %v1536 = vunpack.c.l.b16 %v1452
        %v1537 = vunpack.c.l.b16 %v1453
        %v1538 = vunpack.c.l.b16 %v1454
        %v1539 = vunpack.c.l.b16 %v1455
        %v1540 = vunpack.c.l.b16 %v1456
        %v1541 = vunpack.c.l.b16 %v1457
        %v1542 = vunpack.c.l.b16 %v1458
        %v1543 = vunpack.c.l.b16 %v1459
        %v1544 = vunpack.c.l.b16 %v1460
        %v1545 = vunpack.c.l.b16 %v1461
        %v1546 = vunpack.c.l.b16 %v1462
        %v1547 = vunpack.c.l.b16 %v1463
        %v1548 = vunpack.c.l.b16 %v1464
        %v1549 = vunpack.c.l.b16 %v1465
        %v1550 = vunpack.c.l.b16 %v1466
        %v1551 = vunpack.c.l.b16 %v1467
        %v1552 = vunpack.c.l.b16 %v1468
        %v1553 = vunpack.c.l.b16 %v1469
        %v1554 = vunpack.c.l.b16 %v1470
        %v1555 = vunpack.c.l.b16 %v1471
        %v1556 = vunpack.c.l.b16 %v1472
        %v1557 = vunpack.c.l.b16 %v1473
        %v1558 = vunpack.c.l.b16 %v1474
        %v1559 = vunpack.c.l.b16 %v1475
        %v1560 = vpack.c.b16 %v1520, %v1519
        %v1561 = vpack.c.b16 %v1522, %v1521
        %v1562 = vpack.c.b16 %v1524, %v1523
        %v1563 = vpack.c.b16 %v1526, %v1525
        %v1564 = vpack.c.b16 %v1528, %v1527
        %v1565 = vpack.c.b16 %v1530, %v1529
        %v1566 = vpack.c.b16 %v1532, %v1531
        %v1567 = vpack.c.b16 %v1534, %v1533
        %v1568 = vpack.c.b16 %v1536, %v1535
        %v1569 = vpack.c.b16 %v1538, %v1537
        %v1570 = vpack.c.b16 %v1540, %v1539
        %v1571 = vpack.c.b16 %v1542, %v1541
        %v1572 = vpack.c.b16 %v1544, %v1543
        %v1573 = vpack.c.b16 %v1546, %v1545
        %v1574 = vpack.c.b16 %v1548, %v1547
        %v1575 = vpack.c.b16 %v1550, %v1549
        %v1576 = vpack.c.b16 %v1552, %v1551
        %v1577 = vpack.c.b16 %v1554, %v1553
        %v1578 = vpack.c.b16 %v1556, %v1555
        %v1579 = vpack.c.b16 %v1558, %v1557
        %v1580 = vpack.c.b16 %v1559, %v1559
        %v1581 = vrot.slane %v1560, 1
        %v1582 = vrot.slane %v1561, 1
        %v1583 = vsel %vm426, %v1581, %v1582
        %v1584 = vrot.slane %v1562, 1
        %v1585 = vsel %vm426, %v1582, %v1584
        %v1586 = vrot.slane %v1563, 1
        %v1587 = vsel %vm426, %v1584, %v1586
        %v1588 = vrot.slane %v1564, 1
        %v1589 = vsel %vm426, %v1586, %v1588
        %v1590 = vrot.slane %v1565, 1
        %v1591 = vsel %vm426, %v1588, %v1590
        %v1592 = vrot.slane %v1566, 1
        %v1593 = vsel %vm426, %v1590, %v1592
        %v1594 = vrot.slane %v1567, 1
        %v1595 = vsel %vm426, %v1592, %v1594
        %v1596 = vrot.slane %v1568, 1
        %v1597 = vsel %vm426, %v1594, %v1596
        %v1598 = vrot.slane %v1569, 1
        %v1599 = vsel %vm426, %v1596, %v1598
        %v1600 = vrot.slane %v1570, 1
        %v1601 = vsel %vm426, %v1598, %v1600
        %v1602 = vrot.slane %v1571, 1
        %v1603 = vsel %vm426, %v1600, %v1602
        %v1604 = vrot.slane %v1572, 1
        %v1605 = vsel %vm426, %v1602, %v1604
        %v1606 = vrot.slane %v1573, 1
        %v1607 = vsel %vm426, %v1604, %v1606
        %v1608 = vrot.slane %v1574, 1
        %v1609 = vsel %vm426, %v1606, %v1608
        %v1610 = vrot.slane %v1575, 1
        %v1611 = vsel %vm426, %v1608, %v1610
        %v1612 = vrot.slane %v1576, 1
        %v1613 = vsel %vm426, %v1610, %v1612
        %v1614 = vrot.slane %v1577, 1
        %v1615 = vsel %vm426, %v1612, %v1614
        %v1616 = vrot.slane %v1578, 1
        %v1617 = vsel %vm426, %v1614, %v1616
        %v1618 = vrot.slane %v1579, 1
        %v1619 = vsel %vm426, %v1616, %v1618
        %v1620 = vrot.slane %v1580, 1
        %v1621 = vsel %vm426, %v1618, %v1620
        %v1623 = vsel %vm468, %v1583, 0
        %v1626 = vsel %vm468, %v1585, 0
        %v1629 = vsel %vm468, %v1587, 0
        %v1632 = vsel %vm468, %v1589, 0
        %v1635 = vsel %vm468, %v1591, 0
        %v1638 = vsel %vm468, %v1593, 0
        %v1641 = vsel %vm468, %v1595, 0
        %v1644 = vsel %vm468, %v1597, 0
        %v1647 = vsel %vm468, %v1599, 0
        %v1650 = vsel %vm468, %v1601, 0
        %v1653 = vsel %vm468, %v1603, 0
        %v1656 = vsel %vm468, %v1605, 0
        %v1659 = vsel %vm468, %v1607, 0
        %v1662 = vsel %vm468, %v1609, 0
        %v1665 = vsel %vm468, %v1611, 0
        %v1668 = vsel %vm468, %v1613, 0
        %v1671 = vsel %vm468, %v1615, 0
        %v1674 = vsel %vm468, %v1617, 0
        %v1677 = vsel %vm468, %v1619, 0
        %v1680 = vsel %vm468, %v1621, 0
        %v1683 = vsel %vm529, %v1477, 0
        %1685 = vmatpush.bf16.msra.mxu0 0
        %1686 = vmatpush.bf16.msra.mxu0 0
        %1687 = vmatpush.bf16.msra.mxu0 0
        %1688 = vmatpush.bf16.msra.mxu0 0
        %1689 = vmatpush.bf16.msra.mxu0 0
        %1690 = vmatpush.bf16.msra.mxu0 0
        %1691 = vmatpush.bf16.msra.mxu0 0
        %1692 = vmatpush.bf16.msra.mxu0 %v1683
        %1693 = vmatmul.bf16.gmra.mxu0 %v1623
        %v1694 = vpop.f32.mrf.mxu0
        %v1695 = vadd.f32 0.0, %v1694
        %v1696 = vpop.f32.mrf.mxu0
        %v1697 = vadd.f32 0.0, %v1696
        %1698 = vmatmul.bf16.gmra.mxu0 %v1626
        %v1699 = vpop.f32.mrf.mxu0
        %v1700 = vadd.f32 0.0, %v1699
        %v1701 = vpop.f32.mrf.mxu0
        %v1702 = vadd.f32 0.0, %v1701
        %1703 = vmatmul.bf16.gmra.mxu0 %v1629
        %v1704 = vpop.f32.mrf.mxu0
        %v1705 = vadd.f32 0.0, %v1704
        %v1706 = vpop.f32.mrf.mxu0
        %v1707 = vadd.f32 0.0, %v1706
        %1708 = vmatmul.bf16.gmra.mxu0 %v1632
        %v1709 = vpop.f32.mrf.mxu0
        %v1710 = vadd.f32 0.0, %v1709
        %v1711 = vpop.f32.mrf.mxu0
        %v1712 = vadd.f32 0.0, %v1711
        %1713 = vmatmul.bf16.gmra.mxu0 %v1635
        %v1714 = vpop.f32.mrf.mxu0
        %v1715 = vadd.f32 0.0, %v1714
        %v1716 = vpop.f32.mrf.mxu0
        %v1717 = vadd.f32 0.0, %v1716
        %1718 = vmatmul.bf16.gmra.mxu0 %v1638
        %v1719 = vpop.f32.mrf.mxu0
        %v1720 = vadd.f32 0.0, %v1719
        %v1721 = vpop.f32.mrf.mxu0
        %v1722 = vadd.f32 0.0, %v1721
        %1723 = vmatmul.bf16.gmra.mxu0 %v1641
        %v1724 = vpop.f32.mrf.mxu0
        %v1725 = vadd.f32 0.0, %v1724
        %v1726 = vpop.f32.mrf.mxu0
        %v1727 = vadd.f32 0.0, %v1726
        %1728 = vmatmul.bf16.gmra.mxu0 %v1644
        %v1729 = vpop.f32.mrf.mxu0
        %v1730 = vadd.f32 0.0, %v1729
        %v1731 = vpop.f32.mrf.mxu0
        %v1732 = vadd.f32 0.0, %v1731
        %1733 = vmatmul.bf16.gmra.mxu0 %v1647
        %v1734 = vpop.f32.mrf.mxu0
        %v1735 = vadd.f32 0.0, %v1734
        %v1736 = vpop.f32.mrf.mxu0
        %v1737 = vadd.f32 0.0, %v1736
        %1738 = vmatmul.bf16.gmra.mxu0 %v1650
        %v1739 = vpop.f32.mrf.mxu0
        %v1740 = vadd.f32 0.0, %v1739
        %v1741 = vpop.f32.mrf.mxu0
        %v1742 = vadd.f32 0.0, %v1741
        %1743 = vmatmul.bf16.gmra.mxu0 %v1653
        %v1744 = vpop.f32.mrf.mxu0
        %v1745 = vadd.f32 0.0, %v1744
        %v1746 = vpop.f32.mrf.mxu0
        %v1747 = vadd.f32 0.0, %v1746
        %1748 = vmatmul.bf16.gmra.mxu0 %v1656
        %v1749 = vpop.f32.mrf.mxu0
        %v1750 = vadd.f32 0.0, %v1749
        %v1751 = vpop.f32.mrf.mxu0
        %v1752 = vadd.f32 0.0, %v1751
        %1753 = vmatmul.bf16.gmra.mxu0 %v1659
        %v1754 = vpop.f32.mrf.mxu0
        %v1755 = vadd.f32 0.0, %v1754
        %v1756 = vpop.f32.mrf.mxu0
        %v1757 = vadd.f32 0.0, %v1756
        %1758 = vmatmul.bf16.gmra.mxu0 %v1662
        %v1759 = vpop.f32.mrf.mxu0
        %v1760 = vadd.f32 0.0, %v1759
        %v1761 = vpop.f32.mrf.mxu0
        %v1762 = vadd.f32 0.0, %v1761
        %1763 = vmatmul.bf16.gmra.mxu0 %v1665
        %v1764 = vpop.f32.mrf.mxu0
        %v1765 = vadd.f32 0.0, %v1764
        %v1766 = vpop.f32.mrf.mxu0
        %v1767 = vadd.f32 0.0, %v1766
        %1768 = vmatmul.bf16.gmra.mxu0 %v1668
        %v1769 = vpop.f32.mrf.mxu0
        %v1770 = vadd.f32 0.0, %v1769
        %v1771 = vpop.f32.mrf.mxu0
        %v1772 = vadd.f32 0.0, %v1771
        %1773 = vmatmul.bf16.gmra.mxu0 %v1671
        %v1774 = vpop.f32.mrf.mxu0
        %v1775 = vadd.f32 0.0, %v1774
        %v1776 = vpop.f32.mrf.mxu0
        %v1777 = vadd.f32 0.0, %v1776
        %1778 = vmatmul.bf16.gmra.mxu0 %v1674
        %v1779 = vpop.f32.mrf.mxu0
        %v1780 = vadd.f32 0.0, %v1779
        %v1781 = vpop.f32.mrf.mxu0
        %v1782 = vadd.f32 0.0, %v1781
        %1783 = vmatmul.bf16.gmra.mxu0 %v1677
        %v1784 = vpop.f32.mrf.mxu0
        %v1785 = vadd.f32 0.0, %v1784
        %v1786 = vpop.f32.mrf.mxu0
        %v1787 = vadd.f32 0.0, %v1786
        %1788 = vmatmul.bf16.gmra.mxu0 %v1680
        %v1789 = vpop.f32.mrf.mxu0
        %v1790 = vadd.f32 0.0, %v1789
        %v1791 = vpop.f32.mrf.mxu0
        %v1792 = vadd.f32 0.0, %v1791
        %1793 = vdwg.mxu0
        %v1794 = vadd.f32 %v1395, %v1695
        %v1795 = vadd.f32 %v1396, %v1697
        %v1796 = vadd.f32 %v1397, %v1700
        %v1797 = vadd.f32 %v1398, %v1702
        %v1798 = vadd.f32 %v1399, %v1705
        %v1799 = vadd.f32 %v1400, %v1707
        %v1800 = vadd.f32 %v1401, %v1710
        %v1801 = vadd.f32 %v1402, %v1712
        %v1802 = vadd.f32 %v1403, %v1715
        %v1803 = vadd.f32 %v1404, %v1717
        %v1804 = vadd.f32 %v1405, %v1720
        %v1805 = vadd.f32 %v1406, %v1722
        %v1806 = vadd.f32 %v1407, %v1725
        %v1807 = vadd.f32 %v1408, %v1727
        %v1808 = vadd.f32 %v1409, %v1730
        %v1809 = vadd.f32 %v1410, %v1732
        %v1810 = vadd.f32 %v1411, %v1735
        %v1811 = vadd.f32 %v1412, %v1737
        %v1812 = vadd.f32 %v1413, %v1740
        %v1813 = vadd.f32 %v1414, %v1742
        %v1814 = vadd.f32 %v1415, %v1745
        %v1815 = vadd.f32 %v1416, %v1747
        %v1816 = vadd.f32 %v1417, %v1750
        %v1817 = vadd.f32 %v1418, %v1752
        %v1818 = vadd.f32 %v1419, %v1755
        %v1819 = vadd.f32 %v1420, %v1757
        %v1820 = vadd.f32 %v1421, %v1760
        %v1821 = vadd.f32 %v1422, %v1762
        %v1822 = vadd.f32 %v1423, %v1765
        %v1823 = vadd.f32 %v1424, %v1767
        %v1824 = vadd.f32 %v1425, %v1770
        %v1825 = vadd.f32 %v1426, %v1772
        %v1826 = vadd.f32 %v1427, %v1775
        %v1827 = vadd.f32 %v1428, %v1777
        %v1828 = vadd.f32 %v1429, %v1780
        %v1829 = vadd.f32 %v1430, %v1782
        %v1830 = vadd.f32 %v1431, %v1785
        %v1831 = vadd.f32 %v1432, %v1787
        %v1832 = vadd.f32 %v1433, %v1790
        %v1833 = vadd.f32 %v1434, %v1792
        %v1834 = vld [vmem:[%s271 + $0x14] sm:$0xc]
        %v1835 = vld [vmem:[%s271 + $0xb4] sm:$0x3]
        %s1836 = scalar_lea.vmem %s275, 10
        %v1837 = vld [vmem:[%s1836] sm:$0x3]
        %v1840 = vunpack.c.l.b16 %v1834
        %v1841 = vunpack.c.l.b16 %v1835
        %v1842 = vpack.c.b16 %v1520, %v1840
        %v1843 = vpack.c.b16 %v1841, %v1841
        %v1844 = vrot.slane %v1842, 2
        %v1845 = vrot.slane %v1561, 2
        %v1846 = vsel %vm827, %v1844, %v1845
        %v1847 = vrot.slane %v1562, 2
        %v1848 = vsel %vm827, %v1845, %v1847
        %v1849 = vrot.slane %v1563, 2
        %v1850 = vsel %vm827, %v1847, %v1849
        %v1851 = vrot.slane %v1564, 2
        %v1852 = vsel %vm827, %v1849, %v1851
        %v1853 = vrot.slane %v1565, 2
        %v1854 = vsel %vm827, %v1851, %v1853
        %v1855 = vrot.slane %v1566, 2
        %v1856 = vsel %vm827, %v1853, %v1855
        %v1857 = vrot.slane %v1567, 2
        %v1858 = vsel %vm827, %v1855, %v1857
        %v1859 = vrot.slane %v1568, 2
        %v1860 = vsel %vm827, %v1857, %v1859
        %v1861 = vrot.slane %v1569, 2
        %v1862 = vsel %vm827, %v1859, %v1861
        %v1863 = vrot.slane %v1570, 2
        %v1864 = vsel %vm827, %v1861, %v1863
        %v1865 = vrot.slane %v1571, 2
        %v1866 = vsel %vm827, %v1863, %v1865
        %v1867 = vrot.slane %v1572, 2
        %v1868 = vsel %vm827, %v1865, %v1867
        %v1869 = vrot.slane %v1573, 2
        %v1870 = vsel %vm827, %v1867, %v1869
        %v1871 = vrot.slane %v1574, 2
        %v1872 = vsel %vm827, %v1869, %v1871
        %v1873 = vrot.slane %v1575, 2
        %v1874 = vsel %vm827, %v1871, %v1873
        %v1875 = vrot.slane %v1576, 2
        %v1876 = vsel %vm827, %v1873, %v1875
        %v1877 = vrot.slane %v1577, 2
        %v1878 = vsel %vm827, %v1875, %v1877
        %v1879 = vrot.slane %v1578, 2
        %v1880 = vsel %vm827, %v1877, %v1879
        %v1881 = vrot.slane %v1579, 2
        %v1882 = vsel %vm827, %v1879, %v1881
        %v1883 = vrot.slane %v1843, 2
        %v1884 = vsel %vm827, %v1881, %v1883
        %v1886 = vsel %vm468, %v1846, 0
        %v1889 = vsel %vm468, %v1848, 0
        %v1892 = vsel %vm468, %v1850, 0
        %v1895 = vsel %vm468, %v1852, 0
        %v1898 = vsel %vm468, %v1854, 0
        %v1901 = vsel %vm468, %v1856, 0
        %v1904 = vsel %vm468, %v1858, 0
        %v1907 = vsel %vm468, %v1860, 0
        %v1910 = vsel %vm468, %v1862, 0
        %v1913 = vsel %vm468, %v1864, 0
        %v1916 = vsel %vm468, %v1866, 0
        %v1919 = vsel %vm468, %v1868, 0
        %v1922 = vsel %vm468, %v1870, 0
        %v1925 = vsel %vm468, %v1872, 0
        %v1928 = vsel %vm468, %v1874, 0
        %v1931 = vsel %vm468, %v1876, 0
        %v1934 = vsel %vm468, %v1878, 0
        %v1937 = vsel %vm468, %v1880, 0
        %v1940 = vsel %vm468, %v1882, 0
        %v1943 = vsel %vm468, %v1884, 0
        %v1946 = vsel %vm529, %v1837, 0
        %1948 = vmatpush.bf16.msra.mxu0 0
        %1949 = vmatpush.bf16.msra.mxu0 0
        %1950 = vmatpush.bf16.msra.mxu0 0
        %1951 = vmatpush.bf16.msra.mxu0 0
        %1952 = vmatpush.bf16.msra.mxu0 0
        %1953 = vmatpush.bf16.msra.mxu0 0
        %1954 = vmatpush.bf16.msra.mxu0 0
        %1955 = vmatpush.bf16.msra.mxu0 %v1946
        %1956 = vmatmul.bf16.gmra.mxu0 %v1886
        %v1957 = vpop.f32.mrf.mxu0
        %v1958 = vadd.f32 0.0, %v1957
        %v1959 = vpop.f32.mrf.mxu0
        %v1960 = vadd.f32 0.0, %v1959
        %1961 = vmatmul.bf16.gmra.mxu0 %v1889
        %v1962 = vpop.f32.mrf.mxu0
        %v1963 = vadd.f32 0.0, %v1962
        %v1964 = vpop.f32.mrf.mxu0
        %v1965 = vadd.f32 0.0, %v1964
        %1966 = vmatmul.bf16.gmra.mxu0 %v1892
        %v1967 = vpop.f32.mrf.mxu0
        %v1968 = vadd.f32 0.0, %v1967
        %v1969 = vpop.f32.mrf.mxu0
        %v1970 = vadd.f32 0.0, %v1969
        %1971 = vmatmul.bf16.gmra.mxu0 %v1895
        %v1972 = vpop.f32.mrf.mxu0
        %v1973 = vadd.f32 0.0, %v1972
        %v1974 = vpop.f32.mrf.mxu0
        %v1975 = vadd.f32 0.0, %v1974
        %1976 = vmatmul.bf16.gmra.mxu0 %v1898
        %v1977 = vpop.f32.mrf.mxu0
        %v1978 = vadd.f32 0.0, %v1977
        %v1979 = vpop.f32.mrf.mxu0
        %v1980 = vadd.f32 0.0, %v1979
        %1981 = vmatmul.bf16.gmra.mxu0 %v1901
        %v1982 = vpop.f32.mrf.mxu0
        %v1983 = vadd.f32 0.0, %v1982
        %v1984 = vpop.f32.mrf.mxu0
        %v1985 = vadd.f32 0.0, %v1984
        %1986 = vmatmul.bf16.gmra.mxu0 %v1904
        %v1987 = vpop.f32.mrf.mxu0
        %v1988 = vadd.f32 0.0, %v1987
        %v1989 = vpop.f32.mrf.mxu0
        %v1990 = vadd.f32 0.0, %v1989
        %1991 = vmatmul.bf16.gmra.mxu0 %v1907
        %v1992 = vpop.f32.mrf.mxu0
        %v1993 = vadd.f32 0.0, %v1992
        %v1994 = vpop.f32.mrf.mxu0
        %v1995 = vadd.f32 0.0, %v1994
        %1996 = vmatmul.bf16.gmra.mxu0 %v1910
        %v1997 = vpop.f32.mrf.mxu0
        %v1998 = vadd.f32 0.0, %v1997
        %v1999 = vpop.f32.mrf.mxu0
        %v2000 = vadd.f32 0.0, %v1999
        %2001 = vmatmul.bf16.gmra.mxu0 %v1913
        %v2002 = vpop.f32.mrf.mxu0
        %v2003 = vadd.f32 0.0, %v2002
        %v2004 = vpop.f32.mrf.mxu0
        %v2005 = vadd.f32 0.0, %v2004
        %2006 = vmatmul.bf16.gmra.mxu0 %v1916
        %v2007 = vpop.f32.mrf.mxu0
        %v2008 = vadd.f32 0.0, %v2007
        %v2009 = vpop.f32.mrf.mxu0
        %v2010 = vadd.f32 0.0, %v2009
        %2011 = vmatmul.bf16.gmra.mxu0 %v1919
        %v2012 = vpop.f32.mrf.mxu0
        %v2013 = vadd.f32 0.0, %v2012
        %v2014 = vpop.f32.mrf.mxu0
        %v2015 = vadd.f32 0.0, %v2014
        %2016 = vmatmul.bf16.gmra.mxu0 %v1922
        %v2017 = vpop.f32.mrf.mxu0
        %v2018 = vadd.f32 0.0, %v2017
        %v2019 = vpop.f32.mrf.mxu0
        %v2020 = vadd.f32 0.0, %v2019
        %2021 = vmatmul.bf16.gmra.mxu0 %v1925
        %v2022 = vpop.f32.mrf.mxu0
        %v2023 = vadd.f32 0.0, %v2022
        %v2024 = vpop.f32.mrf.mxu0
        %v2025 = vadd.f32 0.0, %v2024
        %2026 = vmatmul.bf16.gmra.mxu0 %v1928
        %v2027 = vpop.f32.mrf.mxu0
        %v2028 = vadd.f32 0.0, %v2027
        %v2029 = vpop.f32.mrf.mxu0
        %v2030 = vadd.f32 0.0, %v2029
        %2031 = vmatmul.bf16.gmra.mxu0 %v1931
        %v2032 = vpop.f32.mrf.mxu0
        %v2033 = vadd.f32 0.0, %v2032
        %v2034 = vpop.f32.mrf.mxu0
        %v2035 = vadd.f32 0.0, %v2034
        %2036 = vmatmul.bf16.gmra.mxu0 %v1934
        %v2037 = vpop.f32.mrf.mxu0
        %v2038 = vadd.f32 0.0, %v2037
        %v2039 = vpop.f32.mrf.mxu0
        %v2040 = vadd.f32 0.0, %v2039
        %2041 = vmatmul.bf16.gmra.mxu0 %v1937
        %v2042 = vpop.f32.mrf.mxu0
        %v2043 = vadd.f32 0.0, %v2042
        %v2044 = vpop.f32.mrf.mxu0
        %v2045 = vadd.f32 0.0, %v2044
        %2046 = vmatmul.bf16.gmra.mxu0 %v1940
        %v2047 = vpop.f32.mrf.mxu0
        %v2048 = vadd.f32 0.0, %v2047
        %v2049 = vpop.f32.mrf.mxu0
        %v2050 = vadd.f32 0.0, %v2049
        %2051 = vmatmul.bf16.gmra.mxu0 %v1943
        %v2052 = vpop.f32.mrf.mxu0
        %v2053 = vadd.f32 0.0, %v2052
        %v2054 = vpop.f32.mrf.mxu0
        %v2055 = vadd.f32 0.0, %v2054
        %2056 = vdwg.mxu0
        %v2057 = vadd.f32 %v1794, %v1958
        %v2058 = vadd.f32 %v1795, %v1960
        %v2059 = vadd.f32 %v1796, %v1963
        %v2060 = vadd.f32 %v1797, %v1965
        %v2061 = vadd.f32 %v1798, %v1968
        %v2062 = vadd.f32 %v1799, %v1970
        %v2063 = vadd.f32 %v1800, %v1973
        %v2064 = vadd.f32 %v1801, %v1975
        %v2065 = vadd.f32 %v1802, %v1978
        %v2066 = vadd.f32 %v1803, %v1980
        %v2067 = vadd.f32 %v1804, %v1983
        %v2068 = vadd.f32 %v1805, %v1985
        %v2069 = vadd.f32 %v1806, %v1988
        %v2070 = vadd.f32 %v1807, %v1990
        %v2071 = vadd.f32 %v1808, %v1993
        %v2072 = vadd.f32 %v1809, %v1995
        %v2073 = vadd.f32 %v1810, %v1998
        %v2074 = vadd.f32 %v1811, %v2000
        %v2075 = vadd.f32 %v1812, %v2003
        %v2076 = vadd.f32 %v1813, %v2005
        %v2077 = vadd.f32 %v1814, %v2008
        %v2078 = vadd.f32 %v1815, %v2010
        %v2079 = vadd.f32 %v1816, %v2013
        %v2080 = vadd.f32 %v1817, %v2015
        %v2081 = vadd.f32 %v1818, %v2018
        %v2082 = vadd.f32 %v1819, %v2020
        %v2083 = vadd.f32 %v1820, %v2023
        %v2084 = vadd.f32 %v1821, %v2025
        %v2085 = vadd.f32 %v1822, %v2028
        %v2086 = vadd.f32 %v1823, %v2030
        %v2087 = vadd.f32 %v1824, %v2033
        %v2088 = vadd.f32 %v1825, %v2035
        %v2089 = vadd.f32 %v1826, %v2038
        %v2090 = vadd.f32 %v1827, %v2040
        %v2091 = vadd.f32 %v1828, %v2043
        %v2092 = vadd.f32 %v1829, %v2045
        %v2093 = vadd.f32 %v1830, %v2048
        %v2094 = vadd.f32 %v1831, %v2050
        %v2095 = vadd.f32 %v1832, %v2053
        %v2096 = vadd.f32 %v1833, %v2055
        %v2097 = vld [vmem:[%s271 + $0x28] sm:$0xf]
        %v2098 = vld [vmem:[%s271 + $0x2c] sm:$0xf]
        %v2099 = vld [vmem:[%s271 + $0x30] sm:$0xf]
        %v2100 = vld [vmem:[%s271 + $0x34] sm:$0xf]
        %v2101 = vld [vmem:[%s271 + $0x38] sm:$0xf]
        %v2102 = vld [vmem:[%s271 + $0x3c] sm:$0xf]
        %v2103 = vld [vmem:[%s271 + $0x40] sm:$0xf]
        %v2104 = vld [vmem:[%s271 + $0x44] sm:$0xf]
        %v2105 = vld [vmem:[%s271 + $0x48] sm:$0xf]
        %v2106 = vld [vmem:[%s271 + $0x4c] sm:$0xf]
        %v2107 = vld [vmem:[%s271 + $0x50] sm:$0xf]
        %v2108 = vld [vmem:[%s271 + $0x54] sm:$0xf]
        %v2109 = vld [vmem:[%s271 + $0x58] sm:$0xf]
        %v2110 = vld [vmem:[%s271 + $0x5c] sm:$0xf]
        %v2111 = vld [vmem:[%s271 + $0x60] sm:$0xf]
        %v2112 = vld [vmem:[%s271 + $0x64] sm:$0xf]
        %v2113 = vld [vmem:[%s271 + $0x68] sm:$0xf]
        %v2114 = vld [vmem:[%s271 + $0x6c] sm:$0xf]
        %v2115 = vld [vmem:[%s271 + $0x70] sm:$0xf]
        %v2116 = vld [vmem:[%s271 + $0x74] sm:$0xf]
        %v2117 = vld [vmem:[%s271 + $0x78] sm:$0xf]
        %v2118 = vld [vmem:[%s271 + $0x7c] sm:$0xf]
        %v2119 = vld [vmem:[%s271 + $0x80] sm:$0xf]
        %v2120 = vld [vmem:[%s271 + $0x84] sm:$0xf]
        %v2121 = vld [vmem:[%s271 + $0x88] sm:$0xf]
        %v2122 = vld [vmem:[%s271 + $0x8c] sm:$0xf]
        %v2123 = vld [vmem:[%s271 + $0x90] sm:$0xf]
        %v2124 = vld [vmem:[%s271 + $0x94] sm:$0xf]
        %v2125 = vld [vmem:[%s271 + $0x98] sm:$0xf]
        %v2126 = vld [vmem:[%s271 + $0x9c] sm:$0xf]
        %v2127 = vld [vmem:[%s271 + $0xa0] sm:$0xf]
        %v2128 = vld [vmem:[%s271 + $0xa4] sm:$0xf]
        %v2129 = vld [vmem:[%s271 + $0xa8] sm:$0xf]
        %v2130 = vld [vmem:[%s271 + $0xac] sm:$0xf]
        %v2131 = vld [vmem:[%s271 + $0xb0] sm:$0xf]
        %v2132 = vld [vmem:[%s271 + $0xb4] sm:$0xf]
        %v2133 = vld [vmem:[%s271 + $0xb8] sm:$0xf]
        %v2134 = vld [vmem:[%s271 + $0xbc] sm:$0xf]
        %v2135 = vld [vmem:[%s271 + $0xc0] sm:$0xf]
        %v2136 = vld [vmem:[%s271 + $0xc4] sm:$0xf]
        %s2137 = scalar_lea.vmem %s275, 12
        %v2138 = vld [vmem:[%s2137] sm:$0x3]
        %v2179 = vunpack.c.l.b16 %v2097
        %v2180 = vunpack.c.l.b16 %v2098
        %v2181 = vunpack.c.l.b16 %v2099
        %v2182 = vunpack.c.l.b16 %v2100
        %v2183 = vunpack.c.l.b16 %v2101
        %v2184 = vunpack.c.l.b16 %v2102
        %v2185 = vunpack.c.l.b16 %v2103
        %v2186 = vunpack.c.l.b16 %v2104
        %v2187 = vunpack.c.l.b16 %v2105
        %v2188 = vunpack.c.l.b16 %v2106
        %v2189 = vunpack.c.l.b16 %v2107
        %v2190 = vunpack.c.l.b16 %v2108
        %v2191 = vunpack.c.l.b16 %v2109
        %v2192 = vunpack.c.l.b16 %v2110
        %v2193 = vunpack.c.l.b16 %v2111
        %v2194 = vunpack.c.l.b16 %v2112
        %v2195 = vunpack.c.l.b16 %v2113
        %v2196 = vunpack.c.l.b16 %v2114
        %v2197 = vunpack.c.l.b16 %v2115
        %v2198 = vunpack.c.l.b16 %v2116
        %v2199 = vunpack.c.l.b16 %v2117
        %v2200 = vunpack.c.l.b16 %v2118
        %v2201 = vunpack.c.l.b16 %v2119
        %v2202 = vunpack.c.l.b16 %v2120
        %v2203 = vunpack.c.l.b16 %v2121
        %v2204 = vunpack.c.l.b16 %v2122
        %v2205 = vunpack.c.l.b16 %v2123
        %v2206 = vunpack.c.l.b16 %v2124
        %v2207 = vunpack.c.l.b16 %v2125
        %v2208 = vunpack.c.l.b16 %v2126
        %v2209 = vunpack.c.l.b16 %v2127
        %v2210 = vunpack.c.l.b16 %v2128
        %v2211 = vunpack.c.l.b16 %v2129
        %v2212 = vunpack.c.l.b16 %v2130
        %v2213 = vunpack.c.l.b16 %v2131
        %v2214 = vunpack.c.l.b16 %v2132
        %v2215 = vunpack.c.l.b16 %v2133
        %v2216 = vunpack.c.l.b16 %v2134
        %v2217 = vunpack.c.l.b16 %v2135
        %v2218 = vunpack.c.l.b16 %v2136
        %v2219 = vpack.c.b16 %v2180, %v2179
        %v2220 = vpack.c.b16 %v2182, %v2181
        %v2221 = vpack.c.b16 %v2184, %v2183
        %v2222 = vpack.c.b16 %v2186, %v2185
        %v2223 = vpack.c.b16 %v2188, %v2187
        %v2224 = vpack.c.b16 %v2190, %v2189
        %v2225 = vpack.c.b16 %v2192, %v2191
        %v2226 = vpack.c.b16 %v2194, %v2193
        %v2227 = vpack.c.b16 %v2196, %v2195
        %v2228 = vpack.c.b16 %v2198, %v2197
        %v2229 = vpack.c.b16 %v2200, %v2199
        %v2230 = vpack.c.b16 %v2202, %v2201
        %v2231 = vpack.c.b16 %v2204, %v2203
        %v2232 = vpack.c.b16 %v2206, %v2205
        %v2233 = vpack.c.b16 %v2208, %v2207
        %v2234 = vpack.c.b16 %v2210, %v2209
        %v2235 = vpack.c.b16 %v2212, %v2211
        %v2236 = vpack.c.b16 %v2214, %v2213
        %v2237 = vpack.c.b16 %v2216, %v2215
        %v2238 = vpack.c.b16 %v2218, %v2217
        %v2240 = vsel %vm468, %v2219, 0
        %v2243 = vsel %vm468, %v2220, 0
        %v2246 = vsel %vm468, %v2221, 0
        %v2249 = vsel %vm468, %v2222, 0
        %v2252 = vsel %vm468, %v2223, 0
        %v2255 = vsel %vm468, %v2224, 0
        %v2258 = vsel %vm468, %v2225, 0
        %v2261 = vsel %vm468, %v2226, 0
        %v2264 = vsel %vm468, %v2227, 0
        %v2267 = vsel %vm468, %v2228, 0
        %v2270 = vsel %vm468, %v2229, 0
        %v2273 = vsel %vm468, %v2230, 0
        %v2276 = vsel %vm468, %v2231, 0
        %v2279 = vsel %vm468, %v2232, 0
        %v2282 = vsel %vm468, %v2233, 0
        %v2285 = vsel %vm468, %v2234, 0
        %v2288 = vsel %vm468, %v2235, 0
        %v2291 = vsel %vm468, %v2236, 0
        %v2294 = vsel %vm468, %v2237, 0
        %v2297 = vsel %vm468, %v2238, 0
        %v2300 = vsel %vm529, %v2138, 0
        %2302 = vmatpush.bf16.msra.mxu0 0
        %2303 = vmatpush.bf16.msra.mxu0 0
        %2304 = vmatpush.bf16.msra.mxu0 0
        %2305 = vmatpush.bf16.msra.mxu0 0
        %2306 = vmatpush.bf16.msra.mxu0 0
        %2307 = vmatpush.bf16.msra.mxu0 0
        %2308 = vmatpush.bf16.msra.mxu0 0
        %2309 = vmatpush.bf16.msra.mxu0 %v2300
        %2310 = vmatmul.bf16.gmra.mxu0 %v2240
        %v2311 = vpop.f32.mrf.mxu0
        %v2312 = vadd.f32 0.0, %v2311
        %v2313 = vpop.f32.mrf.mxu0
        %v2314 = vadd.f32 0.0, %v2313
        %2315 = vmatmul.bf16.gmra.mxu0 %v2243
        %v2316 = vpop.f32.mrf.mxu0
        %v2317 = vadd.f32 0.0, %v2316
        %v2318 = vpop.f32.mrf.mxu0
        %v2319 = vadd.f32 0.0, %v2318
        %2320 = vmatmul.bf16.gmra.mxu0 %v2246
        %v2321 = vpop.f32.mrf.mxu0
        %v2322 = vadd.f32 0.0, %v2321
        %v2323 = vpop.f32.mrf.mxu0
        %v2324 = vadd.f32 0.0, %v2323
        %2325 = vmatmul.bf16.gmra.mxu0 %v2249
        %v2326 = vpop.f32.mrf.mxu0
        %v2327 = vadd.f32 0.0, %v2326
        %v2328 = vpop.f32.mrf.mxu0
        %v2329 = vadd.f32 0.0, %v2328
        %2330 = vmatmul.bf16.gmra.mxu0 %v2252
        %v2331 = vpop.f32.mrf.mxu0
        %v2332 = vadd.f32 0.0, %v2331
        %v2333 = vpop.f32.mrf.mxu0
        %v2334 = vadd.f32 0.0, %v2333
        %2335 = vmatmul.bf16.gmra.mxu0 %v2255
        %v2336 = vpop.f32.mrf.mxu0
        %v2337 = vadd.f32 0.0, %v2336
        %v2338 = vpop.f32.mrf.mxu0
        %v2339 = vadd.f32 0.0, %v2338
        %2340 = vmatmul.bf16.gmra.mxu0 %v2258
        %v2341 = vpop.f32.mrf.mxu0
        %v2342 = vadd.f32 0.0, %v2341
        %v2343 = vpop.f32.mrf.mxu0
        %v2344 = vadd.f32 0.0, %v2343
        %2345 = vmatmul.bf16.gmra.mxu0 %v2261
        %v2346 = vpop.f32.mrf.mxu0
        %v2347 = vadd.f32 0.0, %v2346
        %v2348 = vpop.f32.mrf.mxu0
        %v2349 = vadd.f32 0.0, %v2348
        %2350 = vmatmul.bf16.gmra.mxu0 %v2264
        %v2351 = vpop.f32.mrf.mxu0
        %v2352 = vadd.f32 0.0, %v2351
        %v2353 = vpop.f32.mrf.mxu0
        %v2354 = vadd.f32 0.0, %v2353
        %2355 = vmatmul.bf16.gmra.mxu0 %v2267
        %v2356 = vpop.f32.mrf.mxu0
        %v2357 = vadd.f32 0.0, %v2356
        %v2358 = vpop.f32.mrf.mxu0
        %v2359 = vadd.f32 0.0, %v2358
        %2360 = vmatmul.bf16.gmra.mxu0 %v2270
        %v2361 = vpop.f32.mrf.mxu0
        %v2362 = vadd.f32 0.0, %v2361
        %v2363 = vpop.f32.mrf.mxu0
        %v2364 = vadd.f32 0.0, %v2363
        %2365 = vmatmul.bf16.gmra.mxu0 %v2273
        %v2366 = vpop.f32.mrf.mxu0
        %v2367 = vadd.f32 0.0, %v2366
        %v2368 = vpop.f32.mrf.mxu0
        %v2369 = vadd.f32 0.0, %v2368
        %2370 = vmatmul.bf16.gmra.mxu0 %v2276
        %v2371 = vpop.f32.mrf.mxu0
        %v2372 = vadd.f32 0.0, %v2371
        %v2373 = vpop.f32.mrf.mxu0
        %v2374 = vadd.f32 0.0, %v2373
        %2375 = vmatmul.bf16.gmra.mxu0 %v2279
        %v2376 = vpop.f32.mrf.mxu0
        %v2377 = vadd.f32 0.0, %v2376
        %v2378 = vpop.f32.mrf.mxu0
        %v2379 = vadd.f32 0.0, %v2378
        %2380 = vmatmul.bf16.gmra.mxu0 %v2282
        %v2381 = vpop.f32.mrf.mxu0
        %v2382 = vadd.f32 0.0, %v2381
        %v2383 = vpop.f32.mrf.mxu0
        %v2384 = vadd.f32 0.0, %v2383
        %2385 = vmatmul.bf16.gmra.mxu0 %v2285
        %v2386 = vpop.f32.mrf.mxu0
        %v2387 = vadd.f32 0.0, %v2386
        %v2388 = vpop.f32.mrf.mxu0
        %v2389 = vadd.f32 0.0, %v2388
        %2390 = vmatmul.bf16.gmra.mxu0 %v2288
        %v2391 = vpop.f32.mrf.mxu0
        %v2392 = vadd.f32 0.0, %v2391
        %v2393 = vpop.f32.mrf.mxu0
        %v2394 = vadd.f32 0.0, %v2393
        %2395 = vmatmul.bf16.gmra.mxu0 %v2291
        %v2396 = vpop.f32.mrf.mxu0
        %v2397 = vadd.f32 0.0, %v2396
        %v2398 = vpop.f32.mrf.mxu0
        %v2399 = vadd.f32 0.0, %v2398
        %2400 = vmatmul.bf16.gmra.mxu0 %v2294
        %v2401 = vpop.f32.mrf.mxu0
        %v2402 = vadd.f32 0.0, %v2401
        %v2403 = vpop.f32.mrf.mxu0
        %v2404 = vadd.f32 0.0, %v2403
        %2405 = vmatmul.bf16.gmra.mxu0 %v2297
        %v2406 = vpop.f32.mrf.mxu0
        %v2407 = vadd.f32 0.0, %v2406
        %v2408 = vpop.f32.mrf.mxu0
        %v2409 = vadd.f32 0.0, %v2408
        %2410 = vdwg.mxu0
        %v2411 = vadd.f32 %v2057, %v2312
        %v2412 = vadd.f32 %v2058, %v2314
        %v2413 = vadd.f32 %v2059, %v2317
        %v2414 = vadd.f32 %v2060, %v2319
        %v2415 = vadd.f32 %v2061, %v2322
        %v2416 = vadd.f32 %v2062, %v2324
        %v2417 = vadd.f32 %v2063, %v2327
        %v2418 = vadd.f32 %v2064, %v2329
        %v2419 = vadd.f32 %v2065, %v2332
        %v2420 = vadd.f32 %v2066, %v2334
        %v2421 = vadd.f32 %v2067, %v2337
        %v2422 = vadd.f32 %v2068, %v2339
        %v2423 = vadd.f32 %v2069, %v2342
        %v2424 = vadd.f32 %v2070, %v2344
        %v2425 = vadd.f32 %v2071, %v2347
        %v2426 = vadd.f32 %v2072, %v2349
        %v2427 = vadd.f32 %v2073, %v2352
        %v2428 = vadd.f32 %v2074, %v2354
        %v2429 = vadd.f32 %v2075, %v2357
        %v2430 = vadd.f32 %v2076, %v2359
        %v2431 = vadd.f32 %v2077, %v2362
        %v2432 = vadd.f32 %v2078, %v2364
        %v2433 = vadd.f32 %v2079, %v2367
        %v2434 = vadd.f32 %v2080, %v2369
        %v2435 = vadd.f32 %v2081, %v2372
        %v2436 = vadd.f32 %v2082, %v2374
        %v2437 = vadd.f32 %v2083, %v2377
        %v2438 = vadd.f32 %v2084, %v2379
        %v2439 = vadd.f32 %v2085, %v2382
        %v2440 = vadd.f32 %v2086, %v2384
        %v2441 = vadd.f32 %v2087, %v2387
        %v2442 = vadd.f32 %v2088, %v2389
        %v2443 = vadd.f32 %v2089, %v2392
        %v2444 = vadd.f32 %v2090, %v2394
        %v2445 = vadd.f32 %v2091, %v2397
        %v2446 = vadd.f32 %v2092, %v2399
        %v2447 = vadd.f32 %v2093, %v2402
        %v2448 = vadd.f32 %v2094, %v2404
        %v2449 = vadd.f32 %v2095, %v2407
        %v2450 = vadd.f32 %v2096, %v2409
        %v2451 = vld [vmem:[%s271 + $0x28] sm:$0xe]
        %v2452 = vld [vmem:[%s271 + $0x2c] sm:$0xf]
        %v2453 = vld [vmem:[%s271 + $0x30] sm:$0xf]
        %v2454 = vld [vmem:[%s271 + $0x34] sm:$0xf]
        %v2455 = vld [vmem:[%s271 + $0x38] sm:$0xf]
        %v2456 = vld [vmem:[%s271 + $0x3c] sm:$0xf]
        %v2457 = vld [vmem:[%s271 + $0x40] sm:$0xf]
        %v2458 = vld [vmem:[%s271 + $0x44] sm:$0xf]
        %v2459 = vld [vmem:[%s271 + $0x48] sm:$0xf]
        %v2460 = vld [vmem:[%s271 + $0x4c] sm:$0xf]
        %v2461 = vld [vmem:[%s271 + $0x50] sm:$0xf]
        %v2462 = vld [vmem:[%s271 + $0x54] sm:$0xf]
        %v2463 = vld [vmem:[%s271 + $0x58] sm:$0xf]
        %v2464 = vld [vmem:[%s271 + $0x5c] sm:$0xf]
        %v2465 = vld [vmem:[%s271 + $0x60] sm:$0xf]
        %v2466 = vld [vmem:[%s271 + $0x64] sm:$0xf]
        %v2467 = vld [vmem:[%s271 + $0x68] sm:$0xf]
        %v2468 = vld [vmem:[%s271 + $0x6c] sm:$0xf]
        %v2469 = vld [vmem:[%s271 + $0x70] sm:$0xf]
        %v2470 = vld [vmem:[%s271 + $0x74] sm:$0xf]
        %v2471 = vld [vmem:[%s271 + $0x78] sm:$0xf]
        %v2472 = vld [vmem:[%s271 + $0x7c] sm:$0xf]
        %v2473 = vld [vmem:[%s271 + $0x80] sm:$0xf]
        %v2474 = vld [vmem:[%s271 + $0x84] sm:$0xf]
        %v2475 = vld [vmem:[%s271 + $0x88] sm:$0xf]
        %v2476 = vld [vmem:[%s271 + $0x8c] sm:$0xf]
        %v2477 = vld [vmem:[%s271 + $0x90] sm:$0xf]
        %v2478 = vld [vmem:[%s271 + $0x94] sm:$0xf]
        %v2479 = vld [vmem:[%s271 + $0x98] sm:$0xf]
        %v2480 = vld [vmem:[%s271 + $0x9c] sm:$0xf]
        %v2481 = vld [vmem:[%s271 + $0xa0] sm:$0xf]
        %v2482 = vld [vmem:[%s271 + $0xa4] sm:$0xf]
        %v2483 = vld [vmem:[%s271 + $0xa8] sm:$0xf]
        %v2484 = vld [vmem:[%s271 + $0xac] sm:$0xf]
        %v2485 = vld [vmem:[%s271 + $0xb0] sm:$0xf]
        %v2486 = vld [vmem:[%s271 + $0xb4] sm:$0xf]
        %v2487 = vld [vmem:[%s271 + $0xb8] sm:$0xf]
        %v2488 = vld [vmem:[%s271 + $0xbc] sm:$0xf]
        %v2489 = vld [vmem:[%s271 + $0xc0] sm:$0xf]
        %v2490 = vld [vmem:[%s271 + $0xc4] sm:$0xf]
        %v2491 = vld [vmem:[%s271 + $0xc8] sm:$0x1]
        %s2492 = scalar_lea.vmem %s275, 14
        %v2493 = vld [vmem:[%s2492] sm:$0x3]
        %v2535 = vunpack.c.l.b16 %v2451
        %v2536 = vunpack.c.l.b16 %v2452
        %v2537 = vunpack.c.l.b16 %v2453
        %v2538 = vunpack.c.l.b16 %v2454
        %v2539 = vunpack.c.l.b16 %v2455
        %v2540 = vunpack.c.l.b16 %v2456
        %v2541 = vunpack.c.l.b16 %v2457
        %v2542 = vunpack.c.l.b16 %v2458
        %v2543 = vunpack.c.l.b16 %v2459
        %v2544 = vunpack.c.l.b16 %v2460
        %v2545 = vunpack.c.l.b16 %v2461
        %v2546 = vunpack.c.l.b16 %v2462
        %v2547 = vunpack.c.l.b16 %v2463
        %v2548 = vunpack.c.l.b16 %v2464
        %v2549 = vunpack.c.l.b16 %v2465
        %v2550 = vunpack.c.l.b16 %v2466
        %v2551 = vunpack.c.l.b16 %v2467
        %v2552 = vunpack.c.l.b16 %v2468
        %v2553 = vunpack.c.l.b16 %v2469
        %v2554 = vunpack.c.l.b16 %v2470
        %v2555 = vunpack.c.l.b16 %v2471
        %v2556 = vunpack.c.l.b16 %v2472
        %v2557 = vunpack.c.l.b16 %v2473
        %v2558 = vunpack.c.l.b16 %v2474
        %v2559 = vunpack.c.l.b16 %v2475
        %v2560 = vunpack.c.l.b16 %v2476
        %v2561 = vunpack.c.l.b16 %v2477
        %v2562 = vunpack.c.l.b16 %v2478
        %v2563 = vunpack.c.l.b16 %v2479
        %v2564 = vunpack.c.l.b16 %v2480
        %v2565 = vunpack.c.l.b16 %v2481
        %v2566 = vunpack.c.l.b16 %v2482
        %v2567 = vunpack.c.l.b16 %v2483
        %v2568 = vunpack.c.l.b16 %v2484
        %v2569 = vunpack.c.l.b16 %v2485
        %v2570 = vunpack.c.l.b16 %v2486
        %v2571 = vunpack.c.l.b16 %v2487
        %v2572 = vunpack.c.l.b16 %v2488
        %v2573 = vunpack.c.l.b16 %v2489
        %v2574 = vunpack.c.l.b16 %v2490
        %v2575 = vunpack.c.l.b16 %v2491
        %v2576 = vpack.c.b16 %v2536, %v2535
        %v2577 = vpack.c.b16 %v2538, %v2537
        %v2578 = vpack.c.b16 %v2540, %v2539
        %v2579 = vpack.c.b16 %v2542, %v2541
        %v2580 = vpack.c.b16 %v2544, %v2543
        %v2581 = vpack.c.b16 %v2546, %v2545
        %v2582 = vpack.c.b16 %v2548, %v2547
        %v2583 = vpack.c.b16 %v2550, %v2549
        %v2584 = vpack.c.b16 %v2552, %v2551
        %v2585 = vpack.c.b16 %v2554, %v2553
        %v2586 = vpack.c.b16 %v2556, %v2555
        %v2587 = vpack.c.b16 %v2558, %v2557
        %v2588 = vpack.c.b16 %v2560, %v2559
        %v2589 = vpack.c.b16 %v2562, %v2561
        %v2590 = vpack.c.b16 %v2564, %v2563
        %v2591 = vpack.c.b16 %v2566, %v2565
        %v2592 = vpack.c.b16 %v2568, %v2567
        %v2593 = vpack.c.b16 %v2570, %v2569
        %v2594 = vpack.c.b16 %v2572, %v2571
        %v2595 = vpack.c.b16 %v2574, %v2573
        %v2596 = vpack.c.b16 %v2575, %v2575
        %v2597 = vrot.slane %v2576, 1
        %v2598 = vrot.slane %v2577, 1
        %v2599 = vsel %vm426, %v2597, %v2598
        %v2600 = vrot.slane %v2578, 1
        %v2601 = vsel %vm426, %v2598, %v2600
        %v2602 = vrot.slane %v2579, 1
        %v2603 = vsel %vm426, %v2600, %v2602
        %v2604 = vrot.slane %v2580, 1
        %v2605 = vsel %vm426, %v2602, %v2604
        %v2606 = vrot.slane %v2581, 1
        %v2607 = vsel %vm426, %v2604, %v2606
        %v2608 = vrot.slane %v2582, 1
        %v2609 = vsel %vm426, %v2606, %v2608
        %v2610 = vrot.slane %v2583, 1
        %v2611 = vsel %vm426, %v2608, %v2610
        %v2612 = vrot.slane %v2584, 1
        %v2613 = vsel %vm426, %v2610, %v2612
        %v2614 = vrot.slane %v2585, 1
        %v2615 = vsel %vm426, %v2612, %v2614
        %v2616 = vrot.slane %v2586, 1
        %v2617 = vsel %vm426, %v2614, %v2616
        %v2618 = vrot.slane %v2587, 1
        %v2619 = vsel %vm426, %v2616, %v2618
        %v2620 = vrot.slane %v2588, 1
        %v2621 = vsel %vm426, %v2618, %v2620
        %v2622 = vrot.slane %v2589, 1
        %v2623 = vsel %vm426, %v2620, %v2622
        %v2624 = vrot.slane %v2590, 1
        %v2625 = vsel %vm426, %v2622, %v2624
        %v2626 = vrot.slane %v2591, 1
        %v2627 = vsel %vm426, %v2624, %v2626
        %v2628 = vrot.slane %v2592, 1
        %v2629 = vsel %vm426, %v2626, %v2628
        %v2630 = vrot.slane %v2593, 1
        %v2631 = vsel %vm426, %v2628, %v2630
        %v2632 = vrot.slane %v2594, 1
        %v2633 = vsel %vm426, %v2630, %v2632
        %v2634 = vrot.slane %v2595, 1
        %v2635 = vsel %vm426, %v2632, %v2634
        %v2636 = vrot.slane %v2596, 1
        %v2637 = vsel %vm426, %v2634, %v2636
        %v2639 = vsel %vm468, %v2599, 0
        %v2642 = vsel %vm468, %v2601, 0
        %v2645 = vsel %vm468, %v2603, 0
        %v2648 = vsel %vm468, %v2605, 0
        %v2651 = vsel %vm468, %v2607, 0
        %v2654 = vsel %vm468, %v2609, 0
        %v2657 = vsel %vm468, %v2611, 0
        %v2660 = vsel %vm468, %v2613, 0
        %v2663 = vsel %vm468, %v2615, 0
        %v2666 = vsel %vm468, %v2617, 0
        %v2669 = vsel %vm468, %v2619, 0
        %v2672 = vsel %vm468, %v2621, 0
        %v2675 = vsel %vm468, %v2623, 0
        %v2678 = vsel %vm468, %v2625, 0
        %v2681 = vsel %vm468, %v2627, 0
        %v2684 = vsel %vm468, %v2629, 0
        %v2687 = vsel %vm468, %v2631, 0
        %v2690 = vsel %vm468, %v2633, 0
        %v2693 = vsel %vm468, %v2635, 0
        %v2696 = vsel %vm468, %v2637, 0
        %v2699 = vsel %vm529, %v2493, 0
        %2701 = vmatpush.bf16.msra.mxu0 0
        %2702 = vmatpush.bf16.msra.mxu0 0
        %2703 = vmatpush.bf16.msra.mxu0 0
        %2704 = vmatpush.bf16.msra.mxu0 0
        %2705 = vmatpush.bf16.msra.mxu0 0
        %2706 = vmatpush.bf16.msra.mxu0 0
        %2707 = vmatpush.bf16.msra.mxu0 0
        %2708 = vmatpush.bf16.msra.mxu0 %v2699
        %2709 = vmatmul.bf16.gmra.mxu0 %v2639
        %v2710 = vpop.f32.mrf.mxu0
        %v2711 = vadd.f32 0.0, %v2710
        %v2712 = vpop.f32.mrf.mxu0
        %v2713 = vadd.f32 0.0, %v2712
        %2714 = vmatmul.bf16.gmra.mxu0 %v2642
        %v2715 = vpop.f32.mrf.mxu0
        %v2716 = vadd.f32 0.0, %v2715
        %v2717 = vpop.f32.mrf.mxu0
        %v2718 = vadd.f32 0.0, %v2717
        %2719 = vmatmul.bf16.gmra.mxu0 %v2645
        %v2720 = vpop.f32.mrf.mxu0
        %v2721 = vadd.f32 0.0, %v2720
        %v2722 = vpop.f32.mrf.mxu0
        %v2723 = vadd.f32 0.0, %v2722
        %2724 = vmatmul.bf16.gmra.mxu0 %v2648
        %v2725 = vpop.f32.mrf.mxu0
        %v2726 = vadd.f32 0.0, %v2725
        %v2727 = vpop.f32.mrf.mxu0
        %v2728 = vadd.f32 0.0, %v2727
        %2729 = vmatmul.bf16.gmra.mxu0 %v2651
        %v2730 = vpop.f32.mrf.mxu0
        %v2731 = vadd.f32 0.0, %v2730
        %v2732 = vpop.f32.mrf.mxu0
        %v2733 = vadd.f32 0.0, %v2732
        %2734 = vmatmul.bf16.gmra.mxu0 %v2654
        %v2735 = vpop.f32.mrf.mxu0
        %v2736 = vadd.f32 0.0, %v2735
        %v2737 = vpop.f32.mrf.mxu0
        %v2738 = vadd.f32 0.0, %v2737
        %2739 = vmatmul.bf16.gmra.mxu0 %v2657
        %v2740 = vpop.f32.mrf.mxu0
        %v2741 = vadd.f32 0.0, %v2740
        %v2742 = vpop.f32.mrf.mxu0
        %v2743 = vadd.f32 0.0, %v2742
        %2744 = vmatmul.bf16.gmra.mxu0 %v2660
        %v2745 = vpop.f32.mrf.mxu0
        %v2746 = vadd.f32 0.0, %v2745
        %v2747 = vpop.f32.mrf.mxu0
        %v2748 = vadd.f32 0.0, %v2747
        %2749 = vmatmul.bf16.gmra.mxu0 %v2663
        %v2750 = vpop.f32.mrf.mxu0
        %v2751 = vadd.f32 0.0, %v2750
        %v2752 = vpop.f32.mrf.mxu0
        %v2753 = vadd.f32 0.0, %v2752
        %2754 = vmatmul.bf16.gmra.mxu0 %v2666
        %v2755 = vpop.f32.mrf.mxu0
        %v2756 = vadd.f32 0.0, %v2755
        %v2757 = vpop.f32.mrf.mxu0
        %v2758 = vadd.f32 0.0, %v2757
        %2759 = vmatmul.bf16.gmra.mxu0 %v2669
        %v2760 = vpop.f32.mrf.mxu0
        %v2761 = vadd.f32 0.0, %v2760
        %v2762 = vpop.f32.mrf.mxu0
        %v2763 = vadd.f32 0.0, %v2762
        %2764 = vmatmul.bf16.gmra.mxu0 %v2672
        %v2765 = vpop.f32.mrf.mxu0
        %v2766 = vadd.f32 0.0, %v2765
        %v2767 = vpop.f32.mrf.mxu0
        %v2768 = vadd.f32 0.0, %v2767
        %2769 = vmatmul.bf16.gmra.mxu0 %v2675
        %v2770 = vpop.f32.mrf.mxu0
        %v2771 = vadd.f32 0.0, %v2770
        %v2772 = vpop.f32.mrf.mxu0
        %v2773 = vadd.f32 0.0, %v2772
        %2774 = vmatmul.bf16.gmra.mxu0 %v2678
        %v2775 = vpop.f32.mrf.mxu0
        %v2776 = vadd.f32 0.0, %v2775
        %v2777 = vpop.f32.mrf.mxu0
        %v2778 = vadd.f32 0.0, %v2777
        %2779 = vmatmul.bf16.gmra.mxu0 %v2681
        %v2780 = vpop.f32.mrf.mxu0
        %v2781 = vadd.f32 0.0, %v2780
        %v2782 = vpop.f32.mrf.mxu0
        %v2783 = vadd.f32 0.0, %v2782
        %2784 = vmatmul.bf16.gmra.mxu0 %v2684
        %v2785 = vpop.f32.mrf.mxu0
        %v2786 = vadd.f32 0.0, %v2785
        %v2787 = vpop.f32.mrf.mxu0
        %v2788 = vadd.f32 0.0, %v2787
        %2789 = vmatmul.bf16.gmra.mxu0 %v2687
        %v2790 = vpop.f32.mrf.mxu0
        %v2791 = vadd.f32 0.0, %v2790
        %v2792 = vpop.f32.mrf.mxu0
        %v2793 = vadd.f32 0.0, %v2792
        %2794 = vmatmul.bf16.gmra.mxu0 %v2690
        %v2795 = vpop.f32.mrf.mxu0
        %v2796 = vadd.f32 0.0, %v2795
        %v2797 = vpop.f32.mrf.mxu0
        %v2798 = vadd.f32 0.0, %v2797
        %2799 = vmatmul.bf16.gmra.mxu0 %v2693
        %v2800 = vpop.f32.mrf.mxu0
        %v2801 = vadd.f32 0.0, %v2800
        %v2802 = vpop.f32.mrf.mxu0
        %v2803 = vadd.f32 0.0, %v2802
        %2804 = vmatmul.bf16.gmra.mxu0 %v2696
        %v2805 = vpop.f32.mrf.mxu0
        %v2806 = vadd.f32 0.0, %v2805
        %v2807 = vpop.f32.mrf.mxu0
        %v2808 = vadd.f32 0.0, %v2807
        %2809 = vdwg.mxu0
        %v2810 = vadd.f32 %v2411, %v2711
        %v2811 = vadd.f32 %v2412, %v2713
        %v2812 = vadd.f32 %v2413, %v2716
        %v2813 = vadd.f32 %v2414, %v2718
        %v2814 = vadd.f32 %v2415, %v2721
        %v2815 = vadd.f32 %v2416, %v2723
        %v2816 = vadd.f32 %v2417, %v2726
        %v2817 = vadd.f32 %v2418, %v2728
        %v2818 = vadd.f32 %v2419, %v2731
        %v2819 = vadd.f32 %v2420, %v2733
        %v2820 = vadd.f32 %v2421, %v2736
        %v2821 = vadd.f32 %v2422, %v2738
        %v2822 = vadd.f32 %v2423, %v2741
        %v2823 = vadd.f32 %v2424, %v2743
        %v2824 = vadd.f32 %v2425, %v2746
        %v2825 = vadd.f32 %v2426, %v2748
        %v2826 = vadd.f32 %v2427, %v2751
        %v2827 = vadd.f32 %v2428, %v2753
        %v2828 = vadd.f32 %v2429, %v2756
        %v2829 = vadd.f32 %v2430, %v2758
        %v2830 = vadd.f32 %v2431, %v2761
        %v2831 = vadd.f32 %v2432, %v2763
        %v2832 = vadd.f32 %v2433, %v2766
        %v2833 = vadd.f32 %v2434, %v2768
        %v2834 = vadd.f32 %v2435, %v2771
        %v2835 = vadd.f32 %v2436, %v2773
        %v2836 = vadd.f32 %v2437, %v2776
        %v2837 = vadd.f32 %v2438, %v2778
        %v2838 = vadd.f32 %v2439, %v2781
        %v2839 = vadd.f32 %v2440, %v2783
        %v2840 = vadd.f32 %v2441, %v2786
        %v2841 = vadd.f32 %v2442, %v2788
        %v2842 = vadd.f32 %v2443, %v2791
        %v2843 = vadd.f32 %v2444, %v2793
        %v2844 = vadd.f32 %v2445, %v2796
        %v2845 = vadd.f32 %v2446, %v2798
        %v2846 = vadd.f32 %v2447, %v2801
        %v2847 = vadd.f32 %v2448, %v2803
        %v2848 = vadd.f32 %v2449, %v2806
        %v2849 = vadd.f32 %v2450, %v2808
        %v2850 = vld [vmem:[%s271 + $0x28] sm:$0xc]
        %v2851 = vld [vmem:[%s271 + $0xc8] sm:$0x3]
        %s2852 = scalar_lea.vmem %s275, 16
        %v2853 = vld [vmem:[%s2852] sm:$0x3]
        %v2856 = vunpack.c.l.b16 %v2850
        %v2857 = vunpack.c.l.b16 %v2851
        %v2858 = vpack.c.b16 %v2536, %v2856
        %v2859 = vpack.c.b16 %v2857, %v2857
        %v2860 = vrot.slane %v2858, 2
        %v2861 = vrot.slane %v2577, 2
        %v2862 = vsel %vm827, %v2860, %v2861
        %v2863 = vrot.slane %v2578, 2
        %v2864 = vsel %vm827, %v2861, %v2863
        %v2865 = vrot.slane %v2579, 2
        %v2866 = vsel %vm827, %v2863, %v2865
        %v2867 = vrot.slane %v2580, 2
        %v2868 = vsel %vm827, %v2865, %v2867
        %v2869 = vrot.slane %v2581, 2
        %v2870 = vsel %vm827, %v2867, %v2869
        %v2871 = vrot.slane %v2582, 2
        %v2872 = vsel %vm827, %v2869, %v2871
        %v2873 = vrot.slane %v2583, 2
        %v2874 = vsel %vm827, %v2871, %v2873
        %v2875 = vrot.slane %v2584, 2
        %v2876 = vsel %vm827, %v2873, %v2875
        %v2877 = vrot.slane %v2585, 2
        %v2878 = vsel %vm827, %v2875, %v2877
        %v2879 = vrot.slane %v2586, 2
        %v2880 = vsel %vm827, %v2877, %v2879
        %v2881 = vrot.slane %v2587, 2
        %v2882 = vsel %vm827, %v2879, %v2881
        %v2883 = vrot.slane %v2588, 2
        %v2884 = vsel %vm827, %v2881, %v2883
        %v2885 = vrot.slane %v2589, 2
        %v2886 = vsel %vm827, %v2883, %v2885
        %v2887 = vrot.slane %v2590, 2
        %v2888 = vsel %vm827, %v2885, %v2887
        %v2889 = vrot.slane %v2591, 2
        %v2890 = vsel %vm827, %v2887, %v2889
        %v2891 = vrot.slane %v2592, 2
        %v2892 = vsel %vm827, %v2889, %v2891
        %v2893 = vrot.slane %v2593, 2
        %v2894 = vsel %vm827, %v2891, %v2893
        %v2895 = vrot.slane %v2594, 2
        %v2896 = vsel %vm827, %v2893, %v2895
        %v2897 = vrot.slane %v2595, 2
        %v2898 = vsel %vm827, %v2895, %v2897
        %v2899 = vrot.slane %v2859, 2
        %v2900 = vsel %vm827, %v2897, %v2899
        %v2902 = vsel %vm468, %v2862, 0
        %v2905 = vsel %vm468, %v2864, 0
        %v2908 = vsel %vm468, %v2866, 0
        %v2911 = vsel %vm468, %v2868, 0
        %v2914 = vsel %vm468, %v2870, 0
        %v2917 = vsel %vm468, %v2872, 0
        %v2920 = vsel %vm468, %v2874, 0
        %v2923 = vsel %vm468, %v2876, 0
        %v2926 = vsel %vm468, %v2878, 0
        %v2929 = vsel %vm468, %v2880, 0
        %v2932 = vsel %vm468, %v2882, 0
        %v2935 = vsel %vm468, %v2884, 0
        %v2938 = vsel %vm468, %v2886, 0
        %v2941 = vsel %vm468, %v2888, 0
        %v2944 = vsel %vm468, %v2890, 0
        %v2947 = vsel %vm468, %v2892, 0
        %v2950 = vsel %vm468, %v2894, 0
        %v2953 = vsel %vm468, %v2896, 0
        %v2956 = vsel %vm468, %v2898, 0
        %v2959 = vsel %vm468, %v2900, 0
        %v2962 = vsel %vm529, %v2853, 0
        %2964 = vmatpush.bf16.msra.mxu0 0
        %2965 = vmatpush.bf16.msra.mxu0 0
        %2966 = vmatpush.bf16.msra.mxu0 0
        %2967 = vmatpush.bf16.msra.mxu0 0
        %2968 = vmatpush.bf16.msra.mxu0 0
        %2969 = vmatpush.bf16.msra.mxu0 0
        %2970 = vmatpush.bf16.msra.mxu0 0
        %2971 = vmatpush.bf16.msra.mxu0 %v2962
        %2972 = vmatmul.bf16.gmra.mxu0 %v2902
        %v2973 = vpop.f32.mrf.mxu0
        %v2974 = vadd.f32 0.0, %v2973
        %v2975 = vpop.f32.mrf.mxu0
        %v2976 = vadd.f32 0.0, %v2975
        %2977 = vmatmul.bf16.gmra.mxu0 %v2905
        %v2978 = vpop.f32.mrf.mxu0
        %v2979 = vadd.f32 0.0, %v2978
        %v2980 = vpop.f32.mrf.mxu0
        %v2981 = vadd.f32 0.0, %v2980
        %2982 = vmatmul.bf16.gmra.mxu0 %v2908
        %v2983 = vpop.f32.mrf.mxu0
        %v2984 = vadd.f32 0.0, %v2983
        %v2985 = vpop.f32.mrf.mxu0
        %v2986 = vadd.f32 0.0, %v2985
        %2987 = vmatmul.bf16.gmra.mxu0 %v2911
        %v2988 = vpop.f32.mrf.mxu0
        %v2989 = vadd.f32 0.0, %v2988
        %v2990 = vpop.f32.mrf.mxu0
        %v2991 = vadd.f32 0.0, %v2990
        %2992 = vmatmul.bf16.gmra.mxu0 %v2914
        %v2993 = vpop.f32.mrf.mxu0
        %v2994 = vadd.f32 0.0, %v2993
        %v2995 = vpop.f32.mrf.mxu0
        %v2996 = vadd.f32 0.0, %v2995
        %2997 = vmatmul.bf16.gmra.mxu0 %v2917
        %v2998 = vpop.f32.mrf.mxu0
        %v2999 = vadd.f32 0.0, %v2998
        %v3000 = vpop.f32.mrf.mxu0
        %v3001 = vadd.f32 0.0, %v3000
        %3002 = vmatmul.bf16.gmra.mxu0 %v2920
        %v3003 = vpop.f32.mrf.mxu0
        %v3004 = vadd.f32 0.0, %v3003
        %v3005 = vpop.f32.mrf.mxu0
        %v3006 = vadd.f32 0.0, %v3005
        %3007 = vmatmul.bf16.gmra.mxu0 %v2923
        %v3008 = vpop.f32.mrf.mxu0
        %v3009 = vadd.f32 0.0, %v3008
        %v3010 = vpop.f32.mrf.mxu0
        %v3011 = vadd.f32 0.0, %v3010
        %3012 = vmatmul.bf16.gmra.mxu0 %v2926
        %v3013 = vpop.f32.mrf.mxu0
        %v3014 = vadd.f32 0.0, %v3013
        %v3015 = vpop.f32.mrf.mxu0
        %v3016 = vadd.f32 0.0, %v3015
        %3017 = vmatmul.bf16.gmra.mxu0 %v2929
        %v3018 = vpop.f32.mrf.mxu0
        %v3019 = vadd.f32 0.0, %v3018
        %v3020 = vpop.f32.mrf.mxu0
        %v3021 = vadd.f32 0.0, %v3020
        %3022 = vmatmul.bf16.gmra.mxu0 %v2932
        %v3023 = vpop.f32.mrf.mxu0
        %v3024 = vadd.f32 0.0, %v3023
        %v3025 = vpop.f32.mrf.mxu0
        %v3026 = vadd.f32 0.0, %v3025
        %3027 = vmatmul.bf16.gmra.mxu0 %v2935
        %v3028 = vpop.f32.mrf.mxu0
        %v3029 = vadd.f32 0.0, %v3028
        %v3030 = vpop.f32.mrf.mxu0
        %v3031 = vadd.f32 0.0, %v3030
        %3032 = vmatmul.bf16.gmra.mxu0 %v2938
        %v3033 = vpop.f32.mrf.mxu0
        %v3034 = vadd.f32 0.0, %v3033
        %v3035 = vpop.f32.mrf.mxu0
        %v3036 = vadd.f32 0.0, %v3035
        %3037 = vmatmul.bf16.gmra.mxu0 %v2941
        %v3038 = vpop.f32.mrf.mxu0
        %v3039 = vadd.f32 0.0, %v3038
        %v3040 = vpop.f32.mrf.mxu0
        %v3041 = vadd.f32 0.0, %v3040
        %3042 = vmatmul.bf16.gmra.mxu0 %v2944
        %v3043 = vpop.f32.mrf.mxu0
        %v3044 = vadd.f32 0.0, %v3043
        %v3045 = vpop.f32.mrf.mxu0
        %v3046 = vadd.f32 0.0, %v3045
        %3047 = vmatmul.bf16.gmra.mxu0 %v2947
        %v3048 = vpop.f32.mrf.mxu0
        %v3049 = vadd.f32 0.0, %v3048
        %v3050 = vpop.f32.mrf.mxu0
        %v3051 = vadd.f32 0.0, %v3050
        %3052 = vmatmul.bf16.gmra.mxu0 %v2950
        %v3053 = vpop.f32.mrf.mxu0
        %v3054 = vadd.f32 0.0, %v3053
        %v3055 = vpop.f32.mrf.mxu0
        %v3056 = vadd.f32 0.0, %v3055
        %3057 = vmatmul.bf16.gmra.mxu0 %v2953
        %v3058 = vpop.f32.mrf.mxu0
        %v3059 = vadd.f32 0.0, %v3058
        %v3060 = vpop.f32.mrf.mxu0
        %v3061 = vadd.f32 0.0, %v3060
        %3062 = vmatmul.bf16.gmra.mxu0 %v2956
        %v3063 = vpop.f32.mrf.mxu0
        %v3064 = vadd.f32 0.0, %v3063
        %v3065 = vpop.f32.mrf.mxu0
        %v3066 = vadd.f32 0.0, %v3065
        %3067 = vmatmul.bf16.gmra.mxu0 %v2959
        %v3068 = vpop.f32.mrf.mxu0
        %v3069 = vadd.f32 0.0, %v3068
        %v3070 = vpop.f32.mrf.mxu0
        %v3071 = vadd.f32 0.0, %v3070
        %3072 = vdwg.mxu0
        %v3073 = vadd.f32 %v2810, %v2974
        %v3074 = vadd.f32 %v2811, %v2976
        %v3075 = vadd.f32 %v2812, %v2979
        %v3076 = vadd.f32 %v2813, %v2981
        %v3077 = vadd.f32 %v2814, %v2984
        %v3078 = vadd.f32 %v2815, %v2986
        %v3079 = vadd.f32 %v2816, %v2989
        %v3080 = vadd.f32 %v2817, %v2991
        %v3081 = vadd.f32 %v2818, %v2994
        %v3082 = vadd.f32 %v2819, %v2996
        %v3083 = vadd.f32 %v2820, %v2999
        %v3084 = vadd.f32 %v2821, %v3001
        %v3085 = vadd.f32 %v2822, %v3004
        %v3086 = vadd.f32 %v2823, %v3006
        %v3087 = vadd.f32 %v2824, %v3009
        %v3088 = vadd.f32 %v2825, %v3011
        %v3089 = vadd.f32 %v2826, %v3014
        %v3090 = vadd.f32 %v2827, %v3016
        %v3091 = vadd.f32 %v2828, %v3019
        %v3092 = vadd.f32 %v2829, %v3021
        %v3093 = vadd.f32 %v2830, %v3024
        %v3094 = vadd.f32 %v2831, %v3026
        %v3095 = vadd.f32 %v2832, %v3029
        %v3096 = vadd.f32 %v2833, %v3031
        %v3097 = vadd.f32 %v2834, %v3034
        %v3098 = vadd.f32 %v2835, %v3036
        %v3099 = vadd.f32 %v2836, %v3039
        %v3100 = vadd.f32 %v2837, %v3041
        %v3101 = vadd.f32 %v2838, %v3044
        %v3102 = vadd.f32 %v2839, %v3046
        %v3103 = vadd.f32 %v2840, %v3049
        %v3104 = vadd.f32 %v2841, %v3051
        %v3105 = vadd.f32 %v2842, %v3054
        %v3106 = vadd.f32 %v2843, %v3056
        %v3107 = vadd.f32 %v2844, %v3059
        %v3108 = vadd.f32 %v2845, %v3061
        %v3109 = vadd.f32 %v2846, %v3064
        %v3110 = vadd.f32 %v2847, %v3066
        %v3111 = vadd.f32 %v2848, %v3069
        %v3112 = vadd.f32 %v2849, %v3071
        %v3113 = vpack.c.bf16 %v3073, %v3073
        %v3114 = vpack.c.bf16 %v3074, %v3074
        %v3115 = vpack.c.bf16 %v3075, %v3075
        %v3116 = vpack.c.bf16 %v3076, %v3076
        %v3117 = vpack.c.bf16 %v3077, %v3077
        %v3118 = vpack.c.bf16 %v3078, %v3078
        %v3119 = vpack.c.bf16 %v3079, %v3079
        %v3120 = vpack.c.bf16 %v3080, %v3080
        %v3121 = vpack.c.bf16 %v3081, %v3081
        %v3122 = vpack.c.bf16 %v3082, %v3082
        %v3123 = vpack.c.bf16 %v3083, %v3083
        %v3124 = vpack.c.bf16 %v3084, %v3084
        %v3125 = vpack.c.bf16 %v3085, %v3085
        %v3126 = vpack.c.bf16 %v3086, %v3086
        %v3127 = vpack.c.bf16 %v3087, %v3087
        %v3128 = vpack.c.bf16 %v3088, %v3088
        %v3129 = vpack.c.bf16 %v3089, %v3089
        %v3130 = vpack.c.bf16 %v3090, %v3090
        %v3131 = vpack.c.bf16 %v3091, %v3091
        %v3132 = vpack.c.bf16 %v3092, %v3092
        %v3133 = vpack.c.bf16 %v3093, %v3093
        %v3134 = vpack.c.bf16 %v3094, %v3094
        %v3135 = vpack.c.bf16 %v3095, %v3095
        %v3136 = vpack.c.bf16 %v3096, %v3096
        %v3137 = vpack.c.bf16 %v3097, %v3097
        %v3138 = vpack.c.bf16 %v3098, %v3098
        %v3139 = vpack.c.bf16 %v3099, %v3099
        %v3140 = vpack.c.bf16 %v3100, %v3100
        %v3141 = vpack.c.bf16 %v3101, %v3101
        %v3142 = vpack.c.bf16 %v3102, %v3102
        %v3143 = vpack.c.bf16 %v3103, %v3103
        %v3144 = vpack.c.bf16 %v3104, %v3104
        %v3145 = vpack.c.bf16 %v3105, %v3105
        %v3146 = vpack.c.bf16 %v3106, %v3106
        %v3147 = vpack.c.bf16 %v3107, %v3107
        %v3148 = vpack.c.bf16 %v3108, %v3108
        %v3149 = vpack.c.bf16 %v3109, %v3109
        %v3150 = vpack.c.bf16 %v3110, %v3110
        %v3151 = vpack.c.bf16 %v3111, %v3111
        %v3152 = vpack.c.bf16 %v3112, %v3112
        %3153 = vst [vmem:[%s252] sm:$0xf] %v3113
        %3154 = vst [vmem:[%s252 + $0x4] sm:$0xf] %v3114
        %3155 = vst [vmem:[%s252 + $0x8] sm:$0xf] %v3115
        %3156 = vst [vmem:[%s252 + $0xc] sm:$0xf] %v3116
        %3157 = vst [vmem:[%s252 + $0x10] sm:$0xf] %v3117
        %3158 = vst [vmem:[%s252 + $0x14] sm:$0xf] %v3118
        %3159 = vst [vmem:[%s252 + $0x18] sm:$0xf] %v3119
        %3160 = vst [vmem:[%s252 + $0x1c] sm:$0xf] %v3120
        %3161 = vst [vmem:[%s252 + $0x20] sm:$0xf] %v3121
        %3162 = vst [vmem:[%s252 + $0x24] sm:$0xf] %v3122
        %3163 = vst [vmem:[%s252 + $0x28] sm:$0xf] %v3123
        %3164 = vst [vmem:[%s252 + $0x2c] sm:$0xf] %v3124
        %3165 = vst [vmem:[%s252 + $0x30] sm:$0xf] %v3125
        %3166 = vst [vmem:[%s252 + $0x34] sm:$0xf] %v3126
        %3167 = vst [vmem:[%s252 + $0x38] sm:$0xf] %v3127
        %3168 = vst [vmem:[%s252 + $0x3c] sm:$0xf] %v3128
        %3169 = vst [vmem:[%s252 + $0x40] sm:$0xf] %v3129
        %3170 = vst [vmem:[%s252 + $0x44] sm:$0xf] %v3130
        %3171 = vst [vmem:[%s252 + $0x48] sm:$0xf] %v3131
        %3172 = vst [vmem:[%s252 + $0x4c] sm:$0xf] %v3132
        %3173 = vst [vmem:[%s252 + $0x50] sm:$0xf] %v3133
        %3174 = vst [vmem:[%s252 + $0x54] sm:$0xf] %v3134
        %3175 = vst [vmem:[%s252 + $0x58] sm:$0xf] %v3135
        %3176 = vst [vmem:[%s252 + $0x5c] sm:$0xf] %v3136
        %3177 = vst [vmem:[%s252 + $0x60] sm:$0xf] %v3137
        %3178 = vst [vmem:[%s252 + $0x64] sm:$0xf] %v3138
        %3179 = vst [vmem:[%s252 + $0x68] sm:$0xf] %v3139
        %3180 = vst [vmem:[%s252 + $0x6c] sm:$0xf] %v3140
        %3181 = vst [vmem:[%s252 + $0x70] sm:$0xf] %v3141
        %3182 = vst [vmem:[%s252 + $0x74] sm:$0xf] %v3142
        %3183 = vst [vmem:[%s252 + $0x78] sm:$0xf] %v3143
        %3184 = vst [vmem:[%s252 + $0x7c] sm:$0xf] %v3144
        %3185 = vst [vmem:[%s252 + $0x80] sm:$0xf] %v3145
        %3186 = vst [vmem:[%s252 + $0x84] sm:$0xf] %v3146
        %3187 = vst [vmem:[%s252 + $0x88] sm:$0xf] %v3147
        %3188 = vst [vmem:[%s252 + $0x8c] sm:$0xf] %v3148
        %3189 = vst [vmem:[%s252 + $0x90] sm:$0xf] %v3149
        %3190 = vst [vmem:[%s252 + $0x94] sm:$0xf] %v3150
        %3191 = vst [vmem:[%s252 + $0x98] sm:$0xf] %v3151
        %3192 = vst [vmem:[%s252 + $0x9c] sm:$0xf] %v3152
        %v3193 = vld [vmem:[%s2] sm:$0xff]
        %v3194 = vld [vmem:[%s2 + $0x8] sm:$0xff]
        %v3195 = vld [vmem:[%s2 + $0x10] sm:$0xff]
        %v3196 = vld [vmem:[%s2 + $0x18] sm:$0xff]
        %v3197 = vld [vmem:[%s2 + $0x20] sm:$0xff]
        %v3198 = vld [vmem:[%s2 + $0x28] sm:$0xff]
        %v3199 = vld [vmem:[%s2 + $0x30] sm:$0xff]
        %v3200 = vld [vmem:[%s2 + $0x38] sm:$0xff]
        %v3201 = vld [vmem:[%s2 + $0x40] sm:$0xff]
        %v3202 = vld [vmem:[%s2 + $0x48] sm:$0xff]
        %v3203 = vld [vmem:[%s2 + $0x50] sm:$0xff]
        %v3204 = vld [vmem:[%s2 + $0x58] sm:$0xff]
        %v3205 = vld [vmem:[%s2 + $0x60] sm:$0xff]
        %v3206 = vld [vmem:[%s2 + $0x68] sm:$0xff]
        %v3207 = vld [vmem:[%s2 + $0x70] sm:$0xff]
        %v3208 = vld [vmem:[%s2 + $0x78] sm:$0xff]
        %v3209 = vld [vmem:[%s2 + $0x80] sm:$0xff]
        %v3210 = vld [vmem:[%s2 + $0x88] sm:$0xff]
        %v3211 = vld [vmem:[%s2 + $0x90] sm:$0xff]
        %v3212 = vld [vmem:[%s2 + $0x98] sm:$0xff]
        %v3213 = vld [vmem:[%s2 + $0xa0] sm:$0xff]
        %v3214 = vld [vmem:[%s2 + $0xa8] sm:$0xff]
        %v3215 = vld [vmem:[%s2 + $0xb0] sm:$0xff]
        %v3216 = vld [vmem:[%s2 + $0xb8] sm:$0xff]
        %v3217 = vld [vmem:[%s2 + $0xc0] sm:$0xff]
        %v3218 = vld [vmem:[%s2 + $0xc8] sm:$0xff]
        %v3219 = vld [vmem:[%s2 + $0xd0] sm:$0xff]
        %v3220 = vld [vmem:[%s2 + $0xd8] sm:$0xff]
        %v3221 = vld [vmem:[%s2 + $0xe0] sm:$0xff]
        %v3222 = vld [vmem:[%s2 + $0xe8] sm:$0xff]
        %v3223 = vld [vmem:[%s2 + $0xf0] sm:$0xff]
        %v3224 = vld [vmem:[%s2 + $0xf8] sm:$0xff]
        %v3225 = vld [vmem:[%s2 + $0x100] sm:$0xff]
        %v3226 = vld [vmem:[%s2 + $0x108] sm:$0xff]
        %v3227 = vld [vmem:[%s2 + $0x110] sm:$0xff]
        %v3228 = vld [vmem:[%s2 + $0x118] sm:$0xff]
        %v3229 = vld [vmem:[%s2 + $0x120] sm:$0xff]
        %v3230 = vld [vmem:[%s2 + $0x128] sm:$0xff]
        %v3231 = vld [vmem:[%s2 + $0x130] sm:$0xff]
        %v3232 = vld [vmem:[%s2 + $0x138] sm:$0xff]
        %3234 = vset.pattern.permute.xlu0 0
        %3235 = vperm.xlu0 %3234, %v3193
        %v3236 = vpop.permute.xlu0 %3235
        %3239 = vset.pattern.permute.xlu0 0
        %3240 = vperm.xlu0 %3239, %v3194
        %v3241 = vpop.permute.xlu0 %3240
        %3244 = vset.pattern.permute.xlu0 0
        %3245 = vperm.xlu0 %3244, %v3195
        %v3246 = vpop.permute.xlu0 %3245
        %3249 = vset.pattern.permute.xlu0 0
        %3250 = vperm.xlu0 %3249, %v3196
        %v3251 = vpop.permute.xlu0 %3250
        %3254 = vset.pattern.permute.xlu0 0
        %3255 = vperm.xlu0 %3254, %v3197
        %v3256 = vpop.permute.xlu0 %3255
        %3259 = vset.pattern.permute.xlu0 0
        %3260 = vperm.xlu0 %3259, %v3198
        %v3261 = vpop.permute.xlu0 %3260
        %3264 = vset.pattern.permute.xlu0 0
        %3265 = vperm.xlu0 %3264, %v3199
        %v3266 = vpop.permute.xlu0 %3265
        %3269 = vset.pattern.permute.xlu0 0
        %3270 = vperm.xlu0 %3269, %v3200
        %v3271 = vpop.permute.xlu0 %3270
        %3274 = vset.pattern.permute.xlu0 0
        %3275 = vperm.xlu0 %3274, %v3201
        %v3276 = vpop.permute.xlu0 %3275
        %3279 = vset.pattern.permute.xlu0 0
        %3280 = vperm.xlu0 %3279, %v3202
        %v3281 = vpop.permute.xlu0 %3280
        %3284 = vset.pattern.permute.xlu0 0
        %3285 = vperm.xlu0 %3284, %v3203
        %v3286 = vpop.permute.xlu0 %3285
        %3289 = vset.pattern.permute.xlu0 0
        %3290 = vperm.xlu0 %3289, %v3204
        %v3291 = vpop.permute.xlu0 %3290
        %3294 = vset.pattern.permute.xlu0 0
        %3295 = vperm.xlu0 %3294, %v3205
        %v3296 = vpop.permute.xlu0 %3295
        %3299 = vset.pattern.permute.xlu0 0
        %3300 = vperm.xlu0 %3299, %v3206
        %v3301 = vpop.permute.xlu0 %3300
        %3304 = vset.pattern.permute.xlu0 0
        %3305 = vperm.xlu0 %3304, %v3207
        %v3306 = vpop.permute.xlu0 %3305
        %3309 = vset.pattern.permute.xlu0 0
        %3310 = vperm.xlu0 %3309, %v3208
        %v3311 = vpop.permute.xlu0 %3310
        %3314 = vset.pattern.permute.xlu0 0
        %3315 = vperm.xlu0 %3314, %v3209
        %v3316 = vpop.permute.xlu0 %3315
        %3319 = vset.pattern.permute.xlu0 0
        %3320 = vperm.xlu0 %3319, %v3210
        %v3321 = vpop.permute.xlu0 %3320
        %3324 = vset.pattern.permute.xlu0 0
        %3325 = vperm.xlu0 %3324, %v3211
        %v3326 = vpop.permute.xlu0 %3325
        %3329 = vset.pattern.permute.xlu0 0
        %3330 = vperm.xlu0 %3329, %v3212
        %v3331 = vpop.permute.xlu0 %3330
        %3334 = vset.pattern.permute.xlu0 0
        %3335 = vperm.xlu0 %3334, %v3213
        %v3336 = vpop.permute.xlu0 %3335
        %3339 = vset.pattern.permute.xlu0 0
        %3340 = vperm.xlu0 %3339, %v3214
        %v3341 = vpop.permute.xlu0 %3340
        %3344 = vset.pattern.permute.xlu0 0
        %3345 = vperm.xlu0 %3344, %v3215
        %v3346 = vpop.permute.xlu0 %3345
        %3349 = vset.pattern.permute.xlu0 0
        %3350 = vperm.xlu0 %3349, %v3216
        %v3351 = vpop.permute.xlu0 %3350
        %3354 = vset.pattern.permute.xlu0 0
        %3355 = vperm.xlu0 %3354, %v3217
        %v3356 = vpop.permute.xlu0 %3355
        %3359 = vset.pattern.permute.xlu0 0
        %3360 = vperm.xlu0 %3359, %v3218
        %v3361 = vpop.permute.xlu0 %3360
        %3364 = vset.pattern.permute.xlu0 0
        %3365 = vperm.xlu0 %3364, %v3219
        %v3366 = vpop.permute.xlu0 %3365
        %3369 = vset.pattern.permute.xlu0 0
        %3370 = vperm.xlu0 %3369, %v3220
        %v3371 = vpop.permute.xlu0 %3370
        %3374 = vset.pattern.permute.xlu0 0
        %3375 = vperm.xlu0 %3374, %v3221
        %v3376 = vpop.permute.xlu0 %3375
        %3379 = vset.pattern.permute.xlu0 0
        %3380 = vperm.xlu0 %3379, %v3222
        %v3381 = vpop.permute.xlu0 %3380
        %3384 = vset.pattern.permute.xlu0 0
        %3385 = vperm.xlu0 %3384, %v3223
        %v3386 = vpop.permute.xlu0 %3385
        %3389 = vset.pattern.permute.xlu0 0
        %3390 = vperm.xlu0 %3389, %v3224
        %v3391 = vpop.permute.xlu0 %3390
        %3394 = vset.pattern.permute.xlu0 0
        %3395 = vperm.xlu0 %3394, %v3225
        %v3396 = vpop.permute.xlu0 %3395
        %3399 = vset.pattern.permute.xlu0 0
        %3400 = vperm.xlu0 %3399, %v3226
        %v3401 = vpop.permute.xlu0 %3400
        %3404 = vset.pattern.permute.xlu0 0
        %3405 = vperm.xlu0 %3404, %v3227
        %v3406 = vpop.permute.xlu0 %3405
        %3409 = vset.pattern.permute.xlu0 0
        %3410 = vperm.xlu0 %3409, %v3228
        %v3411 = vpop.permute.xlu0 %3410
        %3414 = vset.pattern.permute.xlu0 0
        %3415 = vperm.xlu0 %3414, %v3229
        %v3416 = vpop.permute.xlu0 %3415
        %3419 = vset.pattern.permute.xlu0 0
        %3420 = vperm.xlu0 %3419, %v3230
        %v3421 = vpop.permute.xlu0 %3420
        %3424 = vset.pattern.permute.xlu0 0
        %3425 = vperm.xlu0 %3424, %v3231
        %v3426 = vpop.permute.xlu0 %3425
        %3429 = vset.pattern.permute.xlu0 0
        %3430 = vperm.xlu0 %3429, %v3232
        %v3431 = vpop.permute.xlu0 %3430
        %v3433 = vmul.f32 %v3073, %v3236
        %v3434 = vmul.f32 %v3074, %v3241
        %v3435 = vmul.f32 %v3075, %v3246
        %v3436 = vmul.f32 %v3076, %v3251
        %v3437 = vmul.f32 %v3077, %v3256
        %v3438 = vmul.f32 %v3078, %v3261
        %v3439 = vmul.f32 %v3079, %v3266
        %v3440 = vmul.f32 %v3080, %v3271
        %v3441 = vmul.f32 %v3081, %v3276
        %v3442 = vmul.f32 %v3082, %v3281
        %v3443 = vmul.f32 %v3083, %v3286
        %v3444 = vmul.f32 %v3084, %v3291
        %v3445 = vmul.f32 %v3085, %v3296
        %v3446 = vmul.f32 %v3086, %v3301
        %v3447 = vmul.f32 %v3087, %v3306
        %v3448 = vmul.f32 %v3088, %v3311
        %v3449 = vmul.f32 %v3089, %v3316
        %v3450 = vmul.f32 %v3090, %v3321
        %v3451 = vmul.f32 %v3091, %v3326
        %v3452 = vmul.f32 %v3092, %v3331
        %v3453 = vmul.f32 %v3093, %v3336
        %v3454 = vmul.f32 %v3094, %v3341
        %v3455 = vmul.f32 %v3095, %v3346
        %v3456 = vmul.f32 %v3096, %v3351
        %v3457 = vmul.f32 %v3097, %v3356
        %v3458 = vmul.f32 %v3098, %v3361
        %v3459 = vmul.f32 %v3099, %v3366
        %v3460 = vmul.f32 %v3100, %v3371
        %v3461 = vmul.f32 %v3101, %v3376
        %v3462 = vmul.f32 %v3102, %v3381
        %v3463 = vmul.f32 %v3103, %v3386
        %v3464 = vmul.f32 %v3104, %v3391
        %v3465 = vmul.f32 %v3105, %v3396
        %v3466 = vmul.f32 %v3106, %v3401
        %v3467 = vmul.f32 %v3107, %v3406
        %v3468 = vmul.f32 %v3108, %v3411
        %v3469 = vmul.f32 %v3109, %v3416
        %v3470 = vmul.f32 %v3110, %v3421
        %v3471 = vmul.f32 %v3111, %v3426
        %v3472 = vmul.f32 %v3112, %v3431
        %v3473 = vadd.f32 %v3433, %v3434
        %v3474 = vadd.f32 %v3473, %v3435
        %v3475 = vadd.f32 %v3474, %v3436
        %v3476 = vadd.f32 %v3475, %v3437
        %v3477 = vadd.f32 %v3476, %v3438
        %v3478 = vadd.f32 %v3477, %v3439
        %v3479 = vadd.f32 %v3478, %v3440
        %v3480 = vadd.f32 %v3479, %v3441
        %v3481 = vadd.f32 %v3480, %v3442
        %v3482 = vadd.f32 %v3481, %v3443
        %v3483 = vadd.f32 %v3482, %v3444
        %v3484 = vadd.f32 %v3483, %v3445
        %v3485 = vadd.f32 %v3484, %v3446
        %v3486 = vadd.f32 %v3485, %v3447
        %v3487 = vadd.f32 %v3486, %v3448
        %v3488 = vadd.f32 %v3487, %v3449
        %v3489 = vadd.f32 %v3488, %v3450
        %v3490 = vadd.f32 %v3489, %v3451
        %v3491 = vadd.f32 %v3490, %v3452
        %v3492 = vadd.f32 %v3491, %v3453
        %v3493 = vadd.f32 %v3492, %v3454
        %v3494 = vadd.f32 %v3493, %v3455
        %v3495 = vadd.f32 %v3494, %v3456
        %v3496 = vadd.f32 %v3495, %v3457
        %v3497 = vadd.f32 %v3496, %v3458
        %v3498 = vadd.f32 %v3497, %v3459
        %v3499 = vadd.f32 %v3498, %v3460
        %v3500 = vadd.f32 %v3499, %v3461
        %v3501 = vadd.f32 %v3500, %v3462
        %v3502 = vadd.f32 %v3501, %v3463
        %v3503 = vadd.f32 %v3502, %v3464
        %v3504 = vadd.f32 %v3503, %v3465
        %v3505 = vadd.f32 %v3504, %v3466
        %v3506 = vadd.f32 %v3505, %v3467
        %v3507 = vadd.f32 %v3506, %v3468
        %v3508 = vadd.f32 %v3507, %v3469
        %v3509 = vadd.f32 %v3508, %v3470
        %v3510 = vadd.f32 %v3509, %v3471
        %v3511 = vadd.f32 %v3510, %v3472
        %v3512 = vrot.slane %v3511, 4
        %v3513 = vadd.f32 %v3511, %v3512
        %v3514 = vrot.slane %v3513, 2
        %v3515 = vadd.f32 %v3513, %v3514
        %v3516 = vrot.slane %v3515, 1
        %v3517 = vadd.f32 %v3515, %v3516
        %v3518 = vmul.f32 %v3517, 0.00390625
        %v3519 = vsub.f32 %v3073, %v3518
        %v3520 = vsub.f32 %v3074, %v3518
        %v3521 = vsub.f32 %v3075, %v3518
        %v3522 = vsub.f32 %v3076, %v3518
        %v3523 = vsub.f32 %v3077, %v3518
        %v3524 = vsub.f32 %v3078, %v3518
        %v3525 = vsub.f32 %v3079, %v3518
        %v3526 = vsub.f32 %v3080, %v3518
        %v3527 = vsub.f32 %v3081, %v3518
        %v3528 = vsub.f32 %v3082, %v3518
        %v3529 = vsub.f32 %v3083, %v3518
        %v3530 = vsub.f32 %v3084, %v3518
        %v3531 = vsub.f32 %v3085, %v3518
        %v3532 = vsub.f32 %v3086, %v3518
        %v3533 = vsub.f32 %v3087, %v3518
        %v3534 = vsub.f32 %v3088, %v3518
        %v3535 = vsub.f32 %v3089, %v3518
        %v3536 = vsub.f32 %v3090, %v3518
        %v3537 = vsub.f32 %v3091, %v3518
        %v3538 = vsub.f32 %v3092, %v3518
        %v3539 = vsub.f32 %v3093, %v3518
        %v3540 = vsub.f32 %v3094, %v3518
        %v3541 = vsub.f32 %v3095, %v3518
        %v3542 = vsub.f32 %v3096, %v3518
        %v3543 = vsub.f32 %v3097, %v3518
        %v3544 = vsub.f32 %v3098, %v3518
        %v3545 = vsub.f32 %v3099, %v3518
        %v3546 = vsub.f32 %v3100, %v3518
        %v3547 = vsub.f32 %v3101, %v3518
        %v3548 = vsub.f32 %v3102, %v3518
        %v3549 = vsub.f32 %v3103, %v3518
        %v3550 = vsub.f32 %v3104, %v3518
        %v3551 = vsub.f32 %v3105, %v3518
        %v3552 = vsub.f32 %v3106, %v3518
        %v3553 = vsub.f32 %v3107, %v3518
        %v3554 = vsub.f32 %v3108, %v3518
        %v3555 = vsub.f32 %v3109, %v3518
        %v3556 = vsub.f32 %v3110, %v3518
        %v3557 = vsub.f32 %v3111, %v3518
        %v3558 = vsub.f32 %v3112, %v3518
        %v3559 = vmul.f32 %v3519, %v3236
        %v3560 = vmul.f32 %v3520, %v3241
        %v3561 = vmul.f32 %v3521, %v3246
        %v3562 = vmul.f32 %v3522, %v3251
        %v3563 = vmul.f32 %v3523, %v3256
        %v3564 = vmul.f32 %v3524, %v3261
        %v3565 = vmul.f32 %v3525, %v3266
        %v3566 = vmul.f32 %v3526, %v3271
        %v3567 = vmul.f32 %v3527, %v3276
        %v3568 = vmul.f32 %v3528, %v3281
        %v3569 = vmul.f32 %v3529, %v3286
        %v3570 = vmul.f32 %v3530, %v3291
        %v3571 = vmul.f32 %v3531, %v3296
        %v3572 = vmul.f32 %v3532, %v3301
        %v3573 = vmul.f32 %v3533, %v3306
        %v3574 = vmul.f32 %v3534, %v3311
        %v3575 = vmul.f32 %v3535, %v3316
        %v3576 = vmul.f32 %v3536, %v3321
        %v3577 = vmul.f32 %v3537, %v3326
        %v3578 = vmul.f32 %v3538, %v3331
        %v3579 = vmul.f32 %v3539, %v3336
        %v3580 = vmul.f32 %v3540, %v3341
        %v3581 = vmul.f32 %v3541, %v3346
        %v3582 = vmul.f32 %v3542, %v3351
        %v3583 = vmul.f32 %v3543, %v3356
        %v3584 = vmul.f32 %v3544, %v3361
        %v3585 = vmul.f32 %v3545, %v3366
        %v3586 = vmul.f32 %v3546, %v3371
        %v3587 = vmul.f32 %v3547, %v3376
        %v3588 = vmul.f32 %v3548, %v3381
        %v3589 = vmul.f32 %v3549, %v3386
        %v3590 = vmul.f32 %v3550, %v3391
        %v3591 = vmul.f32 %v3551, %v3396
        %v3592 = vmul.f32 %v3552, %v3401
        %v3593 = vmul.f32 %v3553, %v3406
        %v3594 = vmul.f32 %v3554, %v3411
        %v3595 = vmul.f32 %v3555, %v3416
        %v3596 = vmul.f32 %v3556, %v3421
        %v3597 = vmul.f32 %v3557, %v3426
        %v3598 = vmul.f32 %v3558, %v3431
        %v3599 = vmul.f32 %v3559, %v3559
        %v3600 = vmul.f32 %v3560, %v3560
        %v3601 = vmul.f32 %v3561, %v3561
        %v3602 = vmul.f32 %v3562, %v3562
        %v3603 = vmul.f32 %v3563, %v3563
        %v3604 = vmul.f32 %v3564, %v3564
        %v3605 = vmul.f32 %v3565, %v3565
        %v3606 = vmul.f32 %v3566, %v3566
        %v3607 = vmul.f32 %v3567, %v3567
        %v3608 = vmul.f32 %v3568, %v3568
        %v3609 = vmul.f32 %v3569, %v3569
        %v3610 = vmul.f32 %v3570, %v3570
        %v3611 = vmul.f32 %v3571, %v3571
        %v3612 = vmul.f32 %v3572, %v3572
        %v3613 = vmul.f32 %v3573, %v3573
        %v3614 = vmul.f32 %v3574, %v3574
        %v3615 = vmul.f32 %v3575, %v3575
        %v3616 = vmul.f32 %v3576, %v3576
        %v3617 = vmul.f32 %v3577, %v3577
        %v3618 = vmul.f32 %v3578, %v3578
        %v3619 = vmul.f32 %v3579, %v3579
        %v3620 = vmul.f32 %v3580, %v3580
        %v3621 = vmul.f32 %v3581, %v3581
        %v3622 = vmul.f32 %v3582, %v3582
        %v3623 = vmul.f32 %v3583, %v3583
        %v3624 = vmul.f32 %v3584, %v3584
        %v3625 = vmul.f32 %v3585, %v3585
        %v3626 = vmul.f32 %v3586, %v3586
        %v3627 = vmul.f32 %v3587, %v3587
        %v3628 = vmul.f32 %v3588, %v3588
        %v3629 = vmul.f32 %v3589, %v3589
        %v3630 = vmul.f32 %v3590, %v3590
        %v3631 = vmul.f32 %v3591, %v3591
        %v3632 = vmul.f32 %v3592, %v3592
        %v3633 = vmul.f32 %v3593, %v3593
        %v3634 = vmul.f32 %v3594, %v3594
        %v3635 = vmul.f32 %v3595, %v3595
        %v3636 = vmul.f32 %v3596, %v3596
        %v3637 = vmul.f32 %v3597, %v3597
        %v3638 = vmul.f32 %v3598, %v3598
        %v3639 = vadd.f32 %v3599, %v3600
        %v3640 = vadd.f32 %v3639, %v3601
        %v3641 = vadd.f32 %v3640, %v3602
        %v3642 = vadd.f32 %v3641, %v3603
        %v3643 = vadd.f32 %v3642, %v3604
        %v3644 = vadd.f32 %v3643, %v3605
        %v3645 = vadd.f32 %v3644, %v3606
        %v3646 = vadd.f32 %v3645, %v3607
        %v3647 = vadd.f32 %v3646, %v3608
        %v3648 = vadd.f32 %v3647, %v3609
        %v3649 = vadd.f32 %v3648, %v3610
        %v3650 = vadd.f32 %v3649, %v3611
        %v3651 = vadd.f32 %v3650, %v3612
        %v3652 = vadd.f32 %v3651, %v3613
        %v3653 = vadd.f32 %v3652, %v3614
        %v3654 = vadd.f32 %v3653, %v3615
        %v3655 = vadd.f32 %v3654, %v3616
        %v3656 = vadd.f32 %v3655, %v3617
        %v3657 = vadd.f32 %v3656, %v3618
        %v3658 = vadd.f32 %v3657, %v3619
        %v3659 = vadd.f32 %v3658, %v3620
        %v3660 = vadd.f32 %v3659, %v3621
        %v3661 = vadd.f32 %v3660, %v3622
        %v3662 = vadd.f32 %v3661, %v3623
        %v3663 = vadd.f32 %v3662, %v3624
        %v3664 = vadd.f32 %v3663, %v3625
        %v3665 = vadd.f32 %v3664, %v3626
        %v3666 = vadd.f32 %v3665, %v3627
        %v3667 = vadd.f32 %v3666, %v3628
        %v3668 = vadd.f32 %v3667, %v3629
        %v3669 = vadd.f32 %v3668, %v3630
        %v3670 = vadd.f32 %v3669, %v3631
        %v3671 = vadd.f32 %v3670, %v3632
        %v3672 = vadd.f32 %v3671, %v3633
        %v3673 = vadd.f32 %v3672, %v3634
        %v3674 = vadd.f32 %v3673, %v3635
        %v3675 = vadd.f32 %v3674, %v3636
        %v3676 = vadd.f32 %v3675, %v3637
        %v3677 = vadd.f32 %v3676, %v3638
        %v3678 = vrot.slane %v3677, 4
        %v3679 = vadd.f32 %v3677, %v3678
        %v3680 = vrot.slane %v3679, 2
        %v3681 = vadd.f32 %v3679, %v3680
        %v3682 = vrot.slane %v3681, 1
        %v3683 = vadd.f32 %v3681, %v3682
        %3684 = vst [vmem:[%s259] sm:$0xff] %v3517
        %3685 = vst [vmem:[%s266] sm:$0xff] %v3683
        %s3686 = sand.u32 %s118, 1
        %s3687 = scalar_lea.sflag [#allocation3], %s3686
        %s3688 = sand.u32 %s118, 1
        %s3689 = smul.addr %s3688, 160
        %s3690 = scalar_lea.vmem [#allocation2], %s3689
        %s3691 = sand.u32 %s23, 1
        %s3692 = scalar_lea.sflag [#allocation5], %s3691
        %s3693 = sand.u32 %s146, 1
        %s3694 = smul.addr %s3693, 8
        %s3695 = scalar_lea.vmem [#allocation4], %s3694
        %s3696 = sand.u32 %s23, 1
        %s3697 = scalar_lea.sflag [#allocation5], %s3696
        %s3698 = sand.u32 %s174, 1
        %s3699 = smul.addr %s3698, 8
        %s3700 = scalar_lea.vmem [#allocation6], %s3699
        // Predicated region
        $region33: #{tpu_custom_call.1} parent=31 // pred_check
          %p3701 = pneg %p128
        $region34: #{tpu_custom_call.1} parent=31 // pred_check_branch
          %3703 = sbr.rel (%p3701) target = $region36
        $region35: #{tpu_custom_call.1} parent=31 // pred_region
          %s3704 = smul.u32 40, %s27
          %3706 = vsyncadd %s3687, 0
          %s3707 = sadd.s32 %s28, %s3704
          %s3708 = smul.addr %s3707, 4
          %s3709 = scalar_lea.hbm %s3, %s3708
          %s3710 = sshll.u32 %s3690, 4
          %s3711 = int_to_ptr.vmem [resolvable:$true] %s3710
          %s3712 = sshll.u32 %s3709, 4
          %s3713 = int_to_ptr.hbm [resolvable:$true] %s3712
          %3718 = dma.vmem_to_hbm [thread:$0]  %s3711, 2560, %s3713, %s3687, 64, 64, 4
        $region36: #{tpu_custom_call.1} parent=31 // pred_fallthru
          _
        // Predicated region
        $region37: #{tpu_custom_call.1} parent=31 // pred_check
          %p3719 = pneg %p156
        $region38: #{tpu_custom_call.1} parent=31 // pred_check_branch
          %3721 = sbr.rel (%p3719) target = $region40
        $region39: #{tpu_custom_call.1} parent=31 // pred_region
          %3723 = vsyncadd %s3692, 0
          %s3724 = sadd.s32 %s28, %s27
          %s3725 = smul.addr %s3724, 8
          %s3726 = scalar_lea.hbm %s4, %s3725
          %s3728 = sshll.u32 %s3695, 4
          %s3729 = int_to_ptr.vmem [resolvable:$true] %s3728
          %s3730 = sshll.u32 %s3726, 4
          %s3731 = int_to_ptr.hbm [resolvable:$true] %s3730
          %3733 = dma.vmem_to_hbm [thread:$0]  %s3729, 128, %s3731, %s3692
        $region40: #{tpu_custom_call.1} parent=31 // pred_fallthru
          _
        // Predicated region
        $region41: #{tpu_custom_call.1} parent=31 // pred_check
          %p3734 = pneg %p184
        $region42: #{tpu_custom_call.1} parent=31 // pred_check_branch
          %3736 = sbr.rel (%p3734) target = $region44
        $region43: #{tpu_custom_call.1} parent=31 // pred_region
          %3738 = vsyncadd %s3697, 0
          %s3739 = sadd.s32 %s28, %s27
          %s3740 = smul.addr %s3739, 8
          %s3741 = scalar_lea.hbm %s5, %s3740
          %s3743 = sshll.u32 %s3700, 4
          %s3744 = int_to_ptr.vmem [resolvable:$true] %s3743
          %s3745 = sshll.u32 %s3741, 4
          %s3746 = int_to_ptr.hbm [resolvable:$true] %s3745
          %3748 = dma.vmem_to_hbm [thread:$0]  %s3744, 128, %s3746, %s3697
        $region44: #{tpu_custom_call.1} parent=31 // pred_fallthru
          _
      $region32: #{tpu_custom_call.1} parent=5 // pred_fallthru
        _
      %p3749 = scmp.le.s32.totalorder 2, %s18
      // Predicated region
      $region45: #{tpu_custom_call.1} parent=5 // pred_check
        %p3750 = pneg %p3749
      $region46: #{tpu_custom_call.1} parent=5 // pred_check_branch
        %3752 = sbr.rel (%p3750) target = $region48
      $region47: #{tpu_custom_call.1} parent=5 // pred_region
        %s3753 = ssub.s32 %s18, 2
        // Predicated region
        $region49: #{tpu_custom_call.1} parent=47 // pred_check
          %p3754 = pneg %p134
        $region50: #{tpu_custom_call.1} parent=47 // pred_check_branch
          %3756 = sbr.rel (%p3754) target = $region52
        $region51: #{tpu_custom_call.1} parent=47 // pred_region
          %s3757 = sand.u32 %s119, 1
          %s3758 = scalar_lea.sflag [#allocation3], %s3757
          %s3759 = sand.u32 %s119, 1
          %s3760 = smul.addr %s3759, 160
          %s3761 = scalar_lea.vmem [#allocation2], %s3760
          %3763 = dma.done %s3758, 2560
        $region52: #{tpu_custom_call.1} parent=47 // pred_fallthru
          _
        // Predicated region
        $region53: #{tpu_custom_call.1} parent=47 // pred_check
          %p3764 = pneg %p162
        $region54: #{tpu_custom_call.1} parent=47 // pred_check_branch
          %3766 = sbr.rel (%p3764) target = $region56
        $region55: #{tpu_custom_call.1} parent=47 // pred_region
          %s3767 = sand.u32 %s24, 1
          %s3768 = scalar_lea.sflag [#allocation5], %s3767
          %s3769 = sand.u32 %s147, 1
          %s3770 = smul.addr %s3769, 8
          %s3771 = scalar_lea.vmem [#allocation4], %s3770
          %3773 = dma.done %s3768, 128
        $region56: #{tpu_custom_call.1} parent=47 // pred_fallthru
          _
        // Predicated region
        $region57: #{tpu_custom_call.1} parent=47 // pred_check
          %p3774 = pneg %p190
        $region58: #{tpu_custom_call.1} parent=47 // pred_check_branch
          %3776 = sbr.rel (%p3774) target = $region60
        $region59: #{tpu_custom_call.1} parent=47 // pred_region
          %s3777 = sand.u32 %s24, 1
          %s3778 = scalar_lea.sflag [#allocation5], %s3777
          %s3779 = sand.u32 %s175, 1
          %s3780 = smul.addr %s3779, 8
          %s3781 = scalar_lea.vmem [#allocation6], %s3780
          %3783 = dma.done %s3778, 128
        $region60: #{tpu_custom_call.1} parent=47 // pred_fallthru
          _
      $region48: #{tpu_custom_call.1} parent=5 // pred_fallthru
        _
    $region6: #{tpu_custom_call.1} parent=1 // loop_footer
      %s22 = sadd.s32 1, %s18
    $region7: #{tpu_custom_call.1} parent=1 // loop_footer_branch
      %17 = sbr.rel target = $region3
    $region8: #{tpu_custom_call.1} parent=1 // loop_exit
      _
    %3784 = vsyncpa [#allocation3], 1
    %s3785 = scalar_lea.sflag [#allocation3], 1
    %3786 = vsyncpa %s3785, 1
    %3787 = vsyncpa [#allocation5], 1
    %s3788 = scalar_lea.sflag [#allocation5], 1
    %3789 = vsyncpa %s3788, 1

</llo_original>
